<compile_context>
chip_gen: v5e
topology: v5e:2x2
jax: 0.10.0
libtpu: 0.0.40
codegen_flags: <defaults>
</compile_context>

<pallas_src>
import jax
import jax.numpy as jnp
import numpy as np
from jax.experimental import pallas as pl
from jax.experimental.pallas import tpu as pltpu

CIN, COUT, KH, KW = 3, 16, 3, 3
H = W = 32                 # spatial size implied by fc1 (16*16*16 after 2x2 pool)
HP = WP = 16               # pooled spatial size
HID, NOUT = 64, 10
NPAD = 128                 # fc2 output padded to 128 lanes (unmasked stores)
FLAT = COUT * HP * WP      # 4096
XL = 128                   # lanes per packed input row: (W+2)*CIN = 102, zero-padded to 128


def _round_up(n, m):
    return (n + m - 1) // m * m


def _pick_bb(B):
    # Big enough to fill MXU rows and amortize the ~0.35us/grid-step overhead, small enough
    # to fit v7x's 64 MiB/TC VMEM; for mid-size B pick ceil(B/2) so the grid has 2 steps and
    # both v7x TensorCores get work (dimension_semantics=("parallel",)).
    if B <= 8:
        return 8
    if B <= 256:
        return _round_up((B + 1) // 2, 8)
    return 128


def net4_fused_kernel(x_ref, wb_ref, bc_ref, w1_ref, b1_ref, w2_ref, b2_ref, o_ref):
    # x_ref : (bb, H+2, XL)        bf16 packed/zero-padded rows, lane = padded_col*CIN + ci
    # wb_ref: (KH*XL, W*COUT)      bf16 banded conv weights, out lane = (w%2)*256 + (w//2)*16 + co
    # bc_ref: (1, W*COUT)          f32 conv bias tiled over width
    # w1_ref: (HP, HID, WP*COUT)   bf16 fc1 weights permuted to the pooled layout (RHS transposed)
    # b1_ref: (1, HID)             f32
    # w2_ref: (NPAD, HID)          bf16 fc2 weights, zero-padded rows NOUT..127 (RHS transposed)
    # b2_ref: (1, NPAD)            f32
    # o_ref : (bb, NPAD)           f32
    x = x_ref[...]
    bb = x.shape[0]

    # --- conv1 (3x3, pad=1): ONE lane-dense K=384 MXU matmul ---
    # The three shifted row windows are concatenated along the lane dim (three aligned
    # 128-lane chunks), so the whole 3x3 conv is a single (bb*H,384)@(384,512) pass.
    lhs = jnp.concatenate(
        [x[:, 0:H, :], x[:, 1:H + 1, :], x[:, 2:H + 2, :]], axis=2)   # (bb, H, 3*XL)
    lhs = lhs.reshape(bb * H, KH * XL)
    conv = jnp.dot(lhs, wb_ref[...], preferred_element_type=jnp.float32)  # (bb*H, 512) f32
    conv = jnp.maximum(conv + bc_ref[...], 0.0)                            # bias + ReLU

    # --- 2x2 / stride-2 max pool ---
    # width pairs (w=2wp, 2wp+1) live in the two aligned 256-lane halves by construction
    wmax = jnp.maximum(conv[:, :WP * COUT], conv[:, WP * COUT:])      # (bb*H, 256)
    hmax = wmax.reshape(bb * HP, 2, WP * COUT)                        # row pairs (h=2hp, 2hp+1)
    pooled = jnp.maximum(hmax[:, 0, :], hmax[:, 1, :])                # (bb*HP, 256)
    pooled = pooled.reshape(bb, HP, WP * COUT).astype(jnp.bfloat16)

    # TODO(synk): Dropout(p=0.25) is an inference-time no-op (identity); training-mode masking
    # (pltpu.prng_seed / prng_random_bits) is not implemented here.

    # --- fc1 + ReLU: sum over hp of (bb,256)@(256,64) bf16 MXU matmuls (RHS kept transposed) ---
    acc = jax.lax.dot_general(
        pooled[:, 0, :], w1_ref[0],
        dimension_numbers=(((1,), (1,)), ((), ())),
        preferred_element_type=jnp.float32)
    for hp in range(1, HP):
        acc = acc + jax.lax.dot_general(
            pooled[:, hp, :], w1_ref[hp],
            dimension_numbers=(((1,), (1,)), ((), ())),
            preferred_element_type=jnp.float32)
    h = jnp.maximum(acc + b1_ref[...], 0.0).astype(jnp.bfloat16)      # (bb, 64)

    # --- fc2 (output N padded to 128 lanes -> unmasked stores) ---
    o_ref[...] = jax.lax.dot_general(
        h, w2_ref[...],
        dimension_numbers=(((1,), (1,)), ((), ())),
        preferred_element_type=jnp.float32) + b2_ref[...]


def prepare_params(params):
    """One-time host-side repack of PyTorch-layout params (no per-call transposes)."""
    w_conv, b_conv, w_fc1, b_fc1, w_fc2, b_fc2 = params
    w_conv = np.asarray(w_conv, np.float32)
    b_conv = np.asarray(b_conv, np.float32)
    w_fc1 = np.asarray(w_fc1, np.float32)
    w_fc2 = np.asarray(w_fc2, np.float32)
    b_fc2 = np.asarray(b_fc2, np.float32)

    # Banded conv weights (single K=384 band):
    #   conv[(b,h), outcol(w,co)] = lane_concat_kh(x_row[b, h+kh, :]) @ wband
    # with input row index kh*XL + (w+kw)*CIN + ci and
    # outcol(w, co) = (w % 2)*WP*COUT + (w // 2)*COUT + co  (even/odd width columns land in
    # separate 256-lane halves so the width pool is two aligned slices).
    wband = np.zeros((KH * XL, W * COUT), np.float32)
    w_idx = np.arange(W)
    col_base = (w_idx % 2) * (WP * COUT) + (w_idx // 2) * COUT             # (W,)
    cols = col_base[:, None] + np.arange(COUT)[None, :]                    # (W, COUT)
    for kh in range(KH):
        for kw in range(KW):
            for ci in range(CIN):
                rows = kh * XL + (w_idx + kw) * CIN + ci                   # (W,)
                wband[rows[:, None], cols] = w_conv[None, :, ci, kh, kw]

    bias_cols = np.tile(b_conv, W).reshape(1, W * COUT)                    # b_conv[lane % 16]

    # fc1 weights permuted so the kernel's pooled layout (lane = wp*COUT + co, per-hp slab)
    # contracts to exactly torch's x.view(-1, 16*16*16) @ w_fc1.T
    w1p = np.transpose(w_fc1.reshape(HID, COUT, HP, WP), (2, 0, 3, 1)).reshape(HP, HID, WP * COUT)

    # fc2 weights/bias zero-padded to 128 output lanes
    w2p = np.zeros((NPAD, HID), np.float32)
    w2p[:NOUT] = w_fc2
    b2p = np.zeros((1, NPAD), np.float32)
    b2p[0, :NOUT] = b_fc2

    return (jnp.asarray(wband, jnp.bfloat16),
            jnp.asarray(bias_cols, jnp.float32),
            jnp.asarray(w1p, jnp.bfloat16),
            jnp.asarray(b_fc1, jnp.float32).reshape(1, HID),
            jnp.asarray(w2p, jnp.bfloat16),
            jnp.asarray(b2p, jnp.float32))


@jax.jit
def net4_forward(x_nchw, prepared):
    wband, bc, w1p, b1, w2p, b2p = prepared
    B = x_nchw.shape[0]

    # pack the input: NCHW -> rows = padded H, lanes = padded_col*CIN + ci, zero-padded to 128
    # (fused into the jit; bf16 halves the kernel's LHS bytes)
    x = jnp.transpose(x_nchw, (0, 2, 3, 1)).reshape(B, H, W * CIN)
    x = jnp.pad(x, ((0, 0), (1, 1), (CIN, XL - W * CIN - CIN))).astype(jnp.bfloat16)

    bb = _pick_bb(B)
    b_pad = _round_up(B, bb)
    if b_pad != B:
        x = jnp.pad(x, ((0, b_pad - B), (0, 0), (0, 0)))   # no OOB reads on the last block
    grid = (b_pad // bb,)

    out = pl.pallas_call(
        net4_fused_kernel,
        out_shape=jax.ShapeDtypeStruct((b_pad, NPAD), jnp.float32),
        grid=grid,
        in_specs=[
            pl.BlockSpec((bb, H + 2, XL), lambda i: (i, 0, 0)),
            pl.BlockSpec((KH * XL, W * COUT), lambda i: (0, 0)),
            pl.BlockSpec((1, W * COUT), lambda i: (0, 0)),
            pl.BlockSpec((HP, HID, WP * COUT), lambda i: (0, 0, 0)),
            pl.BlockSpec((1, HID), lambda i: (0, 0)),
            pl.BlockSpec((NPAD, HID), lambda i: (0, 0)),
            pl.BlockSpec((1, NPAD), lambda i: (0, 0)),
        ],
        out_specs=pl.BlockSpec((bb, NPAD), lambda i: (i, 0)),
        compiler_params=pltpu.CompilerParams(
            dimension_semantics=("parallel",),
            vmem_limit_bytes=48 * 1024 * 1024),
    )(x, wband, bc, w1p, b1, w2p, b2p)

    return out[:B, :NOUT]


def init_params(key):
    # Deterministic synthetic parameters matching the PyTorch module's shapes.
    ks = jax.random.split(key, 6)
    w_conv = jax.random.normal(ks[0], (COUT, CIN, KH, KW), jnp.float32) * 0.1   # OIHW
    b_conv = jax.random.normal(ks[1], (COUT,), jnp.float32) * 0.1
    w_fc1 = jax.random.normal(ks[2], (HID, FLAT), jnp.float32) * 0.02           # torch (out,in)
    b_fc1 = jax.random.normal(ks[3], (HID,), jnp.float32) * 0.02
    w_fc2 = jax.random.normal(ks[4], (NOUT, HID), jnp.float32) * 0.1
    b_fc2 = jax.random.normal(ks[5], (NOUT,), jnp.float32) * 0.1
    return (w_conv, b_conv, w_fc1, b_fc1, w_fc2, b_fc2)


def reference_forward(x_nchw, params):
    # Pure-JAX f32 reference reproducing the PyTorch forward (eval mode: dropout = identity).
    w_conv, b_conv, w_fc1, b_fc1, w_fc2, b_fc2 = params
    y = jax.lax.conv_general_dilated(
        x_nchw, w_conv, window_strides=(1, 1), padding=((1, 1), (1, 1)),
        dimension_numbers=("NCHW", "OIHW", "NCHW"))
    y = jnp.maximum(y + b_conv.reshape(1, COUT, 1, 1), 0.0)
    y = jax.lax.reduce_window(y, -jnp.inf, jax.lax.max,
                              (1, 1, 2, 2), (1, 1, 2, 2), "VALID")
    y = y.reshape(y.shape[0], -1)
    h = jnp.maximum(y @ w_fc1.T + b_fc1, 0.0)
    return h @ w_fc2.T + b_fc2


if __name__ == "__main__":
    key = jax.random.PRNGKey(0)
    kx, kp = jax.random.split(key)
    B = 2
    x = jax.random.normal(kx, (B, CIN, H, W), jnp.float32)
    params = init_params(kp)
    prepared = prepare_params(params)

    out = jax.block_until_ready(net4_forward(x, prepared))

    ref = reference_forward(x, params)
    assert out.shape == (B, NOUT)
    # bf16 matmul operands with f32 accumulation -> relaxed tolerance vs the f32 reference.
    err = jnp.max(jnp.abs(out - ref))
    assert jnp.allclose(out, ref, atol=3e-2, rtol=3e-2), f"max abs err {err}"
    print("KERNEL_OK")
</pallas_src>

<mosaic_0001>
module attributes {stable_mosaic.version = 11 : i64} {
  func.func @net4_fused_kernel(%arg0: i32, %arg1: memref<8x34x128xbf16, #tpu.memory_space<vmem>>, %arg2: memref<384x512xbf16, #tpu.memory_space<vmem>>, %arg3: memref<1x512xf32, #tpu.memory_space<vmem>>, %arg4: memref<16x64x256xbf16, #tpu.memory_space<vmem>>, %arg5: memref<1x64xf32, #tpu.memory_space<vmem>>, %arg6: memref<128x64xbf16, #tpu.memory_space<vmem>>, %arg7: memref<1x128xf32, #tpu.memory_space<vmem>>, %arg8: memref<8x128xf32, #tpu.memory_space<vmem>>) attributes {dimension_semantics = [#tpu.dimension_semantics<parallel>], iteration_bounds = array<i64: 1>, scalar_prefetch = 0 : i64, scratch_operands = 0 : i64, tpu.core_type = #tpu.core_type<tc>, window_params = [{transform_indices = @transform_0, window_bounds = array<i64: 8, 34, 128>}, {pipeline_mode = #tpu.pipeline_mode<synchronous>, transform_indices = @transform_1, window_bounds = array<i64: 384, 512>}, {pipeline_mode = #tpu.pipeline_mode<synchronous>, transform_indices = @transform_2, window_bounds = array<i64: 1, 512>}, {pipeline_mode = #tpu.pipeline_mode<synchronous>, transform_indices = @transform_3, window_bounds = array<i64: 16, 64, 256>}, {pipeline_mode = #tpu.pipeline_mode<synchronous>, transform_indices = @transform_4, window_bounds = array<i64: 1, 64>}, {pipeline_mode = #tpu.pipeline_mode<synchronous>, transform_indices = @transform_5, window_bounds = array<i64: 128, 64>}, {pipeline_mode = #tpu.pipeline_mode<synchronous>, transform_indices = @transform_6, window_bounds = array<i64: 1, 128>}, {transform_indices = @transform_7, window_bounds = array<i64: 8, 128>}]} {
    %c0 = arith.constant 0 : index
    %c0_0 = arith.constant 0 : index
    %c0_1 = arith.constant 0 : index
    %0 = vector.load %arg1[%c0, %c0_0, %c0_1] : memref<8x34x128xbf16, #tpu.memory_space<vmem>>, vector<8x34x128xbf16>
    %1 = vector.extract_strided_slice %0 {offsets = [0, 0, 0], sizes = [8, 32, 128], strides = [1, 1, 1]} : vector<8x34x128xbf16> to vector<8x32x128xbf16>
    %2 = vector.extract_strided_slice %0 {offsets = [0, 1, 0], sizes = [8, 32, 128], strides = [1, 1, 1]} : vector<8x34x128xbf16> to vector<8x32x128xbf16>
    %3 = vector.extract_strided_slice %0 {offsets = [0, 2, 0], sizes = [8, 32, 128], strides = [1, 1, 1]} : vector<8x34x128xbf16> to vector<8x32x128xbf16>
    %4 = tpu.concatenate %1, %2, %3 in 2 : vector<8x32x128xbf16>, vector<8x32x128xbf16>, vector<8x32x128xbf16> -> vector<8x32x384xbf16>
    %5 = vector.shape_cast %4 : vector<8x32x384xbf16> to vector<256x384xbf16>
    %c0_2 = arith.constant 0 : index
    %c0_3 = arith.constant 0 : index
    %6 = vector.load %arg2[%c0_2, %c0_3] : memref<384x512xbf16, #tpu.memory_space<vmem>>, vector<384x512xbf16>
    %cst = arith.constant dense<0.000000e+00> : vector<256x512xf32>
    %7 = tpu.matmul %5, %6, %cst {dimension_numbers = #tpu.dot_dimension_numbers<[1], [0], [0], [1], [0, 0, 1, 1], [], []>} : vector<256x384xbf16>, vector<384x512xbf16>, vector<256x512xf32> -> vector<256x512xf32>
    %c0_4 = arith.constant 0 : index
    %c0_5 = arith.constant 0 : index
    %8 = vector.load %arg3[%c0_4, %c0_5] : memref<1x512xf32, #tpu.memory_space<vmem>>, vector<1x512xf32>
    %9 = vector.broadcast %8 : vector<1x512xf32> to vector<256x512xf32>
    %10 = arith.addf %7, %9 : vector<256x512xf32>
    %cst_6 = arith.constant 0.000000e+00 : f32
    %11 = vector.broadcast %cst_6 : f32 to vector<256x512xf32>
    %12 = arith.maximumf %10, %11 : vector<256x512xf32>
    %13 = vector.extract_strided_slice %12 {offsets = [0, 0], sizes = [256, 256], strides = [1, 1]} : vector<256x512xf32> to vector<256x256xf32>
    %14 = vector.extract_strided_slice %12 {offsets = [0, 256], sizes = [256, 256], strides = [1, 1]} : vector<256x512xf32> to vector<256x256xf32>
    %15 = arith.maximumf %13, %14 : vector<256x256xf32>
    %16 = vector.shape_cast %15 : vector<256x256xf32> to vector<128x2x256xf32>
    %17 = vector.extract_strided_slice %16 {offsets = [0, 0, 0], sizes = [128, 1, 256], strides = [1, 1, 1]} : vector<128x2x256xf32> to vector<128x1x256xf32>
    %18 = vector.shape_cast %17 : vector<128x1x256xf32> to vector<128x256xf32>
    %19 = vector.extract_strided_slice %16 {offsets = [0, 1, 0], sizes = [128, 1, 256], strides = [1, 1, 1]} : vector<128x2x256xf32> to vector<128x1x256xf32>
    %20 = vector.shape_cast %19 : vector<128x1x256xf32> to vector<128x256xf32>
    %21 = arith.maximumf %18, %20 : vector<128x256xf32>
    %22 = vector.shape_cast %21 : vector<128x256xf32> to vector<8x16x256xf32>
    %23 = arith.truncf %22 : vector<8x16x256xf32> to vector<8x16x256xbf16>
    %24 = vector.extract_strided_slice %23 {offsets = [0, 0, 0], sizes = [8, 1, 256], strides = [1, 1, 1]} : vector<8x16x256xbf16> to vector<8x1x256xbf16>
    %25 = vector.shape_cast %24 : vector<8x1x256xbf16> to vector<8x256xbf16>
    %c0_7 = arith.constant 0 : index
    %c0_8 = arith.constant 0 : index
    %c0_9 = arith.constant 0 : index
    %26 = vector.load %arg4[%c0_7, %c0_8, %c0_9] : memref<16x64x256xbf16, #tpu.memory_space<vmem>>, vector<1x64x256xbf16>
    %27 = vector.shape_cast %26 : vector<1x64x256xbf16> to vector<64x256xbf16>
    %cst_10 = arith.constant dense<0.000000e+00> : vector<8x64xf32>
    %28 = tpu.matmul %25, %27, %cst_10 {dimension_numbers = #tpu.dot_dimension_numbers<[1], [1], [0], [0], [0, 0, 1, 0], [], []>} : vector<8x256xbf16>, vector<64x256xbf16>, vector<8x64xf32> -> vector<8x64xf32>
    %29 = vector.extract_strided_slice %23 {offsets = [0, 1, 0], sizes = [8, 1, 256], strides = [1, 1, 1]} : vector<8x16x256xbf16> to vector<8x1x256xbf16>
    %30 = vector.shape_cast %29 : vector<8x1x256xbf16> to vector<8x256xbf16>
    %c1 = arith.constant 1 : index
    %c0_11 = arith.constant 0 : index
    %c0_12 = arith.constant 0 : index
    %31 = vector.load %arg4[%c1, %c0_11, %c0_12] : memref<16x64x256xbf16, #tpu.memory_space<vmem>>, vector<1x64x256xbf16>
    %32 = vector.shape_cast %31 : vector<1x64x256xbf16> to vector<64x256xbf16>
    %cst_13 = arith.constant dense<0.000000e+00> : vector<8x64xf32>
    %33 = tpu.matmul %30, %32, %cst_13 {dimension_numbers = #tpu.dot_dimension_numbers<[1], [1], [0], [0], [0, 0, 1, 0], [], []>} : vector<8x256xbf16>, vector<64x256xbf16>, vector<8x64xf32> -> vector<8x64xf32>
    %34 = arith.addf %28, %33 : vector<8x64xf32>
    %35 = vector.extract_strided_slice %23 {offsets = [0, 2, 0], sizes = [8, 1, 256], strides = [1, 1, 1]} : vector<8x16x256xbf16> to vector<8x1x256xbf16>
    %36 = vector.shape_cast %35 : vector<8x1x256xbf16> to vector<8x256xbf16>
    %c2 = arith.constant 2 : index
    %c0_14 = arith.constant 0 : index
    %c0_15 = arith.constant 0 : index
    %37 = vector.load %arg4[%c2, %c0_14, %c0_15] : memref<16x64x256xbf16, #tpu.memory_space<vmem>>, vector<1x64x256xbf16>
    %38 = vector.shape_cast %37 : vector<1x64x256xbf16> to vector<64x256xbf16>
    %cst_16 = arith.constant dense<0.000000e+00> : vector<8x64xf32>
    %39 = tpu.matmul %36, %38, %cst_16 {dimension_numbers = #tpu.dot_dimension_numbers<[1], [1], [0], [0], [0, 0, 1, 0], [], []>} : vector<8x256xbf16>, vector<64x256xbf16>, vector<8x64xf32> -> vector<8x64xf32>
    %40 = arith.addf %34, %39 : vector<8x64xf32>
    %41 = vector.extract_strided_slice %23 {offsets = [0, 3, 0], sizes = [8, 1, 256], strides = [1, 1, 1]} : vector<8x16x256xbf16> to vector<8x1x256xbf16>
    %42 = vector.shape_cast %41 : vector<8x1x256xbf16> to vector<8x256xbf16>
    %c3 = arith.constant 3 : index
    %c0_17 = arith.constant 0 : index
    %c0_18 = arith.constant 0 : index
    %43 = vector.load %arg4[%c3, %c0_17, %c0_18] : memref<16x64x256xbf16, #tpu.memory_space<vmem>>, vector<1x64x256xbf16>
    %44 = vector.shape_cast %43 : vector<1x64x256xbf16> to vector<64x256xbf16>
    %cst_19 = arith.constant dense<0.000000e+00> : vector<8x64xf32>
    %45 = tpu.matmul %42, %44, %cst_19 {dimension_numbers = #tpu.dot_dimension_numbers<[1], [1], [0], [0], [0, 0, 1, 0], [], []>} : vector<8x256xbf16>, vector<64x256xbf16>, vector<8x64xf32> -> vector<8x64xf32>
    %46 = arith.addf %40, %45 : vector<8x64xf32>
    %47 = vector.extract_strided_slice %23 {offsets = [0, 4, 0], sizes = [8, 1, 256], strides = [1, 1, 1]} : vector<8x16x256xbf16> to vector<8x1x256xbf16>
    %48 = vector.shape_cast %47 : vector<8x1x256xbf16> to vector<8x256xbf16>
    %c4 = arith.constant 4 : index
    %c0_20 = arith.constant 0 : index
    %c0_21 = arith.constant 0 : index
    %49 = vector.load %arg4[%c4, %c0_20, %c0_21] : memref<16x64x256xbf16, #tpu.memory_space<vmem>>, vector<1x64x256xbf16>
    %50 = vector.shape_cast %49 : vector<1x64x256xbf16> to vector<64x256xbf16>
    %cst_22 = arith.constant dense<0.000000e+00> : vector<8x64xf32>
    %51 = tpu.matmul %48, %50, %cst_22 {dimension_numbers = #tpu.dot_dimension_numbers<[1], [1], [0], [0], [0, 0, 1, 0], [], []>} : vector<8x256xbf16>, vector<64x256xbf16>, vector<8x64xf32> -> vector<8x64xf32>
    %52 = arith.addf %46, %51 : vector<8x64xf32>
    %53 = vector.extract_strided_slice %23 {offsets = [0, 5, 0], sizes = [8, 1, 256], strides = [1, 1, 1]} : vector<8x16x256xbf16> to vector<8x1x256xbf16>
    %54 = vector.shape_cast %53 : vector<8x1x256xbf16> to vector<8x256xbf16>
    %c5 = arith.constant 5 : index
    %c0_23 = arith.constant 0 : index
    %c0_24 = arith.constant 0 : index
    %55 = vector.load %arg4[%c5, %c0_23, %c0_24] : memref<16x64x256xbf16, #tpu.memory_space<vmem>>, vector<1x64x256xbf16>
    %56 = vector.shape_cast %55 : vector<1x64x256xbf16> to vector<64x256xbf16>
    %cst_25 = arith.constant dense<0.000000e+00> : vector<8x64xf32>
    %57 = tpu.matmul %54, %56, %cst_25 {dimension_numbers = #tpu.dot_dimension_numbers<[1], [1], [0], [0], [0, 0, 1, 0], [], []>} : vector<8x256xbf16>, vector<64x256xbf16>, vector<8x64xf32> -> vector<8x64xf32>
    %58 = arith.addf %52, %57 : vector<8x64xf32>
    %59 = vector.extract_strided_slice %23 {offsets = [0, 6, 0], sizes = [8, 1, 256], strides = [1, 1, 1]} : vector<8x16x256xbf16> to vector<8x1x256xbf16>
    %60 = vector.shape_cast %59 : vector<8x1x256xbf16> to vector<8x256xbf16>
    %c6 = arith.constant 6 : index
    %c0_26 = arith.constant 0 : index
    %c0_27 = arith.constant 0 : index
    %61 = vector.load %arg4[%c6, %c0_26, %c0_27] : memref<16x64x256xbf16, #tpu.memory_space<vmem>>, vector<1x64x256xbf16>
    %62 = vector.shape_cast %61 : vector<1x64x256xbf16> to vector<64x256xbf16>
    %cst_28 = arith.constant dense<0.000000e+00> : vector<8x64xf32>
    %63 = tpu.matmul %60, %62, %cst_28 {dimension_numbers = #tpu.dot_dimension_numbers<[1], [1], [0], [0], [0, 0, 1, 0], [], []>} : vector<8x256xbf16>, vector<64x256xbf16>, vector<8x64xf32> -> vector<8x64xf32>
    %64 = arith.addf %58, %63 : vector<8x64xf32>
    %65 = vector.extract_strided_slice %23 {offsets = [0, 7, 0], sizes = [8, 1, 256], strides = [1, 1, 1]} : vector<8x16x256xbf16> to vector<8x1x256xbf16>
    %66 = vector.shape_cast %65 : vector<8x1x256xbf16> to vector<8x256xbf16>
    %c7 = arith.constant 7 : index
    %c0_29 = arith.constant 0 : index
    %c0_30 = arith.constant 0 : index
    %67 = vector.load %arg4[%c7, %c0_29, %c0_30] : memref<16x64x256xbf16, #tpu.memory_space<vmem>>, vector<1x64x256xbf16>
    %68 = vector.shape_cast %67 : vector<1x64x256xbf16> to vector<64x256xbf16>
    %cst_31 = arith.constant dense<0.000000e+00> : vector<8x64xf32>
    %69 = tpu.matmul %66, %68, %cst_31 {dimension_numbers = #tpu.dot_dimension_numbers<[1], [1], [0], [0], [0, 0, 1, 0], [], []>} : vector<8x256xbf16>, vector<64x256xbf16>, vector<8x64xf32> -> vector<8x64xf32>
    %70 = arith.addf %64, %69 : vector<8x64xf32>
    %71 = vector.extract_strided_slice %23 {offsets = [0, 8, 0], sizes = [8, 1, 256], strides = [1, 1, 1]} : vector<8x16x256xbf16> to vector<8x1x256xbf16>
    %72 = vector.shape_cast %71 : vector<8x1x256xbf16> to vector<8x256xbf16>
    %c8 = arith.constant 8 : index
    %c0_32 = arith.constant 0 : index
    %c0_33 = arith.constant 0 : index
    %73 = vector.load %arg4[%c8, %c0_32, %c0_33] : memref<16x64x256xbf16, #tpu.memory_space<vmem>>, vector<1x64x256xbf16>
    %74 = vector.shape_cast %73 : vector<1x64x256xbf16> to vector<64x256xbf16>
    %cst_34 = arith.constant dense<0.000000e+00> : vector<8x64xf32>
    %75 = tpu.matmul %72, %74, %cst_34 {dimension_numbers = #tpu.dot_dimension_numbers<[1], [1], [0], [0], [0, 0, 1, 0], [], []>} : vector<8x256xbf16>, vector<64x256xbf16>, vector<8x64xf32> -> vector<8x64xf32>
    %76 = arith.addf %70, %75 : vector<8x64xf32>
    %77 = vector.extract_strided_slice %23 {offsets = [0, 9, 0], sizes = [8, 1, 256], strides = [1, 1, 1]} : vector<8x16x256xbf16> to vector<8x1x256xbf16>
    %78 = vector.shape_cast %77 : vector<8x1x256xbf16> to vector<8x256xbf16>
    %c9 = arith.constant 9 : index
    %c0_35 = arith.constant 0 : index
    %c0_36 = arith.constant 0 : index
    %79 = vector.load %arg4[%c9, %c0_35, %c0_36] : memref<16x64x256xbf16, #tpu.memory_space<vmem>>, vector<1x64x256xbf16>
    %80 = vector.shape_cast %79 : vector<1x64x256xbf16> to vector<64x256xbf16>
    %cst_37 = arith.constant dense<0.000000e+00> : vector<8x64xf32>
    %81 = tpu.matmul %78, %80, %cst_37 {dimension_numbers = #tpu.dot_dimension_numbers<[1], [1], [0], [0], [0, 0, 1, 0], [], []>} : vector<8x256xbf16>, vector<64x256xbf16>, vector<8x64xf32> -> vector<8x64xf32>
    %82 = arith.addf %76, %81 : vector<8x64xf32>
    %83 = vector.extract_strided_slice %23 {offsets = [0, 10, 0], sizes = [8, 1, 256], strides = [1, 1, 1]} : vector<8x16x256xbf16> to vector<8x1x256xbf16>
    %84 = vector.shape_cast %83 : vector<8x1x256xbf16> to vector<8x256xbf16>
    %c10 = arith.constant 10 : index
    %c0_38 = arith.constant 0 : index
    %c0_39 = arith.constant 0 : index
    %85 = vector.load %arg4[%c10, %c0_38, %c0_39] : memref<16x64x256xbf16, #tpu.memory_space<vmem>>, vector<1x64x256xbf16>
    %86 = vector.shape_cast %85 : vector<1x64x256xbf16> to vector<64x256xbf16>
    %cst_40 = arith.constant dense<0.000000e+00> : vector<8x64xf32>
    %87 = tpu.matmul %84, %86, %cst_40 {dimension_numbers = #tpu.dot_dimension_numbers<[1], [1], [0], [0], [0, 0, 1, 0], [], []>} : vector<8x256xbf16>, vector<64x256xbf16>, vector<8x64xf32> -> vector<8x64xf32>
    %88 = arith.addf %82, %87 : vector<8x64xf32>
    %89 = vector.extract_strided_slice %23 {offsets = [0, 11, 0], sizes = [8, 1, 256], strides = [1, 1, 1]} : vector<8x16x256xbf16> to vector<8x1x256xbf16>
    %90 = vector.shape_cast %89 : vector<8x1x256xbf16> to vector<8x256xbf16>
    %c11 = arith.constant 11 : index
    %c0_41 = arith.constant 0 : index
    %c0_42 = arith.constant 0 : index
    %91 = vector.load %arg4[%c11, %c0_41, %c0_42] : memref<16x64x256xbf16, #tpu.memory_space<vmem>>, vector<1x64x256xbf16>
    %92 = vector.shape_cast %91 : vector<1x64x256xbf16> to vector<64x256xbf16>
    %cst_43 = arith.constant dense<0.000000e+00> : vector<8x64xf32>
    %93 = tpu.matmul %90, %92, %cst_43 {dimension_numbers = #tpu.dot_dimension_numbers<[1], [1], [0], [0], [0, 0, 1, 0], [], []>} : vector<8x256xbf16>, vector<64x256xbf16>, vector<8x64xf32> -> vector<8x64xf32>
    %94 = arith.addf %88, %93 : vector<8x64xf32>
    %95 = vector.extract_strided_slice %23 {offsets = [0, 12, 0], sizes = [8, 1, 256], strides = [1, 1, 1]} : vector<8x16x256xbf16> to vector<8x1x256xbf16>
    %96 = vector.shape_cast %95 : vector<8x1x256xbf16> to vector<8x256xbf16>
    %c12 = arith.constant 12 : index
    %c0_44 = arith.constant 0 : index
    %c0_45 = arith.constant 0 : index
    %97 = vector.load %arg4[%c12, %c0_44, %c0_45] : memref<16x64x256xbf16, #tpu.memory_space<vmem>>, vector<1x64x256xbf16>
    %98 = vector.shape_cast %97 : vector<1x64x256xbf16> to vector<64x256xbf16>
    %cst_46 = arith.constant dense<0.000000e+00> : vector<8x64xf32>
    %99 = tpu.matmul %96, %98, %cst_46 {dimension_numbers = #tpu.dot_dimension_numbers<[1], [1], [0], [0], [0, 0, 1, 0], [], []>} : vector<8x256xbf16>, vector<64x256xbf16>, vector<8x64xf32> -> vector<8x64xf32>
    %100 = arith.addf %94, %99 : vector<8x64xf32>
    %101 = vector.extract_strided_slice %23 {offsets = [0, 13, 0], sizes = [8, 1, 256], strides = [1, 1, 1]} : vector<8x16x256xbf16> to vector<8x1x256xbf16>
    %102 = vector.shape_cast %101 : vector<8x1x256xbf16> to vector<8x256xbf16>
    %c13 = arith.constant 13 : index
    %c0_47 = arith.constant 0 : index
    %c0_48 = arith.constant 0 : index
    %103 = vector.load %arg4[%c13, %c0_47, %c0_48] : memref<16x64x256xbf16, #tpu.memory_space<vmem>>, vector<1x64x256xbf16>
    %104 = vector.shape_cast %103 : vector<1x64x256xbf16> to vector<64x256xbf16>
    %cst_49 = arith.constant dense<0.000000e+00> : vector<8x64xf32>
    %105 = tpu.matmul %102, %104, %cst_49 {dimension_numbers = #tpu.dot_dimension_numbers<[1], [1], [0], [0], [0, 0, 1, 0], [], []>} : vector<8x256xbf16>, vector<64x256xbf16>, vector<8x64xf32> -> vector<8x64xf32>
    %106 = arith.addf %100, %105 : vector<8x64xf32>
    %107 = vector.extract_strided_slice %23 {offsets = [0, 14, 0], sizes = [8, 1, 256], strides = [1, 1, 1]} : vector<8x16x256xbf16> to vector<8x1x256xbf16>
    %108 = vector.shape_cast %107 : vector<8x1x256xbf16> to vector<8x256xbf16>
    %c14 = arith.constant 14 : index
    %c0_50 = arith.constant 0 : index
    %c0_51 = arith.constant 0 : index
    %109 = vector.load %arg4[%c14, %c0_50, %c0_51] : memref<16x64x256xbf16, #tpu.memory_space<vmem>>, vector<1x64x256xbf16>
    %110 = vector.shape_cast %109 : vector<1x64x256xbf16> to vector<64x256xbf16>
    %cst_52 = arith.constant dense<0.000000e+00> : vector<8x64xf32>
    %111 = tpu.matmul %108, %110, %cst_52 {dimension_numbers = #tpu.dot_dimension_numbers<[1], [1], [0], [0], [0, 0, 1, 0], [], []>} : vector<8x256xbf16>, vector<64x256xbf16>, vector<8x64xf32> -> vector<8x64xf32>
    %112 = arith.addf %106, %111 : vector<8x64xf32>
    %113 = vector.extract_strided_slice %23 {offsets = [0, 15, 0], sizes = [8, 1, 256], strides = [1, 1, 1]} : vector<8x16x256xbf16> to vector<8x1x256xbf16>
    %114 = vector.shape_cast %113 : vector<8x1x256xbf16> to vector<8x256xbf16>
    %c15 = arith.constant 15 : index
    %c0_53 = arith.constant 0 : index
    %c0_54 = arith.constant 0 : index
    %115 = vector.load %arg4[%c15, %c0_53, %c0_54] : memref<16x64x256xbf16, #tpu.memory_space<vmem>>, vector<1x64x256xbf16>
    %116 = vector.shape_cast %115 : vector<1x64x256xbf16> to vector<64x256xbf16>
    %cst_55 = arith.constant dense<0.000000e+00> : vector<8x64xf32>
    %117 = tpu.matmul %114, %116, %cst_55 {dimension_numbers = #tpu.dot_dimension_numbers<[1], [1], [0], [0], [0, 0, 1, 0], [], []>} : vector<8x256xbf16>, vector<64x256xbf16>, vector<8x64xf32> -> vector<8x64xf32>
    %118 = arith.addf %112, %117 : vector<8x64xf32>
    %c0_56 = arith.constant 0 : index
    %c0_57 = arith.constant 0 : index
    %119 = vector.load %arg5[%c0_56, %c0_57] : memref<1x64xf32, #tpu.memory_space<vmem>>, vector<1x64xf32>
    %120 = vector.broadcast %119 : vector<1x64xf32> to vector<8x64xf32>
    %121 = arith.addf %118, %120 : vector<8x64xf32>
    %cst_58 = arith.constant 0.000000e+00 : f32
    %122 = vector.broadcast %cst_58 : f32 to vector<8x64xf32>
    %123 = arith.maximumf %121, %122 : vector<8x64xf32>
    %124 = arith.truncf %123 : vector<8x64xf32> to vector<8x64xbf16>
    %c0_59 = arith.constant 0 : index
    %c0_60 = arith.constant 0 : index
    %125 = vector.load %arg6[%c0_59, %c0_60] : memref<128x64xbf16, #tpu.memory_space<vmem>>, vector<128x64xbf16>
    %cst_61 = arith.constant dense<0.000000e+00> : vector<8x128xf32>
    %126 = tpu.matmul %124, %125, %cst_61 {dimension_numbers = #tpu.dot_dimension_numbers<[1], [1], [0], [0], [0, 0, 1, 0], [], []>} : vector<8x64xbf16>, vector<128x64xbf16>, vector<8x128xf32> -> vector<8x128xf32>
    %c0_62 = arith.constant 0 : index
    %c0_63 = arith.constant 0 : index
    %127 = vector.load %arg7[%c0_62, %c0_63] : memref<1x128xf32, #tpu.memory_space<vmem>>, vector<1x128xf32>
    %128 = vector.broadcast %127 : vector<1x128xf32> to vector<8x128xf32>
    %129 = arith.addf %126, %128 : vector<8x128xf32>
    %c0_64 = arith.constant 0 : index
    %c0_65 = arith.constant 0 : index
    %130 = vector.load %arg8[%c0_64, %c0_65] : memref<8x128xf32, #tpu.memory_space<vmem>>, vector<8x128xf32>
    tpu.vector_store %arg8[%c0_64, %c0_65], %129 {strides = array<i32>} : memref<8x128xf32, #tpu.memory_space<vmem>>, vector<8x128xf32>,
    return
  }
  func.func @transform_0(%arg0: i32) -> (i32, i32, i32) {
    %c0_i32 = arith.constant 0 : i32
    %c0_i32_0 = arith.constant 0 : i32
    %c0_i32_1 = arith.constant 0 : i32
    return %arg0, %c0_i32, %c0_i32_0 : i32, i32, i32
  }
  func.func @transform_1(%arg0: i32) -> (i32, i32) {
    %c0_i32 = arith.constant 0 : i32
    %c0_i32_0 = arith.constant 0 : i32
    %c0_i32_1 = arith.constant 0 : i32
    return %c0_i32, %c0_i32_0 : i32, i32
  }
  func.func @transform_2(%arg0: i32) -> (i32, i32) {
    %c0_i32 = arith.constant 0 : i32
    %c0_i32_0 = arith.constant 0 : i32
    %c0_i32_1 = arith.constant 0 : i32
    return %c0_i32, %c0_i32_0 : i32, i32
  }
  func.func @transform_3(%arg0: i32) -> (i32, i32, i32) {
    %c0_i32 = arith.constant 0 : i32
    %c0_i32_0 = arith.constant 0 : i32
    %c0_i32_1 = arith.constant 0 : i32
    %c0_i32_2 = arith.constant 0 : i32
    return %c0_i32, %c0_i32_0, %c0_i32_1 : i32, i32, i32
  }
  func.func @transform_4(%arg0: i32) -> (i32, i32) {
    %c0_i32 = arith.constant 0 : i32
    %c0_i32_0 = arith.constant 0 : i32
    %c0_i32_1 = arith.constant 0 : i32
    return %c0_i32, %c0_i32_0 : i32, i32
  }
  func.func @transform_5(%arg0: i32) -> (i32, i32) {
    %c0_i32 = arith.constant 0 : i32
    %c0_i32_0 = arith.constant 0 : i32
    %c0_i32_1 = arith.constant 0 : i32
    return %c0_i32, %c0_i32_0 : i32, i32
  }
  func.func @transform_6(%arg0: i32) -> (i32, i32) {
    %c0_i32 = arith.constant 0 : i32
    %c0_i32_0 = arith.constant 0 : i32
    %c0_i32_1 = arith.constant 0 : i32
    return %c0_i32, %c0_i32_0 : i32, i32
  }
  func.func @transform_7(%arg0: i32) -> (i32, i32) {
    %c0_i32 = arith.constant 0 : i32
    %c0_i32_0 = arith.constant 0 : i32
    return %arg0, %c0_i32 : i32, i32
  }
}

</mosaic_0001>

<llo_original>
// kernel: net4_forward.1
$region0: #{net4_forward.1}
  #allocation0 [shape = 'u32[]', space=smem, size = 0x4, offset = 0x4, fixed_abs, tag = 'smem constant byte address 0x4 - core index']
  #allocation1 [shape = 'u32[72,128]{1,0:T(1,128)}', space=vmem, size = 0x9000, scoped, tag = 'internal scratch']
  %s0 = inlined_call_operand.vmem [shape: bf16[8,34,128], index: 0, kind: input, shape index: {}]
  %s1 = inlined_call_operand.vmem [shape: bf16[384,512], index: 1, kind: input, shape index: {}]
  %s2 = inlined_call_operand.vmem [shape: f32[1,512], index: 2, kind: input, shape index: {}]
  %s3 = inlined_call_operand.hbm [shape: bf16[16,64,256], index: 3, kind: input, shape index: {}]
  %s4 = inlined_call_operand.vmem [shape: f32[1,64], index: 4, kind: input, shape index: {}]
  %s5 = inlined_call_operand.vmem [shape: bf16[128,64], index: 5, kind: input, shape index: {}]
  %s6 = inlined_call_operand.vmem [shape: f32[1,128], index: 6, kind: input, shape index: {}]
  %s7 = inlined_call_operand.vmem [shape: f32[8,128], index: 7, kind: output, shape index: {}]
  %s8 = sld [smem:[#allocation0]]
  $region42: #{net4_forward.1} parent=0
    _
  %s10 = ssub.s32 1, %s8
  %s11 = scalar_select 0, %s10, %s8
  $region1: #{net4_forward.1} parent=0
    #allocation2 [shape = 'u8[524288]{0}', space=vmem, size = 0x80000, scoped, tag = 'input window, operand 3, single buffered']
    #allocation3 [shape = 's32[1]{0}', space=sflag, size = 0x4, scoped, tag = 'scoped memory for net4_forward.1']
    %12 = vsyncpa [#allocation3], 0
    // Predicated region
    $region2: #{net4_forward.1} parent=1 // pred_check
      _
    $region3: #{net4_forward.1} parent=1 // pred_check_branch
      %14 = sbr.rel (0) target = $region5
    $region4: #{net4_forward.1} parent=1 // pred_region
      _
    $region5: #{net4_forward.1} parent=1 // pred_fallthru
      _
    // Predicated region
    $region6: #{net4_forward.1} parent=1 // pred_check
      _
    $region7: #{net4_forward.1} parent=1 // pred_check_branch
      %16 = sbr.rel (0) target = $region9
    $region8: #{net4_forward.1} parent=1 // pred_region
      _
    $region9: #{net4_forward.1} parent=1 // pred_fallthru
      _
    // Predicated region
    $region10: #{net4_forward.1} parent=1 // pred_check
      _
    $region11: #{net4_forward.1} parent=1 // pred_check_branch
      %18 = sbr.rel (0) target = $region13
    $region12: #{net4_forward.1} parent=1 // pred_region
      _
    $region13: #{net4_forward.1} parent=1 // pred_fallthru
      _
    // Predicated region
    $region14: #{net4_forward.1} parent=1 // pred_check
      _
    $region15: #{net4_forward.1} parent=1 // pred_check_branch
      %20 = sbr.rel (0) target = $region17
    $region16: #{net4_forward.1} parent=1 // pred_region
      %22 = vsyncadd [#allocation3], 0
      %s23 = sshll.u32 %s3, 4
      %s24 = int_to_ptr.hbm [resolvable:$true] %s23
      %s25 = sshll.u32 [#allocation2], 4
      %s26 = int_to_ptr.vmem [resolvable:$true] %s25
      %31 = dma.hbm_to_vmem [thread:$0]  %s24, 16384, %s26, [#allocation3], 128, 128, 8
    $region17: #{net4_forward.1} parent=1 // pred_fallthru
      _
    // Predicated region
    $region18: #{net4_forward.1} parent=1 // pred_check
      _
    $region19: #{net4_forward.1} parent=1 // pred_check_branch
      %33 = sbr.rel (0) target = $region21
    $region20: #{net4_forward.1} parent=1 // pred_region
      _
    $region21: #{net4_forward.1} parent=1 // pred_fallthru
      _
    // Predicated region
    $region22: #{net4_forward.1} parent=1 // pred_check
      _
    $region23: #{net4_forward.1} parent=1 // pred_check_branch
      %35 = sbr.rel (0) target = $region25
    $region24: #{net4_forward.1} parent=1 // pred_region
      _
    $region25: #{net4_forward.1} parent=1 // pred_fallthru
      _
    // Predicated region
    $region26: #{net4_forward.1} parent=1 // pred_check
      _
    $region27: #{net4_forward.1} parent=1 // pred_check_branch
      %37 = sbr.rel (0) target = $region29
    $region28: #{net4_forward.1} parent=1 // pred_region
      _
    $region29: #{net4_forward.1} parent=1 // pred_fallthru
      _
    // Predicated region
    $region30: #{net4_forward.1} parent=1 // pred_check
      _
    $region31: #{net4_forward.1} parent=1 // pred_check_branch
      %39 = sbr.rel (0) target = $region33
    $region32: #{net4_forward.1} parent=1 // pred_region
      %41 = dma.done [#allocation3], 16384
    $region33: #{net4_forward.1} parent=1 // pred_fallthru
      _
    %v43 = vld [vmem:[%s0] sm:$0xf]
    %v44 = vld [vmem:[%s0 + $0x4] sm:$0xf]
    %v45 = vld [vmem:[%s0 + $0x8] sm:$0xf]
    %v46 = vld [vmem:[%s0 + $0xc] sm:$0xf]
    %v47 = vld [vmem:[%s0 + $0x10] sm:$0x1]
    %v48 = vld [vmem:[%s0 + $0x14] sm:$0xf]
    %v49 = vld [vmem:[%s0 + $0x18] sm:$0xf]
    %v50 = vld [vmem:[%s0 + $0x1c] sm:$0xf]
    %v51 = vld [vmem:[%s0 + $0x20] sm:$0xf]
    %v52 = vld [vmem:[%s0 + $0x24] sm:$0x1]
    %v53 = vld [vmem:[%s0 + $0x28] sm:$0xf]
    %v54 = vld [vmem:[%s0 + $0x2c] sm:$0xf]
    %v55 = vld [vmem:[%s0 + $0x30] sm:$0xf]
    %v56 = vld [vmem:[%s0 + $0x34] sm:$0xf]
    %v57 = vld [vmem:[%s0 + $0x38] sm:$0x1]
    %v58 = vld [vmem:[%s0 + $0x3c] sm:$0xf]
    %v59 = vld [vmem:[%s0 + $0x40] sm:$0xf]
    %v60 = vld [vmem:[%s0 + $0x44] sm:$0xf]
    %v61 = vld [vmem:[%s0 + $0x48] sm:$0xf]
    %v62 = vld [vmem:[%s0 + $0x4c] sm:$0x1]
    %v63 = vld [vmem:[%s0 + $0x50] sm:$0xf]
    %v64 = vld [vmem:[%s0 + $0x54] sm:$0xf]
    %v65 = vld [vmem:[%s0 + $0x58] sm:$0xf]
    %v66 = vld [vmem:[%s0 + $0x5c] sm:$0xf]
    %v67 = vld [vmem:[%s0 + $0x60] sm:$0x1]
    %v68 = vld [vmem:[%s0 + $0x64] sm:$0xf]
    %v69 = vld [vmem:[%s0 + $0x68] sm:$0xf]
    %v70 = vld [vmem:[%s0 + $0x6c] sm:$0xf]
    %v71 = vld [vmem:[%s0 + $0x70] sm:$0xf]
    %v72 = vld [vmem:[%s0 + $0x74] sm:$0x1]
    %v73 = vld [vmem:[%s0 + $0x78] sm:$0xf]
    %v74 = vld [vmem:[%s0 + $0x7c] sm:$0xf]
    %v75 = vld [vmem:[%s0 + $0x80] sm:$0xf]
    %v76 = vld [vmem:[%s0 + $0x84] sm:$0xf]
    %v77 = vld [vmem:[%s0 + $0x88] sm:$0x1]
    %v78 = vld [vmem:[%s0 + $0x8c] sm:$0xf]
    %v79 = vld [vmem:[%s0 + $0x90] sm:$0xf]
    %v80 = vld [vmem:[%s0 + $0x94] sm:$0xf]
    %v81 = vld [vmem:[%s0 + $0x98] sm:$0xf]
    %v82 = vld [vmem:[%s0 + $0x9c] sm:$0x1]
    %v115 = vunpack.c.l.b16 %v43
    %v116 = vunpack.c.l.b16 %v44
    %v117 = vunpack.c.l.b16 %v45
    %v118 = vunpack.c.l.b16 %v46
    %v119 = vunpack.c.l.b16 %v48
    %v120 = vunpack.c.l.b16 %v49
    %v121 = vunpack.c.l.b16 %v50
    %v122 = vunpack.c.l.b16 %v51
    %v123 = vunpack.c.l.b16 %v53
    %v124 = vunpack.c.l.b16 %v54
    %v125 = vunpack.c.l.b16 %v55
    %v126 = vunpack.c.l.b16 %v56
    %v127 = vunpack.c.l.b16 %v58
    %v128 = vunpack.c.l.b16 %v59
    %v129 = vunpack.c.l.b16 %v60
    %v130 = vunpack.c.l.b16 %v61
    %v131 = vunpack.c.l.b16 %v63
    %v132 = vunpack.c.l.b16 %v64
    %v133 = vunpack.c.l.b16 %v65
    %v134 = vunpack.c.l.b16 %v66
    %v135 = vunpack.c.l.b16 %v68
    %v136 = vunpack.c.l.b16 %v69
    %v137 = vunpack.c.l.b16 %v70
    %v138 = vunpack.c.l.b16 %v71
    %v139 = vunpack.c.l.b16 %v73
    %v140 = vunpack.c.l.b16 %v74
    %v141 = vunpack.c.l.b16 %v75
    %v142 = vunpack.c.l.b16 %v76
    %v143 = vunpack.c.l.b16 %v78
    %v144 = vunpack.c.l.b16 %v79
    %v145 = vunpack.c.l.b16 %v80
    %v146 = vunpack.c.l.b16 %v81
    %v147 = vpack.c.b16 %v116, %v115
    %v148 = vpack.c.b16 %v118, %v117
    %v149 = vpack.c.b16 %v120, %v119
    %v150 = vpack.c.b16 %v122, %v121
    %v151 = vpack.c.b16 %v124, %v123
    %v152 = vpack.c.b16 %v126, %v125
    %v153 = vpack.c.b16 %v128, %v127
    %v154 = vpack.c.b16 %v130, %v129
    %v155 = vpack.c.b16 %v132, %v131
    %v156 = vpack.c.b16 %v134, %v133
    %v157 = vpack.c.b16 %v136, %v135
    %v158 = vpack.c.b16 %v138, %v137
    %v159 = vpack.c.b16 %v140, %v139
    %v160 = vpack.c.b16 %v142, %v141
    %v161 = vpack.c.b16 %v144, %v143
    %v162 = vpack.c.b16 %v146, %v145
    %v187 = vunpack.c.l.b16 %v47
    %v188 = vunpack.c.l.b16 %v52
    %v189 = vunpack.c.l.b16 %v57
    %v190 = vunpack.c.l.b16 %v62
    %v191 = vunpack.c.l.b16 %v67
    %v192 = vunpack.c.l.b16 %v72
    %v193 = vunpack.c.l.b16 %v77
    %v194 = vunpack.c.l.b16 %v82
    %v195 = vpack.c.b16 %v187, %v187
    %v196 = vpack.c.b16 %v188, %v188
    %v197 = vpack.c.b16 %v189, %v189
    %v198 = vpack.c.b16 %v190, %v190
    %v199 = vpack.c.b16 %v191, %v191
    %v200 = vpack.c.b16 %v192, %v192
    %v201 = vpack.c.b16 %v193, %v193
    %v202 = vpack.c.b16 %v194, %v194
    %vm203 = vsmask.f32 7424
    %v205 = vshrl.u32 %v147, 16
    %v207 = vshll.u32 %v147, 16
    %v209 = vrot.slane %v207, 1
    %v210 = vor.u32 %v205, %v209
    %v212 = vshll.u32 %v148, 16
    %v214 = vrot.slane %v212, 1
    %v215 = vsel %vm203, %v210, %v214
    %v216 = vshrl.u32 %v148, 16
    %v218 = vor.u32 %v216, %v214
    %v220 = vshll.u32 %v195, 16
    %v222 = vrot.slane %v220, 1
    %v223 = vsel %vm203, %v218, %v222
    %v225 = vshrl.u32 %v149, 16
    %v227 = vshll.u32 %v149, 16
    %v229 = vrot.slane %v227, 1
    %v230 = vor.u32 %v225, %v229
    %v232 = vshll.u32 %v150, 16
    %v234 = vrot.slane %v232, 1
    %v235 = vsel %vm203, %v230, %v234
    %v236 = vshrl.u32 %v150, 16
    %v238 = vor.u32 %v236, %v234
    %v240 = vshll.u32 %v196, 16
    %v242 = vrot.slane %v240, 1
    %v243 = vsel %vm203, %v238, %v242
    %v245 = vshrl.u32 %v151, 16
    %v247 = vshll.u32 %v151, 16
    %v249 = vrot.slane %v247, 1
    %v250 = vor.u32 %v245, %v249
    %v252 = vshll.u32 %v152, 16
    %v254 = vrot.slane %v252, 1
    %v255 = vsel %vm203, %v250, %v254
    %v256 = vshrl.u32 %v152, 16
    %v258 = vor.u32 %v256, %v254
    %v260 = vshll.u32 %v197, 16
    %v262 = vrot.slane %v260, 1
    %v263 = vsel %vm203, %v258, %v262
    %v265 = vshrl.u32 %v153, 16
    %v267 = vshll.u32 %v153, 16
    %v269 = vrot.slane %v267, 1
    %v270 = vor.u32 %v265, %v269
    %v272 = vshll.u32 %v154, 16
    %v274 = vrot.slane %v272, 1
    %v275 = vsel %vm203, %v270, %v274
    %v276 = vshrl.u32 %v154, 16
    %v278 = vor.u32 %v276, %v274
    %v280 = vshll.u32 %v198, 16
    %v282 = vrot.slane %v280, 1
    %v283 = vsel %vm203, %v278, %v282
    %v285 = vshrl.u32 %v155, 16
    %v287 = vshll.u32 %v155, 16
    %v289 = vrot.slane %v287, 1
    %v290 = vor.u32 %v285, %v289
    %v292 = vshll.u32 %v156, 16
    %v294 = vrot.slane %v292, 1
    %v295 = vsel %vm203, %v290, %v294
    %v296 = vshrl.u32 %v156, 16
    %v298 = vor.u32 %v296, %v294
    %v300 = vshll.u32 %v199, 16
    %v302 = vrot.slane %v300, 1
    %v303 = vsel %vm203, %v298, %v302
    %v305 = vshrl.u32 %v157, 16
    %v307 = vshll.u32 %v157, 16
    %v309 = vrot.slane %v307, 1
    %v310 = vor.u32 %v305, %v309
    %v312 = vshll.u32 %v158, 16
    %v314 = vrot.slane %v312, 1
    %v315 = vsel %vm203, %v310, %v314
    %v316 = vshrl.u32 %v158, 16
    %v318 = vor.u32 %v316, %v314
    %v320 = vshll.u32 %v200, 16
    %v322 = vrot.slane %v320, 1
    %v323 = vsel %vm203, %v318, %v322
    %v325 = vshrl.u32 %v159, 16
    %v327 = vshll.u32 %v159, 16
    %v329 = vrot.slane %v327, 1
    %v330 = vor.u32 %v325, %v329
    %v332 = vshll.u32 %v160, 16
    %v334 = vrot.slane %v332, 1
    %v335 = vsel %vm203, %v330, %v334
    %v336 = vshrl.u32 %v160, 16
    %v338 = vor.u32 %v336, %v334
    %v340 = vshll.u32 %v201, 16
    %v342 = vrot.slane %v340, 1
    %v343 = vsel %vm203, %v338, %v342
    %v345 = vshrl.u32 %v161, 16
    %v347 = vshll.u32 %v161, 16
    %v349 = vrot.slane %v347, 1
    %v350 = vor.u32 %v345, %v349
    %v352 = vshll.u32 %v162, 16
    %v354 = vrot.slane %v352, 1
    %v355 = vsel %vm203, %v350, %v354
    %v356 = vshrl.u32 %v162, 16
    %v358 = vor.u32 %v356, %v354
    %v360 = vshll.u32 %v202, 16
    %v362 = vrot.slane %v360, 1
    %v363 = vsel %vm203, %v358, %v362
    %vm380 = vcmask 1046528
    %v381 = vrot.slane %v147, 1
    %v382 = vrot.slane %v148, 1
    %v383 = vsel %vm380, %v381, %v382
    %v384 = vrot.slane %v195, 1
    %v385 = vsel %vm380, %v382, %v384
    %v386 = vrot.slane %v149, 1
    %v387 = vrot.slane %v150, 1
    %v388 = vsel %vm380, %v386, %v387
    %v389 = vrot.slane %v196, 1
    %v390 = vsel %vm380, %v387, %v389
    %v391 = vrot.slane %v151, 1
    %v392 = vrot.slane %v152, 1
    %v393 = vsel %vm380, %v391, %v392
    %v394 = vrot.slane %v197, 1
    %v395 = vsel %vm380, %v392, %v394
    %v396 = vrot.slane %v153, 1
    %v397 = vrot.slane %v154, 1
    %v398 = vsel %vm380, %v396, %v397
    %v399 = vrot.slane %v198, 1
    %v400 = vsel %vm380, %v397, %v399
    %v401 = vrot.slane %v155, 1
    %v402 = vrot.slane %v156, 1
    %v403 = vsel %vm380, %v401, %v402
    %v404 = vrot.slane %v199, 1
    %v405 = vsel %vm380, %v402, %v404
    %v406 = vrot.slane %v157, 1
    %v407 = vrot.slane %v158, 1
    %v408 = vsel %vm380, %v406, %v407
    %v409 = vrot.slane %v200, 1
    %v410 = vsel %vm380, %v407, %v409
    %v411 = vrot.slane %v159, 1
    %v412 = vrot.slane %v160, 1
    %v413 = vsel %vm380, %v411, %v412
    %v414 = vrot.slane %v201, 1
    %v415 = vsel %vm380, %v412, %v414
    %v416 = vrot.slane %v161, 1
    %v417 = vrot.slane %v162, 1
    %v418 = vsel %vm380, %v416, %v417
    %v419 = vrot.slane %v202, 1
    %v420 = vsel %vm380, %v417, %v419
    %v437 = vld [vmem:[%s1] sm:$0xff]
    %v438 = vld [vmem:[%s1 + $0x8] sm:$0xff]
    %v439 = vld [vmem:[%s1 + $0x10] sm:$0xff]
    %v440 = vld [vmem:[%s1 + $0x18] sm:$0xff]
    %v441 = vld [vmem:[%s1 + $0x20] sm:$0xff]
    %v442 = vld [vmem:[%s1 + $0x28] sm:$0xff]
    %v443 = vld [vmem:[%s1 + $0x30] sm:$0xff]
    %v444 = vld [vmem:[%s1 + $0x38] sm:$0xff]
    %v445 = vld [vmem:[%s1 + $0x40] sm:$0xff]
    %v446 = vld [vmem:[%s1 + $0x48] sm:$0xff]
    %v447 = vld [vmem:[%s1 + $0x50] sm:$0xff]
    %v448 = vld [vmem:[%s1 + $0x58] sm:$0xff]
    %v449 = vld [vmem:[%s1 + $0x60] sm:$0xff]
    %v450 = vld [vmem:[%s1 + $0x68] sm:$0xff]
    %v451 = vld [vmem:[%s1 + $0x70] sm:$0xff]
    %v452 = vld [vmem:[%s1 + $0x78] sm:$0xff]
    %v453 = vld [vmem:[%s1 + $0x80] sm:$0xff]
    %v454 = vld [vmem:[%s1 + $0x88] sm:$0xff]
    %v455 = vld [vmem:[%s1 + $0x90] sm:$0xff]
    %v456 = vld [vmem:[%s1 + $0x98] sm:$0xff]
    %v457 = vld [vmem:[%s1 + $0xa0] sm:$0xff]
    %v458 = vld [vmem:[%s1 + $0xa8] sm:$0xff]
    %v459 = vld [vmem:[%s1 + $0xb0] sm:$0xff]
    %v460 = vld [vmem:[%s1 + $0xb8] sm:$0xff]
    %v461 = vld [vmem:[%s1 + $0xc0] sm:$0xff]
    %v462 = vld [vmem:[%s1 + $0xc8] sm:$0xff]
    %v463 = vld [vmem:[%s1 + $0xd0] sm:$0xff]
    %v464 = vld [vmem:[%s1 + $0xd8] sm:$0xff]
    %v465 = vld [vmem:[%s1 + $0xe0] sm:$0xff]
    %v466 = vld [vmem:[%s1 + $0xe8] sm:$0xff]
    %v467 = vld [vmem:[%s1 + $0xf0] sm:$0xff]
    %v468 = vld [vmem:[%s1 + $0xf8] sm:$0xff]
    %v469 = vld [vmem:[%s1 + $0x100] sm:$0xff]
    %v470 = vld [vmem:[%s1 + $0x108] sm:$0xff]
    %v471 = vld [vmem:[%s1 + $0x110] sm:$0xff]
    %v472 = vld [vmem:[%s1 + $0x118] sm:$0xff]
    %v473 = vld [vmem:[%s1 + $0x120] sm:$0xff]
    %v474 = vld [vmem:[%s1 + $0x128] sm:$0xff]
    %v475 = vld [vmem:[%s1 + $0x130] sm:$0xff]
    %v476 = vld [vmem:[%s1 + $0x138] sm:$0xff]
    %v477 = vld [vmem:[%s1 + $0x140] sm:$0xff]
    %v478 = vld [vmem:[%s1 + $0x148] sm:$0xff]
    %v479 = vld [vmem:[%s1 + $0x150] sm:$0xff]
    %v480 = vld [vmem:[%s1 + $0x158] sm:$0xff]
    %v481 = vld [vmem:[%s1 + $0x160] sm:$0xff]
    %v482 = vld [vmem:[%s1 + $0x168] sm:$0xff]
    %v483 = vld [vmem:[%s1 + $0x170] sm:$0xff]
    %v484 = vld [vmem:[%s1 + $0x178] sm:$0xff]
    %v485 = vld [vmem:[%s1 + $0x180] sm:$0xff]
    %v486 = vld [vmem:[%s1 + $0x188] sm:$0xff]
    %v487 = vld [vmem:[%s1 + $0x190] sm:$0xff]
    %v488 = vld [vmem:[%s1 + $0x198] sm:$0xff]
    %v489 = vld [vmem:[%s1 + $0x1a0] sm:$0xff]
    %v490 = vld [vmem:[%s1 + $0x1a8] sm:$0xff]
    %v491 = vld [vmem:[%s1 + $0x1b0] sm:$0xff]
    %v492 = vld [vmem:[%s1 + $0x1b8] sm:$0xff]
    %v493 = vld [vmem:[%s1 + $0x1c0] sm:$0xff]
    %v494 = vld [vmem:[%s1 + $0x1c8] sm:$0xff]
    %v495 = vld [vmem:[%s1 + $0x1d0] sm:$0xff]
    %v496 = vld [vmem:[%s1 + $0x1d8] sm:$0xff]
    %v497 = vld [vmem:[%s1 + $0x1e0] sm:$0xff]
    %v498 = vld [vmem:[%s1 + $0x1e8] sm:$0xff]
    %v499 = vld [vmem:[%s1 + $0x1f0] sm:$0xff]
    %v500 = vld [vmem:[%s1 + $0x1f8] sm:$0xff]
    %v501 = vld [vmem:[%s1 + $0x200] sm:$0xff]
    %v502 = vld [vmem:[%s1 + $0x208] sm:$0xff]
    %v503 = vld [vmem:[%s1 + $0x210] sm:$0xff]
    %v504 = vld [vmem:[%s1 + $0x218] sm:$0xff]
    %v505 = vld [vmem:[%s1 + $0x220] sm:$0xff]
    %v506 = vld [vmem:[%s1 + $0x228] sm:$0xff]
    %v507 = vld [vmem:[%s1 + $0x230] sm:$0xff]
    %v508 = vld [vmem:[%s1 + $0x238] sm:$0xff]
    %v509 = vld [vmem:[%s1 + $0x240] sm:$0xff]
    %v510 = vld [vmem:[%s1 + $0x248] sm:$0xff]
    %v511 = vld [vmem:[%s1 + $0x250] sm:$0xff]
    %v512 = vld [vmem:[%s1 + $0x258] sm:$0xff]
    %v513 = vld [vmem:[%s1 + $0x260] sm:$0xff]
    %v514 = vld [vmem:[%s1 + $0x268] sm:$0xff]
    %v515 = vld [vmem:[%s1 + $0x270] sm:$0xff]
    %v516 = vld [vmem:[%s1 + $0x278] sm:$0xff]
    %v517 = vld [vmem:[%s1 + $0x280] sm:$0xff]
    %v518 = vld [vmem:[%s1 + $0x288] sm:$0xff]
    %v519 = vld [vmem:[%s1 + $0x290] sm:$0xff]
    %v520 = vld [vmem:[%s1 + $0x298] sm:$0xff]
    %v521 = vld [vmem:[%s1 + $0x2a0] sm:$0xff]
    %v522 = vld [vmem:[%s1 + $0x2a8] sm:$0xff]
    %v523 = vld [vmem:[%s1 + $0x2b0] sm:$0xff]
    %v524 = vld [vmem:[%s1 + $0x2b8] sm:$0xff]
    %v525 = vld [vmem:[%s1 + $0x2c0] sm:$0xff]
    %v526 = vld [vmem:[%s1 + $0x2c8] sm:$0xff]
    %v527 = vld [vmem:[%s1 + $0x2d0] sm:$0xff]
    %v528 = vld [vmem:[%s1 + $0x2d8] sm:$0xff]
    %v529 = vld [vmem:[%s1 + $0x2e0] sm:$0xff]
    %v530 = vld [vmem:[%s1 + $0x2e8] sm:$0xff]
    %v531 = vld [vmem:[%s1 + $0x2f0] sm:$0xff]
    %v532 = vld [vmem:[%s1 + $0x2f8] sm:$0xff]
    %v533 = vld [vmem:[%s2] sm:$0xf]
    %v535 = vperm.slane %v533, 0
    %v536 = vperm.slane %v533, 1
    %v537 = vperm.slane %v533, 2
    %v538 = vperm.slane %v533, 3
    %v639 = vunpack.c.l.b16 %v437
    %v640 = vunpack.c.h.b16 %v437
    %v641 = vunpack.c.l.b16 %v438
    %v642 = vunpack.c.h.b16 %v438
    %v643 = vunpack.c.l.b16 %v439
    %v644 = vunpack.c.h.b16 %v439
    %v645 = vunpack.c.l.b16 %v440
    %v646 = vunpack.c.h.b16 %v440
    %v647 = vunpack.c.l.b16 %v441
    %v648 = vunpack.c.h.b16 %v441
    %v649 = vunpack.c.l.b16 %v442
    %v650 = vunpack.c.h.b16 %v442
    %v651 = vunpack.c.l.b16 %v443
    %v652 = vunpack.c.h.b16 %v443
    %v653 = vunpack.c.l.b16 %v444
    %v654 = vunpack.c.h.b16 %v444
    %v655 = vunpack.c.l.b16 %v445
    %v656 = vunpack.c.h.b16 %v445
    %v657 = vunpack.c.l.b16 %v446
    %v658 = vunpack.c.h.b16 %v446
    %v659 = vunpack.c.l.b16 %v447
    %v660 = vunpack.c.h.b16 %v447
    %v661 = vunpack.c.l.b16 %v448
    %v662 = vunpack.c.h.b16 %v448
    %v663 = vunpack.c.l.b16 %v449
    %v664 = vunpack.c.h.b16 %v449
    %v665 = vunpack.c.l.b16 %v450
    %v666 = vunpack.c.h.b16 %v450
    %v667 = vunpack.c.l.b16 %v451
    %v668 = vunpack.c.h.b16 %v451
    %v669 = vunpack.c.l.b16 %v452
    %v670 = vunpack.c.h.b16 %v452
    %v671 = vunpack.c.l.b16 %v453
    %v672 = vunpack.c.h.b16 %v453
    %v673 = vunpack.c.l.b16 %v454
    %v674 = vunpack.c.h.b16 %v454
    %v675 = vunpack.c.l.b16 %v455
    %v676 = vunpack.c.h.b16 %v455
    %v677 = vunpack.c.l.b16 %v456
    %v678 = vunpack.c.h.b16 %v456
    %v679 = vunpack.c.l.b16 %v457
    %v680 = vunpack.c.h.b16 %v457
    %v681 = vunpack.c.l.b16 %v458
    %v682 = vunpack.c.h.b16 %v458
    %v683 = vunpack.c.l.b16 %v459
    %v684 = vunpack.c.h.b16 %v459
    %v685 = vunpack.c.l.b16 %v460
    %v686 = vunpack.c.h.b16 %v460
    %v687 = vunpack.c.l.b16 %v461
    %v688 = vunpack.c.h.b16 %v461
    %v689 = vunpack.c.l.b16 %v462
    %v690 = vunpack.c.h.b16 %v462
    %v691 = vunpack.c.l.b16 %v463
    %v692 = vunpack.c.h.b16 %v463
    %v693 = vunpack.c.l.b16 %v464
    %v694 = vunpack.c.h.b16 %v464
    %v695 = vunpack.c.l.b16 %v465
    %v696 = vunpack.c.h.b16 %v465
    %v697 = vunpack.c.l.b16 %v466
    %v698 = vunpack.c.h.b16 %v466
    %v699 = vunpack.c.l.b16 %v467
    %v700 = vunpack.c.h.b16 %v467
    %v701 = vunpack.c.l.b16 %v468
    %v702 = vunpack.c.h.b16 %v468
    %v703 = vunpack.c.l.b16 %v469
    %v704 = vunpack.c.h.b16 %v469
    %v705 = vunpack.c.l.b16 %v470
    %v706 = vunpack.c.h.b16 %v470
    %v707 = vunpack.c.l.b16 %v471
    %v708 = vunpack.c.h.b16 %v471
    %v709 = vunpack.c.l.b16 %v472
    %v710 = vunpack.c.h.b16 %v472
    %v711 = vunpack.c.l.b16 %v473
    %v712 = vunpack.c.h.b16 %v473
    %v713 = vunpack.c.l.b16 %v474
    %v714 = vunpack.c.h.b16 %v474
    %v715 = vunpack.c.l.b16 %v475
    %v716 = vunpack.c.h.b16 %v475
    %v717 = vunpack.c.l.b16 %v476
    %v718 = vunpack.c.h.b16 %v476
    %v719 = vunpack.c.l.b16 %v477
    %v720 = vunpack.c.h.b16 %v477
    %v721 = vunpack.c.l.b16 %v478
    %v722 = vunpack.c.h.b16 %v478
    %v723 = vunpack.c.l.b16 %v479
    %v724 = vunpack.c.h.b16 %v479
    %v725 = vunpack.c.l.b16 %v480
    %v726 = vunpack.c.h.b16 %v480
    %v727 = vunpack.c.l.b16 %v481
    %v728 = vunpack.c.h.b16 %v481
    %v729 = vunpack.c.l.b16 %v482
    %v730 = vunpack.c.h.b16 %v482
    %v731 = vunpack.c.l.b16 %v483
    %v732 = vunpack.c.h.b16 %v483
    %v733 = vunpack.c.l.b16 %v484
    %v734 = vunpack.c.h.b16 %v484
    %v735 = vunpack.c.l.b16 %v485
    %v736 = vunpack.c.h.b16 %v485
    %v737 = vunpack.c.l.b16 %v486
    %v738 = vunpack.c.h.b16 %v486
    %v739 = vunpack.c.l.b16 %v487
    %v740 = vunpack.c.h.b16 %v487
    %v741 = vunpack.c.l.b16 %v488
    %v742 = vunpack.c.h.b16 %v488
    %v743 = vunpack.c.l.b16 %v489
    %v744 = vunpack.c.h.b16 %v489
    %v745 = vunpack.c.l.b16 %v490
    %v746 = vunpack.c.h.b16 %v490
    %v747 = vunpack.c.l.b16 %v491
    %v748 = vunpack.c.h.b16 %v491
    %v749 = vunpack.c.l.b16 %v492
    %v750 = vunpack.c.h.b16 %v492
    %v751 = vunpack.c.l.b16 %v493
    %v752 = vunpack.c.h.b16 %v493
    %v753 = vunpack.c.l.b16 %v494
    %v754 = vunpack.c.h.b16 %v494
    %v755 = vunpack.c.l.b16 %v495
    %v756 = vunpack.c.h.b16 %v495
    %v757 = vunpack.c.l.b16 %v496
    %v758 = vunpack.c.h.b16 %v496
    %v759 = vunpack.c.l.b16 %v497
    %v760 = vunpack.c.h.b16 %v497
    %v761 = vunpack.c.l.b16 %v498
    %v762 = vunpack.c.h.b16 %v498
    %v763 = vunpack.c.l.b16 %v499
    %v764 = vunpack.c.h.b16 %v499
    %v765 = vunpack.c.l.b16 %v500
    %v766 = vunpack.c.h.b16 %v500
    %v767 = vunpack.c.l.b16 %v501
    %v768 = vunpack.c.h.b16 %v501
    %v769 = vunpack.c.l.b16 %v502
    %v770 = vunpack.c.h.b16 %v502
    %v771 = vunpack.c.l.b16 %v503
    %v772 = vunpack.c.h.b16 %v503
    %v773 = vunpack.c.l.b16 %v504
    %v774 = vunpack.c.h.b16 %v504
    %v775 = vunpack.c.l.b16 %v505
    %v776 = vunpack.c.h.b16 %v505
    %v777 = vunpack.c.l.b16 %v506
    %v778 = vunpack.c.h.b16 %v506
    %v779 = vunpack.c.l.b16 %v507
    %v780 = vunpack.c.h.b16 %v507
    %v781 = vunpack.c.l.b16 %v508
    %v782 = vunpack.c.h.b16 %v508
    %v783 = vunpack.c.l.b16 %v509
    %v784 = vunpack.c.h.b16 %v509
    %v785 = vunpack.c.l.b16 %v510
    %v786 = vunpack.c.h.b16 %v510
    %v787 = vunpack.c.l.b16 %v511
    %v788 = vunpack.c.h.b16 %v511
    %v789 = vunpack.c.l.b16 %v512
    %v790 = vunpack.c.h.b16 %v512
    %v791 = vunpack.c.l.b16 %v513
    %v792 = vunpack.c.h.b16 %v513
    %v793 = vunpack.c.l.b16 %v514
    %v794 = vunpack.c.h.b16 %v514
    %v795 = vunpack.c.l.b16 %v515
    %v796 = vunpack.c.h.b16 %v515
    %v797 = vunpack.c.l.b16 %v516
    %v798 = vunpack.c.h.b16 %v516
    %v799 = vunpack.c.l.b16 %v517
    %v800 = vunpack.c.h.b16 %v517
    %v801 = vunpack.c.l.b16 %v518
    %v802 = vunpack.c.h.b16 %v518
    %v803 = vunpack.c.l.b16 %v519
    %v804 = vunpack.c.h.b16 %v519
    %v805 = vunpack.c.l.b16 %v520
    %v806 = vunpack.c.h.b16 %v520
    %v807 = vunpack.c.l.b16 %v521
    %v808 = vunpack.c.h.b16 %v521
    %v809 = vunpack.c.l.b16 %v522
    %v810 = vunpack.c.h.b16 %v522
    %v811 = vunpack.c.l.b16 %v523
    %v812 = vunpack.c.h.b16 %v523
    %v813 = vunpack.c.l.b16 %v524
    %v814 = vunpack.c.h.b16 %v524
    %v815 = vunpack.c.l.b16 %v525
    %v816 = vunpack.c.h.b16 %v525
    %v817 = vunpack.c.l.b16 %v526
    %v818 = vunpack.c.h.b16 %v526
    %v819 = vunpack.c.l.b16 %v527
    %v820 = vunpack.c.h.b16 %v527
    %v821 = vunpack.c.l.b16 %v528
    %v822 = vunpack.c.h.b16 %v528
    %v823 = vunpack.c.l.b16 %v529
    %v824 = vunpack.c.h.b16 %v529
    %v825 = vunpack.c.l.b16 %v530
    %v826 = vunpack.c.h.b16 %v530
    %v827 = vunpack.c.l.b16 %v531
    %v828 = vunpack.c.h.b16 %v531
    %v829 = vunpack.c.l.b16 %v532
    %v830 = vunpack.c.h.b16 %v532
    %v831 = vpack.c.b16 %v643, %v639
    %v832 = vpack.c.b16 %v644, %v640
    %v833 = vpack.c.b16 %v645, %v641
    %v834 = vpack.c.b16 %v646, %v642
    %v835 = vpack.c.b16 %v651, %v647
    %v836 = vpack.c.b16 %v652, %v648
    %v837 = vpack.c.b16 %v653, %v649
    %v838 = vpack.c.b16 %v654, %v650
    %v839 = vpack.c.b16 %v659, %v655
    %v840 = vpack.c.b16 %v660, %v656
    %v841 = vpack.c.b16 %v661, %v657
    %v842 = vpack.c.b16 %v662, %v658
    %v843 = vpack.c.b16 %v667, %v663
    %v844 = vpack.c.b16 %v668, %v664
    %v845 = vpack.c.b16 %v669, %v665
    %v846 = vpack.c.b16 %v670, %v666
    %v847 = vpack.c.b16 %v675, %v671
    %v848 = vpack.c.b16 %v676, %v672
    %v849 = vpack.c.b16 %v677, %v673
    %v850 = vpack.c.b16 %v678, %v674
    %v851 = vpack.c.b16 %v683, %v679
    %v852 = vpack.c.b16 %v684, %v680
    %v853 = vpack.c.b16 %v685, %v681
    %v854 = vpack.c.b16 %v686, %v682
    %v855 = vpack.c.b16 %v691, %v687
    %v856 = vpack.c.b16 %v692, %v688
    %v857 = vpack.c.b16 %v693, %v689
    %v858 = vpack.c.b16 %v694, %v690
    %v859 = vpack.c.b16 %v699, %v695
    %v860 = vpack.c.b16 %v700, %v696
    %v861 = vpack.c.b16 %v701, %v697
    %v862 = vpack.c.b16 %v702, %v698
    %v863 = vpack.c.b16 %v707, %v703
    %v864 = vpack.c.b16 %v708, %v704
    %v865 = vpack.c.b16 %v709, %v705
    %v866 = vpack.c.b16 %v710, %v706
    %v867 = vpack.c.b16 %v715, %v711
    %v868 = vpack.c.b16 %v716, %v712
    %v869 = vpack.c.b16 %v717, %v713
    %v870 = vpack.c.b16 %v718, %v714
    %v871 = vpack.c.b16 %v723, %v719
    %v872 = vpack.c.b16 %v724, %v720
    %v873 = vpack.c.b16 %v725, %v721
    %v874 = vpack.c.b16 %v726, %v722
    %v875 = vpack.c.b16 %v731, %v727
    %v876 = vpack.c.b16 %v732, %v728
    %v877 = vpack.c.b16 %v733, %v729
    %v878 = vpack.c.b16 %v734, %v730
    %v879 = vpack.c.b16 %v739, %v735
    %v880 = vpack.c.b16 %v740, %v736
    %v881 = vpack.c.b16 %v741, %v737
    %v882 = vpack.c.b16 %v742, %v738
    %v883 = vpack.c.b16 %v747, %v743
    %v884 = vpack.c.b16 %v748, %v744
    %v885 = vpack.c.b16 %v749, %v745
    %v886 = vpack.c.b16 %v750, %v746
    %v887 = vpack.c.b16 %v755, %v751
    %v888 = vpack.c.b16 %v756, %v752
    %v889 = vpack.c.b16 %v757, %v753
    %v890 = vpack.c.b16 %v758, %v754
    %v891 = vpack.c.b16 %v763, %v759
    %v892 = vpack.c.b16 %v764, %v760
    %v893 = vpack.c.b16 %v765, %v761
    %v894 = vpack.c.b16 %v766, %v762
    %v895 = vpack.c.b16 %v771, %v767
    %v896 = vpack.c.b16 %v772, %v768
    %v897 = vpack.c.b16 %v773, %v769
    %v898 = vpack.c.b16 %v774, %v770
    %v899 = vpack.c.b16 %v779, %v775
    %v900 = vpack.c.b16 %v780, %v776
    %v901 = vpack.c.b16 %v781, %v777
    %v902 = vpack.c.b16 %v782, %v778
    %v903 = vpack.c.b16 %v787, %v783
    %v904 = vpack.c.b16 %v788, %v784
    %v905 = vpack.c.b16 %v789, %v785
    %v906 = vpack.c.b16 %v790, %v786
    %v907 = vpack.c.b16 %v795, %v791
    %v908 = vpack.c.b16 %v796, %v792
    %v909 = vpack.c.b16 %v797, %v793
    %v910 = vpack.c.b16 %v798, %v794
    %v911 = vpack.c.b16 %v803, %v799
    %v912 = vpack.c.b16 %v804, %v800
    %v913 = vpack.c.b16 %v805, %v801
    %v914 = vpack.c.b16 %v806, %v802
    %v915 = vpack.c.b16 %v811, %v807
    %v916 = vpack.c.b16 %v812, %v808
    %v917 = vpack.c.b16 %v813, %v809
    %v918 = vpack.c.b16 %v814, %v810
    %v919 = vpack.c.b16 %v819, %v815
    %v920 = vpack.c.b16 %v820, %v816
    %v921 = vpack.c.b16 %v821, %v817
    %v922 = vpack.c.b16 %v822, %v818
    %v923 = vpack.c.b16 %v827, %v823
    %v924 = vpack.c.b16 %v828, %v824
    %v925 = vpack.c.b16 %v829, %v825
    %v926 = vpack.c.b16 %v830, %v826
    %1023 = vmatpush.bf16.msra.mxu0 %v859
    %1024 = vmatpush.bf16.msra.mxu0 %v855
    %1025 = vmatpush.bf16.msra.mxu0 %v851
    %1026 = vmatpush.bf16.msra.mxu0 %v847
    %1027 = vmatpush.bf16.msra.mxu0 %v843
    %1028 = vmatpush.bf16.msra.mxu0 %v839
    %1029 = vmatpush.bf16.msra.mxu0 %v835
    %1030 = vmatpush.bf16.msra.mxu0 %v831
    %1031 = vmatmul.bf16.gmra.mxu0 %v147
    %v1032 = vpop.f32.mrf.mxu0
    %v1033 = vadd.f32 %v535, %v1032
    %v1034 = vpop.f32.mrf.mxu0
    %v1035 = vadd.f32 %v535, %v1034
    %1036 = vmatmul.bf16.gmra.mxu0 %v148
    %v1037 = vpop.f32.mrf.mxu0
    %v1038 = vadd.f32 %v535, %v1037
    %v1039 = vpop.f32.mrf.mxu0
    %v1040 = vadd.f32 %v535, %v1039
    %1041 = vmatmul.bf16.gmra.mxu0 %v149
    %v1042 = vpop.f32.mrf.mxu0
    %v1043 = vadd.f32 %v535, %v1042
    %v1044 = vpop.f32.mrf.mxu0
    %v1045 = vadd.f32 %v535, %v1044
    %1046 = vmatmul.bf16.gmra.mxu0 %v150
    %v1047 = vpop.f32.mrf.mxu0
    %v1048 = vadd.f32 %v535, %v1047
    %v1049 = vpop.f32.mrf.mxu0
    %v1050 = vadd.f32 %v535, %v1049
    %1051 = vmatmul.bf16.gmra.mxu0 %v151
    %v1052 = vpop.f32.mrf.mxu0
    %v1053 = vadd.f32 %v535, %v1052
    %v1054 = vpop.f32.mrf.mxu0
    %v1055 = vadd.f32 %v535, %v1054
    %1056 = vmatmul.bf16.gmra.mxu0 %v152
    %v1057 = vpop.f32.mrf.mxu0
    %v1058 = vadd.f32 %v535, %v1057
    %v1059 = vpop.f32.mrf.mxu0
    %v1060 = vadd.f32 %v535, %v1059
    %1061 = vmatmul.bf16.gmra.mxu0 %v153
    %v1062 = vpop.f32.mrf.mxu0
    %v1063 = vadd.f32 %v535, %v1062
    %v1064 = vpop.f32.mrf.mxu0
    %v1065 = vadd.f32 %v535, %v1064
    %1066 = vmatmul.bf16.gmra.mxu0 %v154
    %v1067 = vpop.f32.mrf.mxu0
    %v1068 = vadd.f32 %v535, %v1067
    %v1069 = vpop.f32.mrf.mxu0
    %v1070 = vadd.f32 %v535, %v1069
    %1071 = vmatmul.bf16.gmra.mxu0 %v155
    %v1072 = vpop.f32.mrf.mxu0
    %v1073 = vadd.f32 %v535, %v1072
    %v1074 = vpop.f32.mrf.mxu0
    %v1075 = vadd.f32 %v535, %v1074
    %1076 = vmatmul.bf16.gmra.mxu0 %v156
    %v1077 = vpop.f32.mrf.mxu0
    %v1078 = vadd.f32 %v535, %v1077
    %v1079 = vpop.f32.mrf.mxu0
    %v1080 = vadd.f32 %v535, %v1079
    %1081 = vmatmul.bf16.gmra.mxu0 %v157
    %v1082 = vpop.f32.mrf.mxu0
    %v1083 = vadd.f32 %v535, %v1082
    %v1084 = vpop.f32.mrf.mxu0
    %v1085 = vadd.f32 %v535, %v1084
    %1086 = vmatmul.bf16.gmra.mxu0 %v158
    %v1087 = vpop.f32.mrf.mxu0
    %v1088 = vadd.f32 %v535, %v1087
    %v1089 = vpop.f32.mrf.mxu0
    %v1090 = vadd.f32 %v535, %v1089
    %1091 = vmatmul.bf16.gmra.mxu0 %v159
    %v1092 = vpop.f32.mrf.mxu0
    %v1093 = vadd.f32 %v535, %v1092
    %v1094 = vpop.f32.mrf.mxu0
    %v1095 = vadd.f32 %v535, %v1094
    %1096 = vmatmul.bf16.gmra.mxu0 %v160
    %v1097 = vpop.f32.mrf.mxu0
    %v1098 = vadd.f32 %v535, %v1097
    %v1099 = vpop.f32.mrf.mxu0
    %v1100 = vadd.f32 %v535, %v1099
    %1101 = vmatmul.bf16.gmra.mxu0 %v161
    %v1102 = vpop.f32.mrf.mxu0
    %v1103 = vadd.f32 %v535, %v1102
    %v1104 = vpop.f32.mrf.mxu0
    %v1105 = vadd.f32 %v535, %v1104
    %1106 = vmatmul.bf16.gmra.mxu0 %v162
    %v1107 = vpop.f32.mrf.mxu0
    %v1108 = vadd.f32 %v535, %v1107
    %v1109 = vpop.f32.mrf.mxu0
    %v1110 = vadd.f32 %v535, %v1109
    %1111 = vdwg.mxu0
    %1112 = vmatpush.bf16.msra.mxu0 %v891
    %1113 = vmatpush.bf16.msra.mxu0 %v887
    %1114 = vmatpush.bf16.msra.mxu0 %v883
    %1115 = vmatpush.bf16.msra.mxu0 %v879
    %1116 = vmatpush.bf16.msra.mxu0 %v875
    %1117 = vmatpush.bf16.msra.mxu0 %v871
    %1118 = vmatpush.bf16.msra.mxu0 %v867
    %1119 = vmatpush.bf16.msra.mxu0 %v863
    %1120 = vmatmul.bf16.gmra.mxu0 %v215
    %v1121 = vpop.f32.mrf.mxu0
    %v1122 = vadd.f32 %v1033, %v1121
    %v1123 = vpop.f32.mrf.mxu0
    %v1124 = vadd.f32 %v1035, %v1123
    %1125 = vmatmul.bf16.gmra.mxu0 %v223
    %v1126 = vpop.f32.mrf.mxu0
    %v1127 = vadd.f32 %v1038, %v1126
    %v1128 = vpop.f32.mrf.mxu0
    %v1129 = vadd.f32 %v1040, %v1128
    %1130 = vmatmul.bf16.gmra.mxu0 %v235
    %v1131 = vpop.f32.mrf.mxu0
    %v1132 = vadd.f32 %v1043, %v1131
    %v1133 = vpop.f32.mrf.mxu0
    %v1134 = vadd.f32 %v1045, %v1133
    %1135 = vmatmul.bf16.gmra.mxu0 %v243
    %v1136 = vpop.f32.mrf.mxu0
    %v1137 = vadd.f32 %v1048, %v1136
    %v1138 = vpop.f32.mrf.mxu0
    %v1139 = vadd.f32 %v1050, %v1138
    %1140 = vmatmul.bf16.gmra.mxu0 %v255
    %v1141 = vpop.f32.mrf.mxu0
    %v1142 = vadd.f32 %v1053, %v1141
    %v1143 = vpop.f32.mrf.mxu0
    %v1144 = vadd.f32 %v1055, %v1143
    %1145 = vmatmul.bf16.gmra.mxu0 %v263
    %v1146 = vpop.f32.mrf.mxu0
    %v1147 = vadd.f32 %v1058, %v1146
    %v1148 = vpop.f32.mrf.mxu0
    %v1149 = vadd.f32 %v1060, %v1148
    %1150 = vmatmul.bf16.gmra.mxu0 %v275
    %v1151 = vpop.f32.mrf.mxu0
    %v1152 = vadd.f32 %v1063, %v1151
    %v1153 = vpop.f32.mrf.mxu0
    %v1154 = vadd.f32 %v1065, %v1153
    %1155 = vmatmul.bf16.gmra.mxu0 %v283
    %v1156 = vpop.f32.mrf.mxu0
    %v1157 = vadd.f32 %v1068, %v1156
    %v1158 = vpop.f32.mrf.mxu0
    %v1159 = vadd.f32 %v1070, %v1158
    %1160 = vmatmul.bf16.gmra.mxu0 %v295
    %v1161 = vpop.f32.mrf.mxu0
    %v1162 = vadd.f32 %v1073, %v1161
    %v1163 = vpop.f32.mrf.mxu0
    %v1164 = vadd.f32 %v1075, %v1163
    %1165 = vmatmul.bf16.gmra.mxu0 %v303
    %v1166 = vpop.f32.mrf.mxu0
    %v1167 = vadd.f32 %v1078, %v1166
    %v1168 = vpop.f32.mrf.mxu0
    %v1169 = vadd.f32 %v1080, %v1168
    %1170 = vmatmul.bf16.gmra.mxu0 %v315
    %v1171 = vpop.f32.mrf.mxu0
    %v1172 = vadd.f32 %v1083, %v1171
    %v1173 = vpop.f32.mrf.mxu0
    %v1174 = vadd.f32 %v1085, %v1173
    %1175 = vmatmul.bf16.gmra.mxu0 %v323
    %v1176 = vpop.f32.mrf.mxu0
    %v1177 = vadd.f32 %v1088, %v1176
    %v1178 = vpop.f32.mrf.mxu0
    %v1179 = vadd.f32 %v1090, %v1178
    %1180 = vmatmul.bf16.gmra.mxu0 %v335
    %v1181 = vpop.f32.mrf.mxu0
    %v1182 = vadd.f32 %v1093, %v1181
    %v1183 = vpop.f32.mrf.mxu0
    %v1184 = vadd.f32 %v1095, %v1183
    %1185 = vmatmul.bf16.gmra.mxu0 %v343
    %v1186 = vpop.f32.mrf.mxu0
    %v1187 = vadd.f32 %v1098, %v1186
    %v1188 = vpop.f32.mrf.mxu0
    %v1189 = vadd.f32 %v1100, %v1188
    %1190 = vmatmul.bf16.gmra.mxu0 %v355
    %v1191 = vpop.f32.mrf.mxu0
    %v1192 = vadd.f32 %v1103, %v1191
    %v1193 = vpop.f32.mrf.mxu0
    %v1194 = vadd.f32 %v1105, %v1193
    %1195 = vmatmul.bf16.gmra.mxu0 %v363
    %v1196 = vpop.f32.mrf.mxu0
    %v1197 = vadd.f32 %v1108, %v1196
    %v1198 = vpop.f32.mrf.mxu0
    %v1199 = vadd.f32 %v1110, %v1198
    %1200 = vdwg.mxu0
    %1201 = vmatpush.bf16.msra.mxu0 %v923
    %1202 = vmatpush.bf16.msra.mxu0 %v919
    %1203 = vmatpush.bf16.msra.mxu0 %v915
    %1204 = vmatpush.bf16.msra.mxu0 %v911
    %1205 = vmatpush.bf16.msra.mxu0 %v907
    %1206 = vmatpush.bf16.msra.mxu0 %v903
    %1207 = vmatpush.bf16.msra.mxu0 %v899
    %1208 = vmatpush.bf16.msra.mxu0 %v895
    %1209 = vmatmul.bf16.gmra.mxu0 %v383
    %v1210 = vpop.f32.mrf.mxu0
    %v1211 = vadd.f32 %v1122, %v1210
    %v1212 = vpop.f32.mrf.mxu0
    %v1213 = vadd.f32 %v1124, %v1212
    %1214 = vmatmul.bf16.gmra.mxu0 %v385
    %v1215 = vpop.f32.mrf.mxu0
    %v1216 = vadd.f32 %v1127, %v1215
    %v1217 = vpop.f32.mrf.mxu0
    %v1218 = vadd.f32 %v1129, %v1217
    %1219 = vmatmul.bf16.gmra.mxu0 %v388
    %v1220 = vpop.f32.mrf.mxu0
    %v1221 = vadd.f32 %v1132, %v1220
    %v1222 = vpop.f32.mrf.mxu0
    %v1223 = vadd.f32 %v1134, %v1222
    %1224 = vmatmul.bf16.gmra.mxu0 %v390
    %v1225 = vpop.f32.mrf.mxu0
    %v1226 = vadd.f32 %v1137, %v1225
    %v1227 = vpop.f32.mrf.mxu0
    %v1228 = vadd.f32 %v1139, %v1227
    %1229 = vmatmul.bf16.gmra.mxu0 %v393
    %v1230 = vpop.f32.mrf.mxu0
    %v1231 = vadd.f32 %v1142, %v1230
    %v1232 = vpop.f32.mrf.mxu0
    %v1233 = vadd.f32 %v1144, %v1232
    %1234 = vmatmul.bf16.gmra.mxu0 %v395
    %v1235 = vpop.f32.mrf.mxu0
    %v1236 = vadd.f32 %v1147, %v1235
    %v1237 = vpop.f32.mrf.mxu0
    %v1238 = vadd.f32 %v1149, %v1237
    %1239 = vmatmul.bf16.gmra.mxu0 %v398
    %v1240 = vpop.f32.mrf.mxu0
    %v1241 = vadd.f32 %v1152, %v1240
    %v1242 = vpop.f32.mrf.mxu0
    %v1243 = vadd.f32 %v1154, %v1242
    %1244 = vmatmul.bf16.gmra.mxu0 %v400
    %v1245 = vpop.f32.mrf.mxu0
    %v1246 = vadd.f32 %v1157, %v1245
    %v1247 = vpop.f32.mrf.mxu0
    %v1248 = vadd.f32 %v1159, %v1247
    %1249 = vmatmul.bf16.gmra.mxu0 %v403
    %v1250 = vpop.f32.mrf.mxu0
    %v1251 = vadd.f32 %v1162, %v1250
    %v1252 = vpop.f32.mrf.mxu0
    %v1253 = vadd.f32 %v1164, %v1252
    %1254 = vmatmul.bf16.gmra.mxu0 %v405
    %v1255 = vpop.f32.mrf.mxu0
    %v1256 = vadd.f32 %v1167, %v1255
    %v1257 = vpop.f32.mrf.mxu0
    %v1258 = vadd.f32 %v1169, %v1257
    %1259 = vmatmul.bf16.gmra.mxu0 %v408
    %v1260 = vpop.f32.mrf.mxu0
    %v1261 = vadd.f32 %v1172, %v1260
    %v1262 = vpop.f32.mrf.mxu0
    %v1263 = vadd.f32 %v1174, %v1262
    %1264 = vmatmul.bf16.gmra.mxu0 %v410
    %v1265 = vpop.f32.mrf.mxu0
    %v1266 = vadd.f32 %v1177, %v1265
    %v1267 = vpop.f32.mrf.mxu0
    %v1268 = vadd.f32 %v1179, %v1267
    %1269 = vmatmul.bf16.gmra.mxu0 %v413
    %v1270 = vpop.f32.mrf.mxu0
    %v1271 = vadd.f32 %v1182, %v1270
    %v1272 = vpop.f32.mrf.mxu0
    %v1273 = vadd.f32 %v1184, %v1272
    %1274 = vmatmul.bf16.gmra.mxu0 %v415
    %v1275 = vpop.f32.mrf.mxu0
    %v1276 = vadd.f32 %v1187, %v1275
    %v1277 = vpop.f32.mrf.mxu0
    %v1278 = vadd.f32 %v1189, %v1277
    %1279 = vmatmul.bf16.gmra.mxu0 %v418
    %v1280 = vpop.f32.mrf.mxu0
    %v1281 = vadd.f32 %v1192, %v1280
    %v1282 = vpop.f32.mrf.mxu0
    %v1283 = vadd.f32 %v1194, %v1282
    %1284 = vmatmul.bf16.gmra.mxu0 %v420
    %v1285 = vpop.f32.mrf.mxu0
    %v1286 = vadd.f32 %v1197, %v1285
    %v1287 = vpop.f32.mrf.mxu0
    %v1288 = vadd.f32 %v1199, %v1287
    %1289 = vdwg.mxu0
    %1290 = vmatpush.bf16.msra.mxu0 %v860
    %1291 = vmatpush.bf16.msra.mxu0 %v856
    %1292 = vmatpush.bf16.msra.mxu0 %v852
    %1293 = vmatpush.bf16.msra.mxu0 %v848
    %1294 = vmatpush.bf16.msra.mxu0 %v844
    %1295 = vmatpush.bf16.msra.mxu0 %v840
    %1296 = vmatpush.bf16.msra.mxu0 %v836
    %1297 = vmatpush.bf16.msra.mxu0 %v832
    %1298 = vmatmul.bf16.gmra.mxu0 %v147
    %v1299 = vpop.f32.mrf.mxu0
    %v1300 = vadd.f32 %v536, %v1299
    %v1301 = vpop.f32.mrf.mxu0
    %v1302 = vadd.f32 %v536, %v1301
    %1303 = vmatmul.bf16.gmra.mxu0 %v148
    %v1304 = vpop.f32.mrf.mxu0
    %v1305 = vadd.f32 %v536, %v1304
    %v1306 = vpop.f32.mrf.mxu0
    %v1307 = vadd.f32 %v536, %v1306
    %1308 = vmatmul.bf16.gmra.mxu0 %v149
    %v1309 = vpop.f32.mrf.mxu0
    %v1310 = vadd.f32 %v536, %v1309
    %v1311 = vpop.f32.mrf.mxu0
    %v1312 = vadd.f32 %v536, %v1311
    %1313 = vmatmul.bf16.gmra.mxu0 %v150
    %v1314 = vpop.f32.mrf.mxu0
    %v1315 = vadd.f32 %v536, %v1314
    %v1316 = vpop.f32.mrf.mxu0
    %v1317 = vadd.f32 %v536, %v1316
    %1318 = vmatmul.bf16.gmra.mxu0 %v151
    %v1319 = vpop.f32.mrf.mxu0
    %v1320 = vadd.f32 %v536, %v1319
    %v1321 = vpop.f32.mrf.mxu0
    %v1322 = vadd.f32 %v536, %v1321
    %1323 = vmatmul.bf16.gmra.mxu0 %v152
    %v1324 = vpop.f32.mrf.mxu0
    %v1325 = vadd.f32 %v536, %v1324
    %v1326 = vpop.f32.mrf.mxu0
    %v1327 = vadd.f32 %v536, %v1326
    %1328 = vmatmul.bf16.gmra.mxu0 %v153
    %v1329 = vpop.f32.mrf.mxu0
    %v1330 = vadd.f32 %v536, %v1329
    %v1331 = vpop.f32.mrf.mxu0
    %v1332 = vadd.f32 %v536, %v1331
    %1333 = vmatmul.bf16.gmra.mxu0 %v154
    %v1334 = vpop.f32.mrf.mxu0
    %v1335 = vadd.f32 %v536, %v1334
    %v1336 = vpop.f32.mrf.mxu0
    %v1337 = vadd.f32 %v536, %v1336
    %1338 = vmatmul.bf16.gmra.mxu0 %v155
    %v1339 = vpop.f32.mrf.mxu0
    %v1340 = vadd.f32 %v536, %v1339
    %v1341 = vpop.f32.mrf.mxu0
    %v1342 = vadd.f32 %v536, %v1341
    %1343 = vmatmul.bf16.gmra.mxu0 %v156
    %v1344 = vpop.f32.mrf.mxu0
    %v1345 = vadd.f32 %v536, %v1344
    %v1346 = vpop.f32.mrf.mxu0
    %v1347 = vadd.f32 %v536, %v1346
    %1348 = vmatmul.bf16.gmra.mxu0 %v157
    %v1349 = vpop.f32.mrf.mxu0
    %v1350 = vadd.f32 %v536, %v1349
    %v1351 = vpop.f32.mrf.mxu0
    %v1352 = vadd.f32 %v536, %v1351
    %1353 = vmatmul.bf16.gmra.mxu0 %v158
    %v1354 = vpop.f32.mrf.mxu0
    %v1355 = vadd.f32 %v536, %v1354
    %v1356 = vpop.f32.mrf.mxu0
    %v1357 = vadd.f32 %v536, %v1356
    %1358 = vmatmul.bf16.gmra.mxu0 %v159
    %v1359 = vpop.f32.mrf.mxu0
    %v1360 = vadd.f32 %v536, %v1359
    %v1361 = vpop.f32.mrf.mxu0
    %v1362 = vadd.f32 %v536, %v1361
    %1363 = vmatmul.bf16.gmra.mxu0 %v160
    %v1364 = vpop.f32.mrf.mxu0
    %v1365 = vadd.f32 %v536, %v1364
    %v1366 = vpop.f32.mrf.mxu0
    %v1367 = vadd.f32 %v536, %v1366
    %1368 = vmatmul.bf16.gmra.mxu0 %v161
    %v1369 = vpop.f32.mrf.mxu0
    %v1370 = vadd.f32 %v536, %v1369
    %v1371 = vpop.f32.mrf.mxu0
    %v1372 = vadd.f32 %v536, %v1371
    %1373 = vmatmul.bf16.gmra.mxu0 %v162
    %v1374 = vpop.f32.mrf.mxu0
    %v1375 = vadd.f32 %v536, %v1374
    %v1376 = vpop.f32.mrf.mxu0
    %v1377 = vadd.f32 %v536, %v1376
    %1378 = vdwg.mxu0
    %1379 = vmatpush.bf16.msra.mxu0 %v892
    %1380 = vmatpush.bf16.msra.mxu0 %v888
    %1381 = vmatpush.bf16.msra.mxu0 %v884
    %1382 = vmatpush.bf16.msra.mxu0 %v880
    %1383 = vmatpush.bf16.msra.mxu0 %v876
    %1384 = vmatpush.bf16.msra.mxu0 %v872
    %1385 = vmatpush.bf16.msra.mxu0 %v868
    %1386 = vmatpush.bf16.msra.mxu0 %v864
    %1387 = vmatmul.bf16.gmra.mxu0 %v215
    %v1388 = vpop.f32.mrf.mxu0
    %v1389 = vadd.f32 %v1300, %v1388
    %v1390 = vpop.f32.mrf.mxu0
    %v1391 = vadd.f32 %v1302, %v1390
    %1392 = vmatmul.bf16.gmra.mxu0 %v223
    %v1393 = vpop.f32.mrf.mxu0
    %v1394 = vadd.f32 %v1305, %v1393
    %v1395 = vpop.f32.mrf.mxu0
    %v1396 = vadd.f32 %v1307, %v1395
    %1397 = vmatmul.bf16.gmra.mxu0 %v235
    %v1398 = vpop.f32.mrf.mxu0
    %v1399 = vadd.f32 %v1310, %v1398
    %v1400 = vpop.f32.mrf.mxu0
    %v1401 = vadd.f32 %v1312, %v1400
    %1402 = vmatmul.bf16.gmra.mxu0 %v243
    %v1403 = vpop.f32.mrf.mxu0
    %v1404 = vadd.f32 %v1315, %v1403
    %v1405 = vpop.f32.mrf.mxu0
    %v1406 = vadd.f32 %v1317, %v1405
    %1407 = vmatmul.bf16.gmra.mxu0 %v255
    %v1408 = vpop.f32.mrf.mxu0
    %v1409 = vadd.f32 %v1320, %v1408
    %v1410 = vpop.f32.mrf.mxu0
    %v1411 = vadd.f32 %v1322, %v1410
    %1412 = vmatmul.bf16.gmra.mxu0 %v263
    %v1413 = vpop.f32.mrf.mxu0
    %v1414 = vadd.f32 %v1325, %v1413
    %v1415 = vpop.f32.mrf.mxu0
    %v1416 = vadd.f32 %v1327, %v1415
    %1417 = vmatmul.bf16.gmra.mxu0 %v275
    %v1418 = vpop.f32.mrf.mxu0
    %v1419 = vadd.f32 %v1330, %v1418
    %v1420 = vpop.f32.mrf.mxu0
    %v1421 = vadd.f32 %v1332, %v1420
    %1422 = vmatmul.bf16.gmra.mxu0 %v283
    %v1423 = vpop.f32.mrf.mxu0
    %v1424 = vadd.f32 %v1335, %v1423
    %v1425 = vpop.f32.mrf.mxu0
    %v1426 = vadd.f32 %v1337, %v1425
    %1427 = vmatmul.bf16.gmra.mxu0 %v295
    %v1428 = vpop.f32.mrf.mxu0
    %v1429 = vadd.f32 %v1340, %v1428
    %v1430 = vpop.f32.mrf.mxu0
    %v1431 = vadd.f32 %v1342, %v1430
    %1432 = vmatmul.bf16.gmra.mxu0 %v303
    %v1433 = vpop.f32.mrf.mxu0
    %v1434 = vadd.f32 %v1345, %v1433
    %v1435 = vpop.f32.mrf.mxu0
    %v1436 = vadd.f32 %v1347, %v1435
    %1437 = vmatmul.bf16.gmra.mxu0 %v315
    %v1438 = vpop.f32.mrf.mxu0
    %v1439 = vadd.f32 %v1350, %v1438
    %v1440 = vpop.f32.mrf.mxu0
    %v1441 = vadd.f32 %v1352, %v1440
    %1442 = vmatmul.bf16.gmra.mxu0 %v323
    %v1443 = vpop.f32.mrf.mxu0
    %v1444 = vadd.f32 %v1355, %v1443
    %v1445 = vpop.f32.mrf.mxu0
    %v1446 = vadd.f32 %v1357, %v1445
    %1447 = vmatmul.bf16.gmra.mxu0 %v335
    %v1448 = vpop.f32.mrf.mxu0
    %v1449 = vadd.f32 %v1360, %v1448
    %v1450 = vpop.f32.mrf.mxu0
    %v1451 = vadd.f32 %v1362, %v1450
    %1452 = vmatmul.bf16.gmra.mxu0 %v343
    %v1453 = vpop.f32.mrf.mxu0
    %v1454 = vadd.f32 %v1365, %v1453
    %v1455 = vpop.f32.mrf.mxu0
    %v1456 = vadd.f32 %v1367, %v1455
    %1457 = vmatmul.bf16.gmra.mxu0 %v355
    %v1458 = vpop.f32.mrf.mxu0
    %v1459 = vadd.f32 %v1370, %v1458
    %v1460 = vpop.f32.mrf.mxu0
    %v1461 = vadd.f32 %v1372, %v1460
    %1462 = vmatmul.bf16.gmra.mxu0 %v363
    %v1463 = vpop.f32.mrf.mxu0
    %v1464 = vadd.f32 %v1375, %v1463
    %v1465 = vpop.f32.mrf.mxu0
    %v1466 = vadd.f32 %v1377, %v1465
    %1467 = vdwg.mxu0
    %1468 = vmatpush.bf16.msra.mxu0 %v924
    %1469 = vmatpush.bf16.msra.mxu0 %v920
    %1470 = vmatpush.bf16.msra.mxu0 %v916
    %1471 = vmatpush.bf16.msra.mxu0 %v912
    %1472 = vmatpush.bf16.msra.mxu0 %v908
    %1473 = vmatpush.bf16.msra.mxu0 %v904
    %1474 = vmatpush.bf16.msra.mxu0 %v900
    %1475 = vmatpush.bf16.msra.mxu0 %v896
    %1476 = vmatmul.bf16.gmra.mxu0 %v383
    %v1477 = vpop.f32.mrf.mxu0
    %v1478 = vadd.f32 %v1389, %v1477
    %v1479 = vpop.f32.mrf.mxu0
    %v1480 = vadd.f32 %v1391, %v1479
    %1481 = vmatmul.bf16.gmra.mxu0 %v385
    %v1482 = vpop.f32.mrf.mxu0
    %v1483 = vadd.f32 %v1394, %v1482
    %v1484 = vpop.f32.mrf.mxu0
    %v1485 = vadd.f32 %v1396, %v1484
    %1486 = vmatmul.bf16.gmra.mxu0 %v388
    %v1487 = vpop.f32.mrf.mxu0
    %v1488 = vadd.f32 %v1399, %v1487
    %v1489 = vpop.f32.mrf.mxu0
    %v1490 = vadd.f32 %v1401, %v1489
    %1491 = vmatmul.bf16.gmra.mxu0 %v390
    %v1492 = vpop.f32.mrf.mxu0
    %v1493 = vadd.f32 %v1404, %v1492
    %v1494 = vpop.f32.mrf.mxu0
    %v1495 = vadd.f32 %v1406, %v1494
    %1496 = vmatmul.bf16.gmra.mxu0 %v393
    %v1497 = vpop.f32.mrf.mxu0
    %v1498 = vadd.f32 %v1409, %v1497
    %v1499 = vpop.f32.mrf.mxu0
    %v1500 = vadd.f32 %v1411, %v1499
    %1501 = vmatmul.bf16.gmra.mxu0 %v395
    %v1502 = vpop.f32.mrf.mxu0
    %v1503 = vadd.f32 %v1414, %v1502
    %v1504 = vpop.f32.mrf.mxu0
    %v1505 = vadd.f32 %v1416, %v1504
    %1506 = vmatmul.bf16.gmra.mxu0 %v398
    %v1507 = vpop.f32.mrf.mxu0
    %v1508 = vadd.f32 %v1419, %v1507
    %v1509 = vpop.f32.mrf.mxu0
    %v1510 = vadd.f32 %v1421, %v1509
    %1511 = vmatmul.bf16.gmra.mxu0 %v400
    %v1512 = vpop.f32.mrf.mxu0
    %v1513 = vadd.f32 %v1424, %v1512
    %v1514 = vpop.f32.mrf.mxu0
    %v1515 = vadd.f32 %v1426, %v1514
    %1516 = vmatmul.bf16.gmra.mxu0 %v403
    %v1517 = vpop.f32.mrf.mxu0
    %v1518 = vadd.f32 %v1429, %v1517
    %v1519 = vpop.f32.mrf.mxu0
    %v1520 = vadd.f32 %v1431, %v1519
    %1521 = vmatmul.bf16.gmra.mxu0 %v405
    %v1522 = vpop.f32.mrf.mxu0
    %v1523 = vadd.f32 %v1434, %v1522
    %v1524 = vpop.f32.mrf.mxu0
    %v1525 = vadd.f32 %v1436, %v1524
    %1526 = vmatmul.bf16.gmra.mxu0 %v408
    %v1527 = vpop.f32.mrf.mxu0
    %v1528 = vadd.f32 %v1439, %v1527
    %v1529 = vpop.f32.mrf.mxu0
    %v1530 = vadd.f32 %v1441, %v1529
    %1531 = vmatmul.bf16.gmra.mxu0 %v410
    %v1532 = vpop.f32.mrf.mxu0
    %v1533 = vadd.f32 %v1444, %v1532
    %v1534 = vpop.f32.mrf.mxu0
    %v1535 = vadd.f32 %v1446, %v1534
    %1536 = vmatmul.bf16.gmra.mxu0 %v413
    %v1537 = vpop.f32.mrf.mxu0
    %v1538 = vadd.f32 %v1449, %v1537
    %v1539 = vpop.f32.mrf.mxu0
    %v1540 = vadd.f32 %v1451, %v1539
    %1541 = vmatmul.bf16.gmra.mxu0 %v415
    %v1542 = vpop.f32.mrf.mxu0
    %v1543 = vadd.f32 %v1454, %v1542
    %v1544 = vpop.f32.mrf.mxu0
    %v1545 = vadd.f32 %v1456, %v1544
    %1546 = vmatmul.bf16.gmra.mxu0 %v418
    %v1547 = vpop.f32.mrf.mxu0
    %v1548 = vadd.f32 %v1459, %v1547
    %v1549 = vpop.f32.mrf.mxu0
    %v1550 = vadd.f32 %v1461, %v1549
    %1551 = vmatmul.bf16.gmra.mxu0 %v420
    %v1552 = vpop.f32.mrf.mxu0
    %v1553 = vadd.f32 %v1464, %v1552
    %v1554 = vpop.f32.mrf.mxu0
    %v1555 = vadd.f32 %v1466, %v1554
    %1556 = vdwg.mxu0
    %1557 = vmatpush.bf16.msra.mxu0 %v861
    %1558 = vmatpush.bf16.msra.mxu0 %v857
    %1559 = vmatpush.bf16.msra.mxu0 %v853
    %1560 = vmatpush.bf16.msra.mxu0 %v849
    %1561 = vmatpush.bf16.msra.mxu0 %v845
    %1562 = vmatpush.bf16.msra.mxu0 %v841
    %1563 = vmatpush.bf16.msra.mxu0 %v837
    %1564 = vmatpush.bf16.msra.mxu0 %v833
    %1565 = vmatmul.bf16.gmra.mxu0 %v147
    %v1566 = vpop.f32.mrf.mxu0
    %v1567 = vadd.f32 %v537, %v1566
    %v1568 = vpop.f32.mrf.mxu0
    %v1569 = vadd.f32 %v537, %v1568
    %1570 = vmatmul.bf16.gmra.mxu0 %v148
    %v1571 = vpop.f32.mrf.mxu0
    %v1572 = vadd.f32 %v537, %v1571
    %v1573 = vpop.f32.mrf.mxu0
    %v1574 = vadd.f32 %v537, %v1573
    %1575 = vmatmul.bf16.gmra.mxu0 %v149
    %v1576 = vpop.f32.mrf.mxu0
    %v1577 = vadd.f32 %v537, %v1576
    %v1578 = vpop.f32.mrf.mxu0
    %v1579 = vadd.f32 %v537, %v1578
    %1580 = vmatmul.bf16.gmra.mxu0 %v150
    %v1581 = vpop.f32.mrf.mxu0
    %v1582 = vadd.f32 %v537, %v1581
    %v1583 = vpop.f32.mrf.mxu0
    %v1584 = vadd.f32 %v537, %v1583
    %1585 = vmatmul.bf16.gmra.mxu0 %v151
    %v1586 = vpop.f32.mrf.mxu0
    %v1587 = vadd.f32 %v537, %v1586
    %v1588 = vpop.f32.mrf.mxu0
    %v1589 = vadd.f32 %v537, %v1588
    %1590 = vmatmul.bf16.gmra.mxu0 %v152
    %v1591 = vpop.f32.mrf.mxu0
    %v1592 = vadd.f32 %v537, %v1591
    %v1593 = vpop.f32.mrf.mxu0
    %v1594 = vadd.f32 %v537, %v1593
    %1595 = vmatmul.bf16.gmra.mxu0 %v153
    %v1596 = vpop.f32.mrf.mxu0
    %v1597 = vadd.f32 %v537, %v1596
    %v1598 = vpop.f32.mrf.mxu0
    %v1599 = vadd.f32 %v537, %v1598
    %1600 = vmatmul.bf16.gmra.mxu0 %v154
    %v1601 = vpop.f32.mrf.mxu0
    %v1602 = vadd.f32 %v537, %v1601
    %v1603 = vpop.f32.mrf.mxu0
    %v1604 = vadd.f32 %v537, %v1603
    %1605 = vmatmul.bf16.gmra.mxu0 %v155
    %v1606 = vpop.f32.mrf.mxu0
    %v1607 = vadd.f32 %v537, %v1606
    %v1608 = vpop.f32.mrf.mxu0
    %v1609 = vadd.f32 %v537, %v1608
    %1610 = vmatmul.bf16.gmra.mxu0 %v156
    %v1611 = vpop.f32.mrf.mxu0
    %v1612 = vadd.f32 %v537, %v1611
    %v1613 = vpop.f32.mrf.mxu0
    %v1614 = vadd.f32 %v537, %v1613
    %1615 = vmatmul.bf16.gmra.mxu0 %v157
    %v1616 = vpop.f32.mrf.mxu0
    %v1617 = vadd.f32 %v537, %v1616
    %v1618 = vpop.f32.mrf.mxu0
    %v1619 = vadd.f32 %v537, %v1618
    %1620 = vmatmul.bf16.gmra.mxu0 %v158
    %v1621 = vpop.f32.mrf.mxu0
    %v1622 = vadd.f32 %v537, %v1621
    %v1623 = vpop.f32.mrf.mxu0
    %v1624 = vadd.f32 %v537, %v1623
    %1625 = vmatmul.bf16.gmra.mxu0 %v159
    %v1626 = vpop.f32.mrf.mxu0
    %v1627 = vadd.f32 %v537, %v1626
    %v1628 = vpop.f32.mrf.mxu0
    %v1629 = vadd.f32 %v537, %v1628
    %1630 = vmatmul.bf16.gmra.mxu0 %v160
    %v1631 = vpop.f32.mrf.mxu0
    %v1632 = vadd.f32 %v537, %v1631
    %v1633 = vpop.f32.mrf.mxu0
    %v1634 = vadd.f32 %v537, %v1633
    %1635 = vmatmul.bf16.gmra.mxu0 %v161
    %v1636 = vpop.f32.mrf.mxu0
    %v1637 = vadd.f32 %v537, %v1636
    %v1638 = vpop.f32.mrf.mxu0
    %v1639 = vadd.f32 %v537, %v1638
    %1640 = vmatmul.bf16.gmra.mxu0 %v162
    %v1641 = vpop.f32.mrf.mxu0
    %v1642 = vadd.f32 %v537, %v1641
    %v1643 = vpop.f32.mrf.mxu0
    %v1644 = vadd.f32 %v537, %v1643
    %1645 = vdwg.mxu0
    %1646 = vmatpush.bf16.msra.mxu0 %v893
    %1647 = vmatpush.bf16.msra.mxu0 %v889
    %1648 = vmatpush.bf16.msra.mxu0 %v885
    %1649 = vmatpush.bf16.msra.mxu0 %v881
    %1650 = vmatpush.bf16.msra.mxu0 %v877
    %1651 = vmatpush.bf16.msra.mxu0 %v873
    %1652 = vmatpush.bf16.msra.mxu0 %v869
    %1653 = vmatpush.bf16.msra.mxu0 %v865
    %1654 = vmatmul.bf16.gmra.mxu0 %v215
    %v1655 = vpop.f32.mrf.mxu0
    %v1656 = vadd.f32 %v1567, %v1655
    %v1657 = vpop.f32.mrf.mxu0
    %v1658 = vadd.f32 %v1569, %v1657
    %1659 = vmatmul.bf16.gmra.mxu0 %v223
    %v1660 = vpop.f32.mrf.mxu0
    %v1661 = vadd.f32 %v1572, %v1660
    %v1662 = vpop.f32.mrf.mxu0
    %v1663 = vadd.f32 %v1574, %v1662
    %1664 = vmatmul.bf16.gmra.mxu0 %v235
    %v1665 = vpop.f32.mrf.mxu0
    %v1666 = vadd.f32 %v1577, %v1665
    %v1667 = vpop.f32.mrf.mxu0
    %v1668 = vadd.f32 %v1579, %v1667
    %1669 = vmatmul.bf16.gmra.mxu0 %v243
    %v1670 = vpop.f32.mrf.mxu0
    %v1671 = vadd.f32 %v1582, %v1670
    %v1672 = vpop.f32.mrf.mxu0
    %v1673 = vadd.f32 %v1584, %v1672
    %1674 = vmatmul.bf16.gmra.mxu0 %v255
    %v1675 = vpop.f32.mrf.mxu0
    %v1676 = vadd.f32 %v1587, %v1675
    %v1677 = vpop.f32.mrf.mxu0
    %v1678 = vadd.f32 %v1589, %v1677
    %1679 = vmatmul.bf16.gmra.mxu0 %v263
    %v1680 = vpop.f32.mrf.mxu0
    %v1681 = vadd.f32 %v1592, %v1680
    %v1682 = vpop.f32.mrf.mxu0
    %v1683 = vadd.f32 %v1594, %v1682
    %1684 = vmatmul.bf16.gmra.mxu0 %v275
    %v1685 = vpop.f32.mrf.mxu0
    %v1686 = vadd.f32 %v1597, %v1685
    %v1687 = vpop.f32.mrf.mxu0
    %v1688 = vadd.f32 %v1599, %v1687
    %1689 = vmatmul.bf16.gmra.mxu0 %v283
    %v1690 = vpop.f32.mrf.mxu0
    %v1691 = vadd.f32 %v1602, %v1690
    %v1692 = vpop.f32.mrf.mxu0
    %v1693 = vadd.f32 %v1604, %v1692
    %1694 = vmatmul.bf16.gmra.mxu0 %v295
    %v1695 = vpop.f32.mrf.mxu0
    %v1696 = vadd.f32 %v1607, %v1695
    %v1697 = vpop.f32.mrf.mxu0
    %v1698 = vadd.f32 %v1609, %v1697
    %1699 = vmatmul.bf16.gmra.mxu0 %v303
    %v1700 = vpop.f32.mrf.mxu0
    %v1701 = vadd.f32 %v1612, %v1700
    %v1702 = vpop.f32.mrf.mxu0
    %v1703 = vadd.f32 %v1614, %v1702
    %1704 = vmatmul.bf16.gmra.mxu0 %v315
    %v1705 = vpop.f32.mrf.mxu0
    %v1706 = vadd.f32 %v1617, %v1705
    %v1707 = vpop.f32.mrf.mxu0
    %v1708 = vadd.f32 %v1619, %v1707
    %1709 = vmatmul.bf16.gmra.mxu0 %v323
    %v1710 = vpop.f32.mrf.mxu0
    %v1711 = vadd.f32 %v1622, %v1710
    %v1712 = vpop.f32.mrf.mxu0
    %v1713 = vadd.f32 %v1624, %v1712
    %1714 = vmatmul.bf16.gmra.mxu0 %v335
    %v1715 = vpop.f32.mrf.mxu0
    %v1716 = vadd.f32 %v1627, %v1715
    %v1717 = vpop.f32.mrf.mxu0
    %v1718 = vadd.f32 %v1629, %v1717
    %1719 = vmatmul.bf16.gmra.mxu0 %v343
    %v1720 = vpop.f32.mrf.mxu0
    %v1721 = vadd.f32 %v1632, %v1720
    %v1722 = vpop.f32.mrf.mxu0
    %v1723 = vadd.f32 %v1634, %v1722
    %1724 = vmatmul.bf16.gmra.mxu0 %v355
    %v1725 = vpop.f32.mrf.mxu0
    %v1726 = vadd.f32 %v1637, %v1725
    %v1727 = vpop.f32.mrf.mxu0
    %v1728 = vadd.f32 %v1639, %v1727
    %1729 = vmatmul.bf16.gmra.mxu0 %v363
    %v1730 = vpop.f32.mrf.mxu0
    %v1731 = vadd.f32 %v1642, %v1730
    %v1732 = vpop.f32.mrf.mxu0
    %v1733 = vadd.f32 %v1644, %v1732
    %1734 = vdwg.mxu0
    %1735 = vmatpush.bf16.msra.mxu0 %v925
    %1736 = vmatpush.bf16.msra.mxu0 %v921
    %1737 = vmatpush.bf16.msra.mxu0 %v917
    %1738 = vmatpush.bf16.msra.mxu0 %v913
    %1739 = vmatpush.bf16.msra.mxu0 %v909
    %1740 = vmatpush.bf16.msra.mxu0 %v905
    %1741 = vmatpush.bf16.msra.mxu0 %v901
    %1742 = vmatpush.bf16.msra.mxu0 %v897
    %1743 = vmatmul.bf16.gmra.mxu0 %v383
    %v1744 = vpop.f32.mrf.mxu0
    %v1745 = vadd.f32 %v1656, %v1744
    %v1746 = vpop.f32.mrf.mxu0
    %v1747 = vadd.f32 %v1658, %v1746
    %1748 = vmatmul.bf16.gmra.mxu0 %v385
    %v1749 = vpop.f32.mrf.mxu0
    %v1750 = vadd.f32 %v1661, %v1749
    %v1751 = vpop.f32.mrf.mxu0
    %v1752 = vadd.f32 %v1663, %v1751
    %1753 = vmatmul.bf16.gmra.mxu0 %v388
    %v1754 = vpop.f32.mrf.mxu0
    %v1755 = vadd.f32 %v1666, %v1754
    %v1756 = vpop.f32.mrf.mxu0
    %v1757 = vadd.f32 %v1668, %v1756
    %1758 = vmatmul.bf16.gmra.mxu0 %v390
    %v1759 = vpop.f32.mrf.mxu0
    %v1760 = vadd.f32 %v1671, %v1759
    %v1761 = vpop.f32.mrf.mxu0
    %v1762 = vadd.f32 %v1673, %v1761
    %1763 = vmatmul.bf16.gmra.mxu0 %v393
    %v1764 = vpop.f32.mrf.mxu0
    %v1765 = vadd.f32 %v1676, %v1764
    %v1766 = vpop.f32.mrf.mxu0
    %v1767 = vadd.f32 %v1678, %v1766
    %1768 = vmatmul.bf16.gmra.mxu0 %v395
    %v1769 = vpop.f32.mrf.mxu0
    %v1770 = vadd.f32 %v1681, %v1769
    %v1771 = vpop.f32.mrf.mxu0
    %v1772 = vadd.f32 %v1683, %v1771
    %1773 = vmatmul.bf16.gmra.mxu0 %v398
    %v1774 = vpop.f32.mrf.mxu0
    %v1775 = vadd.f32 %v1686, %v1774
    %v1776 = vpop.f32.mrf.mxu0
    %v1777 = vadd.f32 %v1688, %v1776
    %1778 = vmatmul.bf16.gmra.mxu0 %v400
    %v1779 = vpop.f32.mrf.mxu0
    %v1780 = vadd.f32 %v1691, %v1779
    %v1781 = vpop.f32.mrf.mxu0
    %v1782 = vadd.f32 %v1693, %v1781
    %1783 = vmatmul.bf16.gmra.mxu0 %v403
    %v1784 = vpop.f32.mrf.mxu0
    %v1785 = vadd.f32 %v1696, %v1784
    %v1786 = vpop.f32.mrf.mxu0
    %v1787 = vadd.f32 %v1698, %v1786
    %1788 = vmatmul.bf16.gmra.mxu0 %v405
    %v1789 = vpop.f32.mrf.mxu0
    %v1790 = vadd.f32 %v1701, %v1789
    %v1791 = vpop.f32.mrf.mxu0
    %v1792 = vadd.f32 %v1703, %v1791
    %1793 = vmatmul.bf16.gmra.mxu0 %v408
    %v1794 = vpop.f32.mrf.mxu0
    %v1795 = vadd.f32 %v1706, %v1794
    %v1796 = vpop.f32.mrf.mxu0
    %v1797 = vadd.f32 %v1708, %v1796
    %1798 = vmatmul.bf16.gmra.mxu0 %v410
    %v1799 = vpop.f32.mrf.mxu0
    %v1800 = vadd.f32 %v1711, %v1799
    %v1801 = vpop.f32.mrf.mxu0
    %v1802 = vadd.f32 %v1713, %v1801
    %1803 = vmatmul.bf16.gmra.mxu0 %v413
    %v1804 = vpop.f32.mrf.mxu0
    %v1805 = vadd.f32 %v1716, %v1804
    %v1806 = vpop.f32.mrf.mxu0
    %v1807 = vadd.f32 %v1718, %v1806
    %1808 = vmatmul.bf16.gmra.mxu0 %v415
    %v1809 = vpop.f32.mrf.mxu0
    %v1810 = vadd.f32 %v1721, %v1809
    %v1811 = vpop.f32.mrf.mxu0
    %v1812 = vadd.f32 %v1723, %v1811
    %1813 = vmatmul.bf16.gmra.mxu0 %v418
    %v1814 = vpop.f32.mrf.mxu0
    %v1815 = vadd.f32 %v1726, %v1814
    %v1816 = vpop.f32.mrf.mxu0
    %v1817 = vadd.f32 %v1728, %v1816
    %1818 = vmatmul.bf16.gmra.mxu0 %v420
    %v1819 = vpop.f32.mrf.mxu0
    %v1820 = vadd.f32 %v1731, %v1819
    %v1821 = vpop.f32.mrf.mxu0
    %v1822 = vadd.f32 %v1733, %v1821
    %1823 = vdwg.mxu0
    %1824 = vmatpush.bf16.msra.mxu0 %v862
    %1825 = vmatpush.bf16.msra.mxu0 %v858
    %1826 = vmatpush.bf16.msra.mxu0 %v854
    %1827 = vmatpush.bf16.msra.mxu0 %v850
    %1828 = vmatpush.bf16.msra.mxu0 %v846
    %1829 = vmatpush.bf16.msra.mxu0 %v842
    %1830 = vmatpush.bf16.msra.mxu0 %v838
    %1831 = vmatpush.bf16.msra.mxu0 %v834
    %1832 = vmatmul.bf16.gmra.mxu0 %v147
    %v1833 = vpop.f32.mrf.mxu0
    %v1834 = vadd.f32 %v538, %v1833
    %v1835 = vpop.f32.mrf.mxu0
    %v1836 = vadd.f32 %v538, %v1835
    %1837 = vmatmul.bf16.gmra.mxu0 %v148
    %v1838 = vpop.f32.mrf.mxu0
    %v1839 = vadd.f32 %v538, %v1838
    %v1840 = vpop.f32.mrf.mxu0
    %v1841 = vadd.f32 %v538, %v1840
    %1842 = vmatmul.bf16.gmra.mxu0 %v149
    %v1843 = vpop.f32.mrf.mxu0
    %v1844 = vadd.f32 %v538, %v1843
    %v1845 = vpop.f32.mrf.mxu0
    %v1846 = vadd.f32 %v538, %v1845
    %1847 = vmatmul.bf16.gmra.mxu0 %v150
    %v1848 = vpop.f32.mrf.mxu0
    %v1849 = vadd.f32 %v538, %v1848
    %v1850 = vpop.f32.mrf.mxu0
    %v1851 = vadd.f32 %v538, %v1850
    %1852 = vmatmul.bf16.gmra.mxu0 %v151
    %v1853 = vpop.f32.mrf.mxu0
    %v1854 = vadd.f32 %v538, %v1853
    %v1855 = vpop.f32.mrf.mxu0
    %v1856 = vadd.f32 %v538, %v1855
    %1857 = vmatmul.bf16.gmra.mxu0 %v152
    %v1858 = vpop.f32.mrf.mxu0
    %v1859 = vadd.f32 %v538, %v1858
    %v1860 = vpop.f32.mrf.mxu0
    %v1861 = vadd.f32 %v538, %v1860
    %1862 = vmatmul.bf16.gmra.mxu0 %v153
    %v1863 = vpop.f32.mrf.mxu0
    %v1864 = vadd.f32 %v538, %v1863
    %v1865 = vpop.f32.mrf.mxu0
    %v1866 = vadd.f32 %v538, %v1865
    %1867 = vmatmul.bf16.gmra.mxu0 %v154
    %v1868 = vpop.f32.mrf.mxu0
    %v1869 = vadd.f32 %v538, %v1868
    %v1870 = vpop.f32.mrf.mxu0
    %v1871 = vadd.f32 %v538, %v1870
    %1872 = vmatmul.bf16.gmra.mxu0 %v155
    %v1873 = vpop.f32.mrf.mxu0
    %v1874 = vadd.f32 %v538, %v1873
    %v1875 = vpop.f32.mrf.mxu0
    %v1876 = vadd.f32 %v538, %v1875
    %1877 = vmatmul.bf16.gmra.mxu0 %v156
    %v1878 = vpop.f32.mrf.mxu0
    %v1879 = vadd.f32 %v538, %v1878
    %v1880 = vpop.f32.mrf.mxu0
    %v1881 = vadd.f32 %v538, %v1880
    %1882 = vmatmul.bf16.gmra.mxu0 %v157
    %v1883 = vpop.f32.mrf.mxu0
    %v1884 = vadd.f32 %v538, %v1883
    %v1885 = vpop.f32.mrf.mxu0
    %v1886 = vadd.f32 %v538, %v1885
    %1887 = vmatmul.bf16.gmra.mxu0 %v158
    %v1888 = vpop.f32.mrf.mxu0
    %v1889 = vadd.f32 %v538, %v1888
    %v1890 = vpop.f32.mrf.mxu0
    %v1891 = vadd.f32 %v538, %v1890
    %1892 = vmatmul.bf16.gmra.mxu0 %v159
    %v1893 = vpop.f32.mrf.mxu0
    %v1894 = vadd.f32 %v538, %v1893
    %v1895 = vpop.f32.mrf.mxu0
    %v1896 = vadd.f32 %v538, %v1895
    %1897 = vmatmul.bf16.gmra.mxu0 %v160
    %v1898 = vpop.f32.mrf.mxu0
    %v1899 = vadd.f32 %v538, %v1898
    %v1900 = vpop.f32.mrf.mxu0
    %v1901 = vadd.f32 %v538, %v1900
    %1902 = vmatmul.bf16.gmra.mxu0 %v161
    %v1903 = vpop.f32.mrf.mxu0
    %v1904 = vadd.f32 %v538, %v1903
    %v1905 = vpop.f32.mrf.mxu0
    %v1906 = vadd.f32 %v538, %v1905
    %1907 = vmatmul.bf16.gmra.mxu0 %v162
    %v1908 = vpop.f32.mrf.mxu0
    %v1909 = vadd.f32 %v538, %v1908
    %v1910 = vpop.f32.mrf.mxu0
    %v1911 = vadd.f32 %v538, %v1910
    %1912 = vdwg.mxu0
    %1913 = vmatpush.bf16.msra.mxu0 %v894
    %1914 = vmatpush.bf16.msra.mxu0 %v890
    %1915 = vmatpush.bf16.msra.mxu0 %v886
    %1916 = vmatpush.bf16.msra.mxu0 %v882
    %1917 = vmatpush.bf16.msra.mxu0 %v878
    %1918 = vmatpush.bf16.msra.mxu0 %v874
    %1919 = vmatpush.bf16.msra.mxu0 %v870
    %1920 = vmatpush.bf16.msra.mxu0 %v866
    %1921 = vmatmul.bf16.gmra.mxu0 %v215
    %v1922 = vpop.f32.mrf.mxu0
    %v1923 = vadd.f32 %v1834, %v1922
    %v1924 = vpop.f32.mrf.mxu0
    %v1925 = vadd.f32 %v1836, %v1924
    %1926 = vmatmul.bf16.gmra.mxu0 %v223
    %v1927 = vpop.f32.mrf.mxu0
    %v1928 = vadd.f32 %v1839, %v1927
    %v1929 = vpop.f32.mrf.mxu0
    %v1930 = vadd.f32 %v1841, %v1929
    %1931 = vmatmul.bf16.gmra.mxu0 %v235
    %v1932 = vpop.f32.mrf.mxu0
    %v1933 = vadd.f32 %v1844, %v1932
    %v1934 = vpop.f32.mrf.mxu0
    %v1935 = vadd.f32 %v1846, %v1934
    %1936 = vmatmul.bf16.gmra.mxu0 %v243
    %v1937 = vpop.f32.mrf.mxu0
    %v1938 = vadd.f32 %v1849, %v1937
    %v1939 = vpop.f32.mrf.mxu0
    %v1940 = vadd.f32 %v1851, %v1939
    %1941 = vmatmul.bf16.gmra.mxu0 %v255
    %v1942 = vpop.f32.mrf.mxu0
    %v1943 = vadd.f32 %v1854, %v1942
    %v1944 = vpop.f32.mrf.mxu0
    %v1945 = vadd.f32 %v1856, %v1944
    %1946 = vmatmul.bf16.gmra.mxu0 %v263
    %v1947 = vpop.f32.mrf.mxu0
    %v1948 = vadd.f32 %v1859, %v1947
    %v1949 = vpop.f32.mrf.mxu0
    %v1950 = vadd.f32 %v1861, %v1949
    %1951 = vmatmul.bf16.gmra.mxu0 %v275
    %v1952 = vpop.f32.mrf.mxu0
    %v1953 = vadd.f32 %v1864, %v1952
    %v1954 = vpop.f32.mrf.mxu0
    %v1955 = vadd.f32 %v1866, %v1954
    %1956 = vmatmul.bf16.gmra.mxu0 %v283
    %v1957 = vpop.f32.mrf.mxu0
    %v1958 = vadd.f32 %v1869, %v1957
    %v1959 = vpop.f32.mrf.mxu0
    %v1960 = vadd.f32 %v1871, %v1959
    %1961 = vmatmul.bf16.gmra.mxu0 %v295
    %v1962 = vpop.f32.mrf.mxu0
    %v1963 = vadd.f32 %v1874, %v1962
    %v1964 = vpop.f32.mrf.mxu0
    %v1965 = vadd.f32 %v1876, %v1964
    %1966 = vmatmul.bf16.gmra.mxu0 %v303
    %v1967 = vpop.f32.mrf.mxu0
    %v1968 = vadd.f32 %v1879, %v1967
    %v1969 = vpop.f32.mrf.mxu0
    %v1970 = vadd.f32 %v1881, %v1969
    %1971 = vmatmul.bf16.gmra.mxu0 %v315
    %v1972 = vpop.f32.mrf.mxu0
    %v1973 = vadd.f32 %v1884, %v1972
    %v1974 = vpop.f32.mrf.mxu0
    %v1975 = vadd.f32 %v1886, %v1974
    %1976 = vmatmul.bf16.gmra.mxu0 %v323
    %v1977 = vpop.f32.mrf.mxu0
    %v1978 = vadd.f32 %v1889, %v1977
    %v1979 = vpop.f32.mrf.mxu0
    %v1980 = vadd.f32 %v1891, %v1979
    %1981 = vmatmul.bf16.gmra.mxu0 %v335
    %v1982 = vpop.f32.mrf.mxu0
    %v1983 = vadd.f32 %v1894, %v1982
    %v1984 = vpop.f32.mrf.mxu0
    %v1985 = vadd.f32 %v1896, %v1984
    %1986 = vmatmul.bf16.gmra.mxu0 %v343
    %v1987 = vpop.f32.mrf.mxu0
    %v1988 = vadd.f32 %v1899, %v1987
    %v1989 = vpop.f32.mrf.mxu0
    %v1990 = vadd.f32 %v1901, %v1989
    %1991 = vmatmul.bf16.gmra.mxu0 %v355
    %v1992 = vpop.f32.mrf.mxu0
    %v1993 = vadd.f32 %v1904, %v1992
    %v1994 = vpop.f32.mrf.mxu0
    %v1995 = vadd.f32 %v1906, %v1994
    %1996 = vmatmul.bf16.gmra.mxu0 %v363
    %v1997 = vpop.f32.mrf.mxu0
    %v1998 = vadd.f32 %v1909, %v1997
    %v1999 = vpop.f32.mrf.mxu0
    %v2000 = vadd.f32 %v1911, %v1999
    %2001 = vdwg.mxu0
    %2002 = vmatpush.bf16.msra.mxu0 %v926
    %2003 = vmatpush.bf16.msra.mxu0 %v922
    %2004 = vmatpush.bf16.msra.mxu0 %v918
    %2005 = vmatpush.bf16.msra.mxu0 %v914
    %2006 = vmatpush.bf16.msra.mxu0 %v910
    %2007 = vmatpush.bf16.msra.mxu0 %v906
    %2008 = vmatpush.bf16.msra.mxu0 %v902
    %2009 = vmatpush.bf16.msra.mxu0 %v898
    %2010 = vmatmul.bf16.gmra.mxu0 %v383
    %v2011 = vpop.f32.mrf.mxu0
    %v2012 = vadd.f32 %v1923, %v2011
    %v2013 = vpop.f32.mrf.mxu0
    %v2014 = vadd.f32 %v1925, %v2013
    %2015 = vmatmul.bf16.gmra.mxu0 %v385
    %v2016 = vpop.f32.mrf.mxu0
    %v2017 = vadd.f32 %v1928, %v2016
    %v2018 = vpop.f32.mrf.mxu0
    %v2019 = vadd.f32 %v1930, %v2018
    %2020 = vmatmul.bf16.gmra.mxu0 %v388
    %v2021 = vpop.f32.mrf.mxu0
    %v2022 = vadd.f32 %v1933, %v2021
    %v2023 = vpop.f32.mrf.mxu0
    %v2024 = vadd.f32 %v1935, %v2023
    %2025 = vmatmul.bf16.gmra.mxu0 %v390
    %v2026 = vpop.f32.mrf.mxu0
    %v2027 = vadd.f32 %v1938, %v2026
    %v2028 = vpop.f32.mrf.mxu0
    %v2029 = vadd.f32 %v1940, %v2028
    %2030 = vmatmul.bf16.gmra.mxu0 %v393
    %v2031 = vpop.f32.mrf.mxu0
    %v2032 = vadd.f32 %v1943, %v2031
    %v2033 = vpop.f32.mrf.mxu0
    %v2034 = vadd.f32 %v1945, %v2033
    %2035 = vmatmul.bf16.gmra.mxu0 %v395
    %v2036 = vpop.f32.mrf.mxu0
    %v2037 = vadd.f32 %v1948, %v2036
    %v2038 = vpop.f32.mrf.mxu0
    %v2039 = vadd.f32 %v1950, %v2038
    %2040 = vmatmul.bf16.gmra.mxu0 %v398
    %v2041 = vpop.f32.mrf.mxu0
    %v2042 = vadd.f32 %v1953, %v2041
    %v2043 = vpop.f32.mrf.mxu0
    %v2044 = vadd.f32 %v1955, %v2043
    %2045 = vmatmul.bf16.gmra.mxu0 %v400
    %v2046 = vpop.f32.mrf.mxu0
    %v2047 = vadd.f32 %v1958, %v2046
    %v2048 = vpop.f32.mrf.mxu0
    %v2049 = vadd.f32 %v1960, %v2048
    %2050 = vmatmul.bf16.gmra.mxu0 %v403
    %v2051 = vpop.f32.mrf.mxu0
    %v2052 = vadd.f32 %v1963, %v2051
    %v2053 = vpop.f32.mrf.mxu0
    %v2054 = vadd.f32 %v1965, %v2053
    %2055 = vmatmul.bf16.gmra.mxu0 %v405
    %v2056 = vpop.f32.mrf.mxu0
    %v2057 = vadd.f32 %v1968, %v2056
    %v2058 = vpop.f32.mrf.mxu0
    %v2059 = vadd.f32 %v1970, %v2058
    %2060 = vmatmul.bf16.gmra.mxu0 %v408
    %v2061 = vpop.f32.mrf.mxu0
    %v2062 = vadd.f32 %v1973, %v2061
    %v2063 = vpop.f32.mrf.mxu0
    %v2064 = vadd.f32 %v1975, %v2063
    %2065 = vmatmul.bf16.gmra.mxu0 %v410
    %v2066 = vpop.f32.mrf.mxu0
    %v2067 = vadd.f32 %v1978, %v2066
    %v2068 = vpop.f32.mrf.mxu0
    %v2069 = vadd.f32 %v1980, %v2068
    %2070 = vmatmul.bf16.gmra.mxu0 %v413
    %v2071 = vpop.f32.mrf.mxu0
    %v2072 = vadd.f32 %v1983, %v2071
    %v2073 = vpop.f32.mrf.mxu0
    %v2074 = vadd.f32 %v1985, %v2073
    %2075 = vmatmul.bf16.gmra.mxu0 %v415
    %v2076 = vpop.f32.mrf.mxu0
    %v2077 = vadd.f32 %v1988, %v2076
    %v2078 = vpop.f32.mrf.mxu0
    %v2079 = vadd.f32 %v1990, %v2078
    %2080 = vmatmul.bf16.gmra.mxu0 %v418
    %v2081 = vpop.f32.mrf.mxu0
    %v2082 = vadd.f32 %v1993, %v2081
    %v2083 = vpop.f32.mrf.mxu0
    %v2084 = vadd.f32 %v1995, %v2083
    %2085 = vmatmul.bf16.gmra.mxu0 %v420
    %v2086 = vpop.f32.mrf.mxu0
    %v2087 = vadd.f32 %v1998, %v2086
    %v2088 = vpop.f32.mrf.mxu0
    %v2089 = vadd.f32 %v2000, %v2088
    %2090 = vdwg.mxu0
    %v2091 = vmax.f32 %v1211, 0.0
    %v2092 = vmax.f32 %v1478, 0.0
    %v2093 = vmax.f32 %v1745, 0.0
    %v2094 = vmax.f32 %v2012, 0.0
    %v2095 = vmax.f32 %v1213, 0.0
    %v2096 = vmax.f32 %v1480, 0.0
    %v2097 = vmax.f32 %v1747, 0.0
    %v2098 = vmax.f32 %v2014, 0.0
    %v2099 = vmax.f32 %v1216, 0.0
    %v2100 = vmax.f32 %v1483, 0.0
    %v2101 = vmax.f32 %v1750, 0.0
    %v2102 = vmax.f32 %v2017, 0.0
    %v2103 = vmax.f32 %v1218, 0.0
    %v2104 = vmax.f32 %v1485, 0.0
    %v2105 = vmax.f32 %v1752, 0.0
    %v2106 = vmax.f32 %v2019, 0.0
    %v2107 = vmax.f32 %v1221, 0.0
    %v2108 = vmax.f32 %v1488, 0.0
    %v2109 = vmax.f32 %v1755, 0.0
    %v2110 = vmax.f32 %v2022, 0.0
    %v2111 = vmax.f32 %v1223, 0.0
    %v2112 = vmax.f32 %v1490, 0.0
    %v2113 = vmax.f32 %v1757, 0.0
    %v2114 = vmax.f32 %v2024, 0.0
    %v2115 = vmax.f32 %v1226, 0.0
    %v2116 = vmax.f32 %v1493, 0.0
    %v2117 = vmax.f32 %v1760, 0.0
    %v2118 = vmax.f32 %v2027, 0.0
    %v2119 = vmax.f32 %v1228, 0.0
    %v2120 = vmax.f32 %v1495, 0.0
    %v2121 = vmax.f32 %v1762, 0.0
    %v2122 = vmax.f32 %v2029, 0.0
    %v2123 = vmax.f32 %v1231, 0.0
    %v2124 = vmax.f32 %v1498, 0.0
    %v2125 = vmax.f32 %v1765, 0.0
    %v2126 = vmax.f32 %v2032, 0.0
    %v2127 = vmax.f32 %v1233, 0.0
    %v2128 = vmax.f32 %v1500, 0.0
    %v2129 = vmax.f32 %v1767, 0.0
    %v2130 = vmax.f32 %v2034, 0.0
    %v2131 = vmax.f32 %v1236, 0.0
    %v2132 = vmax.f32 %v1503, 0.0
    %v2133 = vmax.f32 %v1770, 0.0
    %v2134 = vmax.f32 %v2037, 0.0
    %v2135 = vmax.f32 %v1238, 0.0
    %v2136 = vmax.f32 %v1505, 0.0
    %v2137 = vmax.f32 %v1772, 0.0
    %v2138 = vmax.f32 %v2039, 0.0
    %v2139 = vmax.f32 %v1241, 0.0
    %v2140 = vmax.f32 %v1508, 0.0
    %v2141 = vmax.f32 %v1775, 0.0
    %v2142 = vmax.f32 %v2042, 0.0
    %v2143 = vmax.f32 %v1243, 0.0
    %v2144 = vmax.f32 %v1510, 0.0
    %v2145 = vmax.f32 %v1777, 0.0
    %v2146 = vmax.f32 %v2044, 0.0
    %v2147 = vmax.f32 %v1246, 0.0
    %v2148 = vmax.f32 %v1513, 0.0
    %v2149 = vmax.f32 %v1780, 0.0
    %v2150 = vmax.f32 %v2047, 0.0
    %v2151 = vmax.f32 %v1248, 0.0
    %v2152 = vmax.f32 %v1515, 0.0
    %v2153 = vmax.f32 %v1782, 0.0
    %v2154 = vmax.f32 %v2049, 0.0
    %v2155 = vmax.f32 %v1251, 0.0
    %v2156 = vmax.f32 %v1518, 0.0
    %v2157 = vmax.f32 %v1785, 0.0
    %v2158 = vmax.f32 %v2052, 0.0
    %v2159 = vmax.f32 %v1253, 0.0
    %v2160 = vmax.f32 %v1520, 0.0
    %v2161 = vmax.f32 %v1787, 0.0
    %v2162 = vmax.f32 %v2054, 0.0
    %v2163 = vmax.f32 %v1256, 0.0
    %v2164 = vmax.f32 %v1523, 0.0
    %v2165 = vmax.f32 %v1790, 0.0
    %v2166 = vmax.f32 %v2057, 0.0
    %v2167 = vmax.f32 %v1258, 0.0
    %v2168 = vmax.f32 %v1525, 0.0
    %v2169 = vmax.f32 %v1792, 0.0
    %v2170 = vmax.f32 %v2059, 0.0
    %v2171 = vmax.f32 %v1261, 0.0
    %v2172 = vmax.f32 %v1528, 0.0
    %v2173 = vmax.f32 %v1795, 0.0
    %v2174 = vmax.f32 %v2062, 0.0
    %v2175 = vmax.f32 %v1263, 0.0
    %v2176 = vmax.f32 %v1530, 0.0
    %v2177 = vmax.f32 %v1797, 0.0
    %v2178 = vmax.f32 %v2064, 0.0
    %v2179 = vmax.f32 %v1266, 0.0
    %v2180 = vmax.f32 %v1533, 0.0
    %v2181 = vmax.f32 %v1800, 0.0
    %v2182 = vmax.f32 %v2067, 0.0
    %v2183 = vmax.f32 %v1268, 0.0
    %v2184 = vmax.f32 %v1535, 0.0
    %v2185 = vmax.f32 %v1802, 0.0
    %v2186 = vmax.f32 %v2069, 0.0
    %v2187 = vmax.f32 %v1271, 0.0
    %v2188 = vmax.f32 %v1538, 0.0
    %v2189 = vmax.f32 %v1805, 0.0
    %v2190 = vmax.f32 %v2072, 0.0
    %v2191 = vmax.f32 %v1273, 0.0
    %v2192 = vmax.f32 %v1540, 0.0
    %v2193 = vmax.f32 %v1807, 0.0
    %v2194 = vmax.f32 %v2074, 0.0
    %v2195 = vmax.f32 %v1276, 0.0
    %v2196 = vmax.f32 %v1543, 0.0
    %v2197 = vmax.f32 %v1810, 0.0
    %v2198 = vmax.f32 %v2077, 0.0
    %v2199 = vmax.f32 %v1278, 0.0
    %v2200 = vmax.f32 %v1545, 0.0
    %v2201 = vmax.f32 %v1812, 0.0
    %v2202 = vmax.f32 %v2079, 0.0
    %v2203 = vmax.f32 %v1281, 0.0
    %v2204 = vmax.f32 %v1548, 0.0
    %v2205 = vmax.f32 %v1815, 0.0
    %v2206 = vmax.f32 %v2082, 0.0
    %v2207 = vmax.f32 %v1283, 0.0
    %v2208 = vmax.f32 %v1550, 0.0
    %v2209 = vmax.f32 %v1817, 0.0
    %v2210 = vmax.f32 %v2084, 0.0
    %v2211 = vmax.f32 %v1286, 0.0
    %v2212 = vmax.f32 %v1553, 0.0
    %v2213 = vmax.f32 %v1820, 0.0
    %v2214 = vmax.f32 %v2087, 0.0
    %v2215 = vmax.f32 %v1288, 0.0
    %v2216 = vmax.f32 %v1555, 0.0
    %v2217 = vmax.f32 %v1822, 0.0
    %v2218 = vmax.f32 %v2089, 0.0
    %v2219 = vmax.f32 %v2091, %v2093
    %v2220 = vmax.f32 %v2092, %v2094
    %v2221 = vmax.f32 %v2095, %v2097
    %v2222 = vmax.f32 %v2096, %v2098
    %v2223 = vmax.f32 %v2099, %v2101
    %v2224 = vmax.f32 %v2100, %v2102
    %v2225 = vmax.f32 %v2103, %v2105
    %v2226 = vmax.f32 %v2104, %v2106
    %v2227 = vmax.f32 %v2107, %v2109
    %v2228 = vmax.f32 %v2108, %v2110
    %v2229 = vmax.f32 %v2111, %v2113
    %v2230 = vmax.f32 %v2112, %v2114
    %v2231 = vmax.f32 %v2115, %v2117
    %v2232 = vmax.f32 %v2116, %v2118
    %v2233 = vmax.f32 %v2119, %v2121
    %v2234 = vmax.f32 %v2120, %v2122
    %v2235 = vmax.f32 %v2123, %v2125
    %v2236 = vmax.f32 %v2124, %v2126
    %v2237 = vmax.f32 %v2127, %v2129
    %v2238 = vmax.f32 %v2128, %v2130
    %v2239 = vmax.f32 %v2131, %v2133
    %v2240 = vmax.f32 %v2132, %v2134
    %v2241 = vmax.f32 %v2135, %v2137
    %v2242 = vmax.f32 %v2136, %v2138
    %v2243 = vmax.f32 %v2139, %v2141
    %v2244 = vmax.f32 %v2140, %v2142
    %v2245 = vmax.f32 %v2143, %v2145
    %v2246 = vmax.f32 %v2144, %v2146
    %v2247 = vmax.f32 %v2147, %v2149
    %v2248 = vmax.f32 %v2148, %v2150
    %v2249 = vmax.f32 %v2151, %v2153
    %v2250 = vmax.f32 %v2152, %v2154
    %v2251 = vmax.f32 %v2155, %v2157
    %v2252 = vmax.f32 %v2156, %v2158
    %v2253 = vmax.f32 %v2159, %v2161
    %v2254 = vmax.f32 %v2160, %v2162
    %v2255 = vmax.f32 %v2163, %v2165
    %v2256 = vmax.f32 %v2164, %v2166
    %v2257 = vmax.f32 %v2167, %v2169
    %v2258 = vmax.f32 %v2168, %v2170
    %v2259 = vmax.f32 %v2171, %v2173
    %v2260 = vmax.f32 %v2172, %v2174
    %v2261 = vmax.f32 %v2175, %v2177
    %v2262 = vmax.f32 %v2176, %v2178
    %v2263 = vmax.f32 %v2179, %v2181
    %v2264 = vmax.f32 %v2180, %v2182
    %v2265 = vmax.f32 %v2183, %v2185
    %v2266 = vmax.f32 %v2184, %v2186
    %v2267 = vmax.f32 %v2187, %v2189
    %v2268 = vmax.f32 %v2188, %v2190
    %v2269 = vmax.f32 %v2191, %v2193
    %v2270 = vmax.f32 %v2192, %v2194
    %v2271 = vmax.f32 %v2195, %v2197
    %v2272 = vmax.f32 %v2196, %v2198
    %v2273 = vmax.f32 %v2199, %v2201
    %v2274 = vmax.f32 %v2200, %v2202
    %v2275 = vmax.f32 %v2203, %v2205
    %v2276 = vmax.f32 %v2204, %v2206
    %v2277 = vmax.f32 %v2207, %v2209
    %v2278 = vmax.f32 %v2208, %v2210
    %v2279 = vmax.f32 %v2211, %v2213
    %v2280 = vmax.f32 %v2212, %v2214
    %v2281 = vmax.f32 %v2215, %v2217
    %v2282 = vmax.f32 %v2216, %v2218
    %v2347 = vrot.slane %v2220, 6
    %v2348 = vrot.slane %v2222, 6
    %v2349 = vrot.slane %v2224, 6
    %v2350 = vrot.slane %v2226, 6
    %v2351 = vrot.slane %v2228, 6
    %v2352 = vrot.slane %v2230, 6
    %v2353 = vrot.slane %v2232, 6
    %v2354 = vrot.slane %v2234, 6
    %v2355 = vrot.slane %v2236, 6
    %v2356 = vrot.slane %v2238, 6
    %v2357 = vrot.slane %v2240, 6
    %v2358 = vrot.slane %v2242, 6
    %v2359 = vrot.slane %v2244, 6
    %v2360 = vrot.slane %v2246, 6
    %v2361 = vrot.slane %v2248, 6
    %v2362 = vrot.slane %v2250, 6
    %v2363 = vrot.slane %v2252, 6
    %v2364 = vrot.slane %v2254, 6
    %v2365 = vrot.slane %v2256, 6
    %v2366 = vrot.slane %v2258, 6
    %v2367 = vrot.slane %v2260, 6
    %v2368 = vrot.slane %v2262, 6
    %v2369 = vrot.slane %v2264, 6
    %v2370 = vrot.slane %v2266, 6
    %v2371 = vrot.slane %v2268, 6
    %v2372 = vrot.slane %v2270, 6
    %v2373 = vrot.slane %v2272, 6
    %v2374 = vrot.slane %v2274, 6
    %v2375 = vrot.slane %v2276, 6
    %v2376 = vrot.slane %v2278, 6
    %v2377 = vrot.slane %v2280, 6
    %v2378 = vrot.slane %v2282, 6
    %vm2379 = vcmask 1041408
    %v2380 = vsel %vm2379, %v2219, %v2347
    %vm2381 = vcmask 1043458
    %v2382 = vsel %vm2381, %v2219, %v2347
    %v2383 = vrot.slane %v2382, 2
    %vm2384 = vcmask 1045508
    %v2385 = vsel %vm2384, %v2219, %v2347
    %v2386 = vrot.slane %v2385, 4
    %vm2387 = vcmask 1045504
    %v2388 = vsel %vm2387, %v2347, %v2219
    %v2389 = vrot.slane %v2388, 6
    %v2390 = vsel %vm2379, %v2221, %v2348
    %v2391 = vsel %vm2381, %v2221, %v2348
    %v2392 = vrot.slane %v2391, 2
    %v2393 = vsel %vm2384, %v2221, %v2348
    %v2394 = vrot.slane %v2393, 4
    %v2395 = vsel %vm2387, %v2348, %v2221
    %v2396 = vrot.slane %v2395, 6
    %v2397 = vsel %vm2379, %v2223, %v2349
    %v2398 = vsel %vm2381, %v2223, %v2349
    %v2399 = vrot.slane %v2398, 2
    %v2400 = vsel %vm2384, %v2223, %v2349
    %v2401 = vrot.slane %v2400, 4
    %v2402 = vsel %vm2387, %v2349, %v2223
    %v2403 = vrot.slane %v2402, 6
    %v2404 = vsel %vm2379, %v2225, %v2350
    %v2405 = vsel %vm2381, %v2225, %v2350
    %v2406 = vrot.slane %v2405, 2
    %v2407 = vsel %vm2384, %v2225, %v2350
    %v2408 = vrot.slane %v2407, 4
    %v2409 = vsel %vm2387, %v2350, %v2225
    %v2410 = vrot.slane %v2409, 6
    %v2411 = vsel %vm2379, %v2227, %v2351
    %v2412 = vsel %vm2381, %v2227, %v2351
    %v2413 = vrot.slane %v2412, 2
    %v2414 = vsel %vm2384, %v2227, %v2351
    %v2415 = vrot.slane %v2414, 4
    %v2416 = vsel %vm2387, %v2351, %v2227
    %v2417 = vrot.slane %v2416, 6
    %v2418 = vsel %vm2379, %v2229, %v2352
    %v2419 = vsel %vm2381, %v2229, %v2352
    %v2420 = vrot.slane %v2419, 2
    %v2421 = vsel %vm2384, %v2229, %v2352
    %v2422 = vrot.slane %v2421, 4
    %v2423 = vsel %vm2387, %v2352, %v2229
    %v2424 = vrot.slane %v2423, 6
    %v2425 = vsel %vm2379, %v2231, %v2353
    %v2426 = vsel %vm2381, %v2231, %v2353
    %v2427 = vrot.slane %v2426, 2
    %v2428 = vsel %vm2384, %v2231, %v2353
    %v2429 = vrot.slane %v2428, 4
    %v2430 = vsel %vm2387, %v2353, %v2231
    %v2431 = vrot.slane %v2430, 6
    %v2432 = vsel %vm2379, %v2233, %v2354
    %v2433 = vsel %vm2381, %v2233, %v2354
    %v2434 = vrot.slane %v2433, 2
    %v2435 = vsel %vm2384, %v2233, %v2354
    %v2436 = vrot.slane %v2435, 4
    %v2437 = vsel %vm2387, %v2354, %v2233
    %v2438 = vrot.slane %v2437, 6
    %v2439 = vsel %vm2379, %v2235, %v2355
    %v2440 = vsel %vm2381, %v2235, %v2355
    %v2441 = vrot.slane %v2440, 2
    %v2442 = vsel %vm2384, %v2235, %v2355
    %v2443 = vrot.slane %v2442, 4
    %v2444 = vsel %vm2387, %v2355, %v2235
    %v2445 = vrot.slane %v2444, 6
    %v2446 = vsel %vm2379, %v2237, %v2356
    %v2447 = vsel %vm2381, %v2237, %v2356
    %v2448 = vrot.slane %v2447, 2
    %v2449 = vsel %vm2384, %v2237, %v2356
    %v2450 = vrot.slane %v2449, 4
    %v2451 = vsel %vm2387, %v2356, %v2237
    %v2452 = vrot.slane %v2451, 6
    %v2453 = vsel %vm2379, %v2239, %v2357
    %v2454 = vsel %vm2381, %v2239, %v2357
    %v2455 = vrot.slane %v2454, 2
    %v2456 = vsel %vm2384, %v2239, %v2357
    %v2457 = vrot.slane %v2456, 4
    %v2458 = vsel %vm2387, %v2357, %v2239
    %v2459 = vrot.slane %v2458, 6
    %v2460 = vsel %vm2379, %v2241, %v2358
    %v2461 = vsel %vm2381, %v2241, %v2358
    %v2462 = vrot.slane %v2461, 2
    %v2463 = vsel %vm2384, %v2241, %v2358
    %v2464 = vrot.slane %v2463, 4
    %v2465 = vsel %vm2387, %v2358, %v2241
    %v2466 = vrot.slane %v2465, 6
    %v2467 = vsel %vm2379, %v2243, %v2359
    %v2468 = vsel %vm2381, %v2243, %v2359
    %v2469 = vrot.slane %v2468, 2
    %v2470 = vsel %vm2384, %v2243, %v2359
    %v2471 = vrot.slane %v2470, 4
    %v2472 = vsel %vm2387, %v2359, %v2243
    %v2473 = vrot.slane %v2472, 6
    %v2474 = vsel %vm2379, %v2245, %v2360
    %v2475 = vsel %vm2381, %v2245, %v2360
    %v2476 = vrot.slane %v2475, 2
    %v2477 = vsel %vm2384, %v2245, %v2360
    %v2478 = vrot.slane %v2477, 4
    %v2479 = vsel %vm2387, %v2360, %v2245
    %v2480 = vrot.slane %v2479, 6
    %v2481 = vsel %vm2379, %v2247, %v2361
    %v2482 = vsel %vm2381, %v2247, %v2361
    %v2483 = vrot.slane %v2482, 2
    %v2484 = vsel %vm2384, %v2247, %v2361
    %v2485 = vrot.slane %v2484, 4
    %v2486 = vsel %vm2387, %v2361, %v2247
    %v2487 = vrot.slane %v2486, 6
    %v2488 = vsel %vm2379, %v2249, %v2362
    %v2489 = vsel %vm2381, %v2249, %v2362
    %v2490 = vrot.slane %v2489, 2
    %v2491 = vsel %vm2384, %v2249, %v2362
    %v2492 = vrot.slane %v2491, 4
    %v2493 = vsel %vm2387, %v2362, %v2249
    %v2494 = vrot.slane %v2493, 6
    %v2495 = vsel %vm2379, %v2251, %v2363
    %v2496 = vsel %vm2381, %v2251, %v2363
    %v2497 = vrot.slane %v2496, 2
    %v2498 = vsel %vm2384, %v2251, %v2363
    %v2499 = vrot.slane %v2498, 4
    %v2500 = vsel %vm2387, %v2363, %v2251
    %v2501 = vrot.slane %v2500, 6
    %v2502 = vsel %vm2379, %v2253, %v2364
    %v2503 = vsel %vm2381, %v2253, %v2364
    %v2504 = vrot.slane %v2503, 2
    %v2505 = vsel %vm2384, %v2253, %v2364
    %v2506 = vrot.slane %v2505, 4
    %v2507 = vsel %vm2387, %v2364, %v2253
    %v2508 = vrot.slane %v2507, 6
    %v2509 = vsel %vm2379, %v2255, %v2365
    %v2510 = vsel %vm2381, %v2255, %v2365
    %v2511 = vrot.slane %v2510, 2
    %v2512 = vsel %vm2384, %v2255, %v2365
    %v2513 = vrot.slane %v2512, 4
    %v2514 = vsel %vm2387, %v2365, %v2255
    %v2515 = vrot.slane %v2514, 6
    %v2516 = vsel %vm2379, %v2257, %v2366
    %v2517 = vsel %vm2381, %v2257, %v2366
    %v2518 = vrot.slane %v2517, 2
    %v2519 = vsel %vm2384, %v2257, %v2366
    %v2520 = vrot.slane %v2519, 4
    %v2521 = vsel %vm2387, %v2366, %v2257
    %v2522 = vrot.slane %v2521, 6
    %v2523 = vsel %vm2379, %v2259, %v2367
    %v2524 = vsel %vm2381, %v2259, %v2367
    %v2525 = vrot.slane %v2524, 2
    %v2526 = vsel %vm2384, %v2259, %v2367
    %v2527 = vrot.slane %v2526, 4
    %v2528 = vsel %vm2387, %v2367, %v2259
    %v2529 = vrot.slane %v2528, 6
    %v2530 = vsel %vm2379, %v2261, %v2368
    %v2531 = vsel %vm2381, %v2261, %v2368
    %v2532 = vrot.slane %v2531, 2
    %v2533 = vsel %vm2384, %v2261, %v2368
    %v2534 = vrot.slane %v2533, 4
    %v2535 = vsel %vm2387, %v2368, %v2261
    %v2536 = vrot.slane %v2535, 6
    %v2537 = vsel %vm2379, %v2263, %v2369
    %v2538 = vsel %vm2381, %v2263, %v2369
    %v2539 = vrot.slane %v2538, 2
    %v2540 = vsel %vm2384, %v2263, %v2369
    %v2541 = vrot.slane %v2540, 4
    %v2542 = vsel %vm2387, %v2369, %v2263
    %v2543 = vrot.slane %v2542, 6
    %v2544 = vsel %vm2379, %v2265, %v2370
    %v2545 = vsel %vm2381, %v2265, %v2370
    %v2546 = vrot.slane %v2545, 2
    %v2547 = vsel %vm2384, %v2265, %v2370
    %v2548 = vrot.slane %v2547, 4
    %v2549 = vsel %vm2387, %v2370, %v2265
    %v2550 = vrot.slane %v2549, 6
    %v2551 = vsel %vm2379, %v2267, %v2371
    %v2552 = vsel %vm2381, %v2267, %v2371
    %v2553 = vrot.slane %v2552, 2
    %v2554 = vsel %vm2384, %v2267, %v2371
    %v2555 = vrot.slane %v2554, 4
    %v2556 = vsel %vm2387, %v2371, %v2267
    %v2557 = vrot.slane %v2556, 6
    %v2558 = vsel %vm2379, %v2269, %v2372
    %v2559 = vsel %vm2381, %v2269, %v2372
    %v2560 = vrot.slane %v2559, 2
    %v2561 = vsel %vm2384, %v2269, %v2372
    %v2562 = vrot.slane %v2561, 4
    %v2563 = vsel %vm2387, %v2372, %v2269
    %v2564 = vrot.slane %v2563, 6
    %v2565 = vsel %vm2379, %v2271, %v2373
    %v2566 = vsel %vm2381, %v2271, %v2373
    %v2567 = vrot.slane %v2566, 2
    %v2568 = vsel %vm2384, %v2271, %v2373
    %v2569 = vrot.slane %v2568, 4
    %v2570 = vsel %vm2387, %v2373, %v2271
    %v2571 = vrot.slane %v2570, 6
    %v2572 = vsel %vm2379, %v2273, %v2374
    %v2573 = vsel %vm2381, %v2273, %v2374
    %v2574 = vrot.slane %v2573, 2
    %v2575 = vsel %vm2384, %v2273, %v2374
    %v2576 = vrot.slane %v2575, 4
    %v2577 = vsel %vm2387, %v2374, %v2273
    %v2578 = vrot.slane %v2577, 6
    %v2579 = vsel %vm2379, %v2275, %v2375
    %v2580 = vsel %vm2381, %v2275, %v2375
    %v2581 = vrot.slane %v2580, 2
    %v2582 = vsel %vm2384, %v2275, %v2375
    %v2583 = vrot.slane %v2582, 4
    %v2584 = vsel %vm2387, %v2375, %v2275
    %v2585 = vrot.slane %v2584, 6
    %v2586 = vsel %vm2379, %v2277, %v2376
    %v2587 = vsel %vm2381, %v2277, %v2376
    %v2588 = vrot.slane %v2587, 2
    %v2589 = vsel %vm2384, %v2277, %v2376
    %v2590 = vrot.slane %v2589, 4
    %v2591 = vsel %vm2387, %v2376, %v2277
    %v2592 = vrot.slane %v2591, 6
    %v2593 = vsel %vm2379, %v2279, %v2377
    %v2594 = vsel %vm2381, %v2279, %v2377
    %v2595 = vrot.slane %v2594, 2
    %v2596 = vsel %vm2384, %v2279, %v2377
    %v2597 = vrot.slane %v2596, 4
    %v2598 = vsel %vm2387, %v2377, %v2279
    %v2599 = vrot.slane %v2598, 6
    %v2600 = vsel %vm2379, %v2281, %v2378
    %v2601 = vsel %vm2381, %v2281, %v2378
    %v2602 = vrot.slane %v2601, 2
    %v2603 = vsel %vm2384, %v2281, %v2378
    %v2604 = vrot.slane %v2603, 4
    %v2605 = vsel %vm2387, %v2378, %v2281
    %v2606 = vrot.slane %v2605, 6
    %v2735 = vrot.slane %v2380, 7
    %v2736 = vrot.slane %v2735, 2
    %v2737 = vrot.slane %v2383, 7
    %v2738 = vrot.slane %v2737, 2
    %v2739 = vrot.slane %v2386, 7
    %v2740 = vrot.slane %v2739, 2
    %v2741 = vrot.slane %v2389, 7
    %v2742 = vrot.slane %v2741, 2
    %v2743 = vrot.slane %v2390, 7
    %v2744 = vrot.slane %v2743, 2
    %v2745 = vrot.slane %v2392, 7
    %v2746 = vrot.slane %v2745, 2
    %v2747 = vrot.slane %v2394, 7
    %v2748 = vrot.slane %v2747, 2
    %v2749 = vrot.slane %v2396, 7
    %v2750 = vrot.slane %v2749, 2
    %v2751 = vrot.slane %v2397, 7
    %v2752 = vrot.slane %v2751, 2
    %v2753 = vrot.slane %v2399, 7
    %v2754 = vrot.slane %v2753, 2
    %v2755 = vrot.slane %v2401, 7
    %v2756 = vrot.slane %v2755, 2
    %v2757 = vrot.slane %v2403, 7
    %v2758 = vrot.slane %v2757, 2
    %v2759 = vrot.slane %v2404, 7
    %v2760 = vrot.slane %v2759, 2
    %v2761 = vrot.slane %v2406, 7
    %v2762 = vrot.slane %v2761, 2
    %v2763 = vrot.slane %v2408, 7
    %v2764 = vrot.slane %v2763, 2
    %v2765 = vrot.slane %v2410, 7
    %v2766 = vrot.slane %v2765, 2
    %v2767 = vrot.slane %v2411, 7
    %v2768 = vrot.slane %v2767, 2
    %v2769 = vrot.slane %v2413, 7
    %v2770 = vrot.slane %v2769, 2
    %v2771 = vrot.slane %v2415, 7
    %v2772 = vrot.slane %v2771, 2
    %v2773 = vrot.slane %v2417, 7
    %v2774 = vrot.slane %v2773, 2
    %v2775 = vrot.slane %v2418, 7
    %v2776 = vrot.slane %v2775, 2
    %v2777 = vrot.slane %v2420, 7
    %v2778 = vrot.slane %v2777, 2
    %v2779 = vrot.slane %v2422, 7
    %v2780 = vrot.slane %v2779, 2
    %v2781 = vrot.slane %v2424, 7
    %v2782 = vrot.slane %v2781, 2
    %v2783 = vrot.slane %v2425, 7
    %v2784 = vrot.slane %v2783, 2
    %v2785 = vrot.slane %v2427, 7
    %v2786 = vrot.slane %v2785, 2
    %v2787 = vrot.slane %v2429, 7
    %v2788 = vrot.slane %v2787, 2
    %v2789 = vrot.slane %v2431, 7
    %v2790 = vrot.slane %v2789, 2
    %v2791 = vrot.slane %v2432, 7
    %v2792 = vrot.slane %v2791, 2
    %v2793 = vrot.slane %v2434, 7
    %v2794 = vrot.slane %v2793, 2
    %v2795 = vrot.slane %v2436, 7
    %v2796 = vrot.slane %v2795, 2
    %v2797 = vrot.slane %v2438, 7
    %v2798 = vrot.slane %v2797, 2
    %v2799 = vrot.slane %v2439, 7
    %v2800 = vrot.slane %v2799, 2
    %v2801 = vrot.slane %v2441, 7
    %v2802 = vrot.slane %v2801, 2
    %v2803 = vrot.slane %v2443, 7
    %v2804 = vrot.slane %v2803, 2
    %v2805 = vrot.slane %v2445, 7
    %v2806 = vrot.slane %v2805, 2
    %v2807 = vrot.slane %v2446, 7
    %v2808 = vrot.slane %v2807, 2
    %v2809 = vrot.slane %v2448, 7
    %v2810 = vrot.slane %v2809, 2
    %v2811 = vrot.slane %v2450, 7
    %v2812 = vrot.slane %v2811, 2
    %v2813 = vrot.slane %v2452, 7
    %v2814 = vrot.slane %v2813, 2
    %v2815 = vrot.slane %v2453, 7
    %v2816 = vrot.slane %v2815, 2
    %v2817 = vrot.slane %v2455, 7
    %v2818 = vrot.slane %v2817, 2
    %v2819 = vrot.slane %v2457, 7
    %v2820 = vrot.slane %v2819, 2
    %v2821 = vrot.slane %v2459, 7
    %v2822 = vrot.slane %v2821, 2
    %v2823 = vrot.slane %v2460, 7
    %v2824 = vrot.slane %v2823, 2
    %v2825 = vrot.slane %v2462, 7
    %v2826 = vrot.slane %v2825, 2
    %v2827 = vrot.slane %v2464, 7
    %v2828 = vrot.slane %v2827, 2
    %v2829 = vrot.slane %v2466, 7
    %v2830 = vrot.slane %v2829, 2
    %v2831 = vrot.slane %v2467, 7
    %v2832 = vrot.slane %v2831, 2
    %v2833 = vrot.slane %v2469, 7
    %v2834 = vrot.slane %v2833, 2
    %v2835 = vrot.slane %v2471, 7
    %v2836 = vrot.slane %v2835, 2
    %v2837 = vrot.slane %v2473, 7
    %v2838 = vrot.slane %v2837, 2
    %v2839 = vrot.slane %v2474, 7
    %v2840 = vrot.slane %v2839, 2
    %v2841 = vrot.slane %v2476, 7
    %v2842 = vrot.slane %v2841, 2
    %v2843 = vrot.slane %v2478, 7
    %v2844 = vrot.slane %v2843, 2
    %v2845 = vrot.slane %v2480, 7
    %v2846 = vrot.slane %v2845, 2
    %v2847 = vrot.slane %v2481, 7
    %v2848 = vrot.slane %v2847, 2
    %v2849 = vrot.slane %v2483, 7
    %v2850 = vrot.slane %v2849, 2
    %v2851 = vrot.slane %v2485, 7
    %v2852 = vrot.slane %v2851, 2
    %v2853 = vrot.slane %v2487, 7
    %v2854 = vrot.slane %v2853, 2
    %v2855 = vrot.slane %v2488, 7
    %v2856 = vrot.slane %v2855, 2
    %v2857 = vrot.slane %v2490, 7
    %v2858 = vrot.slane %v2857, 2
    %v2859 = vrot.slane %v2492, 7
    %v2860 = vrot.slane %v2859, 2
    %v2861 = vrot.slane %v2494, 7
    %v2862 = vrot.slane %v2861, 2
    %v2863 = vrot.slane %v2495, 7
    %v2864 = vrot.slane %v2863, 2
    %v2865 = vrot.slane %v2497, 7
    %v2866 = vrot.slane %v2865, 2
    %v2867 = vrot.slane %v2499, 7
    %v2868 = vrot.slane %v2867, 2
    %v2869 = vrot.slane %v2501, 7
    %v2870 = vrot.slane %v2869, 2
    %v2871 = vrot.slane %v2502, 7
    %v2872 = vrot.slane %v2871, 2
    %v2873 = vrot.slane %v2504, 7
    %v2874 = vrot.slane %v2873, 2
    %v2875 = vrot.slane %v2506, 7
    %v2876 = vrot.slane %v2875, 2
    %v2877 = vrot.slane %v2508, 7
    %v2878 = vrot.slane %v2877, 2
    %v2879 = vrot.slane %v2509, 7
    %v2880 = vrot.slane %v2879, 2
    %v2881 = vrot.slane %v2511, 7
    %v2882 = vrot.slane %v2881, 2
    %v2883 = vrot.slane %v2513, 7
    %v2884 = vrot.slane %v2883, 2
    %v2885 = vrot.slane %v2515, 7
    %v2886 = vrot.slane %v2885, 2
    %v2887 = vrot.slane %v2516, 7
    %v2888 = vrot.slane %v2887, 2
    %v2889 = vrot.slane %v2518, 7
    %v2890 = vrot.slane %v2889, 2
    %v2891 = vrot.slane %v2520, 7
    %v2892 = vrot.slane %v2891, 2
    %v2893 = vrot.slane %v2522, 7
    %v2894 = vrot.slane %v2893, 2
    %v2895 = vrot.slane %v2523, 7
    %v2896 = vrot.slane %v2895, 2
    %v2897 = vrot.slane %v2525, 7
    %v2898 = vrot.slane %v2897, 2
    %v2899 = vrot.slane %v2527, 7
    %v2900 = vrot.slane %v2899, 2
    %v2901 = vrot.slane %v2529, 7
    %v2902 = vrot.slane %v2901, 2
    %v2903 = vrot.slane %v2530, 7
    %v2904 = vrot.slane %v2903, 2
    %v2905 = vrot.slane %v2532, 7
    %v2906 = vrot.slane %v2905, 2
    %v2907 = vrot.slane %v2534, 7
    %v2908 = vrot.slane %v2907, 2
    %v2909 = vrot.slane %v2536, 7
    %v2910 = vrot.slane %v2909, 2
    %v2911 = vrot.slane %v2537, 7
    %v2912 = vrot.slane %v2911, 2
    %v2913 = vrot.slane %v2539, 7
    %v2914 = vrot.slane %v2913, 2
    %v2915 = vrot.slane %v2541, 7
    %v2916 = vrot.slane %v2915, 2
    %v2917 = vrot.slane %v2543, 7
    %v2918 = vrot.slane %v2917, 2
    %v2919 = vrot.slane %v2544, 7
    %v2920 = vrot.slane %v2919, 2
    %v2921 = vrot.slane %v2546, 7
    %v2922 = vrot.slane %v2921, 2
    %v2923 = vrot.slane %v2548, 7
    %v2924 = vrot.slane %v2923, 2
    %v2925 = vrot.slane %v2550, 7
    %v2926 = vrot.slane %v2925, 2
    %v2927 = vrot.slane %v2551, 7
    %v2928 = vrot.slane %v2927, 2
    %v2929 = vrot.slane %v2553, 7
    %v2930 = vrot.slane %v2929, 2
    %v2931 = vrot.slane %v2555, 7
    %v2932 = vrot.slane %v2931, 2
    %v2933 = vrot.slane %v2557, 7
    %v2934 = vrot.slane %v2933, 2
    %v2935 = vrot.slane %v2558, 7
    %v2936 = vrot.slane %v2935, 2
    %v2937 = vrot.slane %v2560, 7
    %v2938 = vrot.slane %v2937, 2
    %v2939 = vrot.slane %v2562, 7
    %v2940 = vrot.slane %v2939, 2
    %v2941 = vrot.slane %v2564, 7
    %v2942 = vrot.slane %v2941, 2
    %v2943 = vrot.slane %v2565, 7
    %v2944 = vrot.slane %v2943, 2
    %v2945 = vrot.slane %v2567, 7
    %v2946 = vrot.slane %v2945, 2
    %v2947 = vrot.slane %v2569, 7
    %v2948 = vrot.slane %v2947, 2
    %v2949 = vrot.slane %v2571, 7
    %v2950 = vrot.slane %v2949, 2
    %v2951 = vrot.slane %v2572, 7
    %v2952 = vrot.slane %v2951, 2
    %v2953 = vrot.slane %v2574, 7
    %v2954 = vrot.slane %v2953, 2
    %v2955 = vrot.slane %v2576, 7
    %v2956 = vrot.slane %v2955, 2
    %v2957 = vrot.slane %v2578, 7
    %v2958 = vrot.slane %v2957, 2
    %v2959 = vrot.slane %v2579, 7
    %v2960 = vrot.slane %v2959, 2
    %v2961 = vrot.slane %v2581, 7
    %v2962 = vrot.slane %v2961, 2
    %v2963 = vrot.slane %v2583, 7
    %v2964 = vrot.slane %v2963, 2
    %v2965 = vrot.slane %v2585, 7
    %v2966 = vrot.slane %v2965, 2
    %v2967 = vrot.slane %v2586, 7
    %v2968 = vrot.slane %v2967, 2
    %v2969 = vrot.slane %v2588, 7
    %v2970 = vrot.slane %v2969, 2
    %v2971 = vrot.slane %v2590, 7
    %v2972 = vrot.slane %v2971, 2
    %v2973 = vrot.slane %v2592, 7
    %v2974 = vrot.slane %v2973, 2
    %v2975 = vrot.slane %v2593, 7
    %v2976 = vrot.slane %v2975, 2
    %v2977 = vrot.slane %v2595, 7
    %v2978 = vrot.slane %v2977, 2
    %v2979 = vrot.slane %v2597, 7
    %v2980 = vrot.slane %v2979, 2
    %v2981 = vrot.slane %v2599, 7
    %v2982 = vrot.slane %v2981, 2
    %v2983 = vrot.slane %v2600, 7
    %v2984 = vrot.slane %v2983, 2
    %v2985 = vrot.slane %v2602, 7
    %v2986 = vrot.slane %v2985, 2
    %v2987 = vrot.slane %v2604, 7
    %v2988 = vrot.slane %v2987, 2
    %v2989 = vrot.slane %v2606, 7
    %v2990 = vrot.slane %v2989, 2
    %v3119 = vmax.f32 %v2380, %v2736
    %v3120 = vmax.f32 %v2383, %v2738
    %v3121 = vmax.f32 %v2386, %v2740
    %v3122 = vmax.f32 %v2389, %v2742
    %v3123 = vmax.f32 %v2390, %v2744
    %v3124 = vmax.f32 %v2392, %v2746
    %v3125 = vmax.f32 %v2394, %v2748
    %v3126 = vmax.f32 %v2396, %v2750
    %v3127 = vmax.f32 %v2397, %v2752
    %v3128 = vmax.f32 %v2399, %v2754
    %v3129 = vmax.f32 %v2401, %v2756
    %v3130 = vmax.f32 %v2403, %v2758
    %v3131 = vmax.f32 %v2404, %v2760
    %v3132 = vmax.f32 %v2406, %v2762
    %v3133 = vmax.f32 %v2408, %v2764
    %v3134 = vmax.f32 %v2410, %v2766
    %v3135 = vmax.f32 %v2411, %v2768
    %v3136 = vmax.f32 %v2413, %v2770
    %v3137 = vmax.f32 %v2415, %v2772
    %v3138 = vmax.f32 %v2417, %v2774
    %v3139 = vmax.f32 %v2418, %v2776
    %v3140 = vmax.f32 %v2420, %v2778
    %v3141 = vmax.f32 %v2422, %v2780
    %v3142 = vmax.f32 %v2424, %v2782
    %v3143 = vmax.f32 %v2425, %v2784
    %v3144 = vmax.f32 %v2427, %v2786
    %v3145 = vmax.f32 %v2429, %v2788
    %v3146 = vmax.f32 %v2431, %v2790
    %v3147 = vmax.f32 %v2432, %v2792
    %v3148 = vmax.f32 %v2434, %v2794
    %v3149 = vmax.f32 %v2436, %v2796
    %v3150 = vmax.f32 %v2438, %v2798
    %v3151 = vmax.f32 %v2439, %v2800
    %v3152 = vmax.f32 %v2441, %v2802
    %v3153 = vmax.f32 %v2443, %v2804
    %v3154 = vmax.f32 %v2445, %v2806
    %v3155 = vmax.f32 %v2446, %v2808
    %v3156 = vmax.f32 %v2448, %v2810
    %v3157 = vmax.f32 %v2450, %v2812
    %v3158 = vmax.f32 %v2452, %v2814
    %v3159 = vmax.f32 %v2453, %v2816
    %v3160 = vmax.f32 %v2455, %v2818
    %v3161 = vmax.f32 %v2457, %v2820
    %v3162 = vmax.f32 %v2459, %v2822
    %v3163 = vmax.f32 %v2460, %v2824
    %v3164 = vmax.f32 %v2462, %v2826
    %v3165 = vmax.f32 %v2464, %v2828
    %v3166 = vmax.f32 %v2466, %v2830
    %v3167 = vmax.f32 %v2467, %v2832
    %v3168 = vmax.f32 %v2469, %v2834
    %v3169 = vmax.f32 %v2471, %v2836
    %v3170 = vmax.f32 %v2473, %v2838
    %v3171 = vmax.f32 %v2474, %v2840
    %v3172 = vmax.f32 %v2476, %v2842
    %v3173 = vmax.f32 %v2478, %v2844
    %v3174 = vmax.f32 %v2480, %v2846
    %v3175 = vmax.f32 %v2481, %v2848
    %v3176 = vmax.f32 %v2483, %v2850
    %v3177 = vmax.f32 %v2485, %v2852
    %v3178 = vmax.f32 %v2487, %v2854
    %v3179 = vmax.f32 %v2488, %v2856
    %v3180 = vmax.f32 %v2490, %v2858
    %v3181 = vmax.f32 %v2492, %v2860
    %v3182 = vmax.f32 %v2494, %v2862
    %v3183 = vmax.f32 %v2495, %v2864
    %v3184 = vmax.f32 %v2497, %v2866
    %v3185 = vmax.f32 %v2499, %v2868
    %v3186 = vmax.f32 %v2501, %v2870
    %v3187 = vmax.f32 %v2502, %v2872
    %v3188 = vmax.f32 %v2504, %v2874
    %v3189 = vmax.f32 %v2506, %v2876
    %v3190 = vmax.f32 %v2508, %v2878
    %v3191 = vmax.f32 %v2509, %v2880
    %v3192 = vmax.f32 %v2511, %v2882
    %v3193 = vmax.f32 %v2513, %v2884
    %v3194 = vmax.f32 %v2515, %v2886
    %v3195 = vmax.f32 %v2516, %v2888
    %v3196 = vmax.f32 %v2518, %v2890
    %v3197 = vmax.f32 %v2520, %v2892
    %v3198 = vmax.f32 %v2522, %v2894
    %v3199 = vmax.f32 %v2523, %v2896
    %v3200 = vmax.f32 %v2525, %v2898
    %v3201 = vmax.f32 %v2527, %v2900
    %v3202 = vmax.f32 %v2529, %v2902
    %v3203 = vmax.f32 %v2530, %v2904
    %v3204 = vmax.f32 %v2532, %v2906
    %v3205 = vmax.f32 %v2534, %v2908
    %v3206 = vmax.f32 %v2536, %v2910
    %v3207 = vmax.f32 %v2537, %v2912
    %v3208 = vmax.f32 %v2539, %v2914
    %v3209 = vmax.f32 %v2541, %v2916
    %v3210 = vmax.f32 %v2543, %v2918
    %v3211 = vmax.f32 %v2544, %v2920
    %v3212 = vmax.f32 %v2546, %v2922
    %v3213 = vmax.f32 %v2548, %v2924
    %v3214 = vmax.f32 %v2550, %v2926
    %v3215 = vmax.f32 %v2551, %v2928
    %v3216 = vmax.f32 %v2553, %v2930
    %v3217 = vmax.f32 %v2555, %v2932
    %v3218 = vmax.f32 %v2557, %v2934
    %v3219 = vmax.f32 %v2558, %v2936
    %v3220 = vmax.f32 %v2560, %v2938
    %v3221 = vmax.f32 %v2562, %v2940
    %v3222 = vmax.f32 %v2564, %v2942
    %v3223 = vmax.f32 %v2565, %v2944
    %v3224 = vmax.f32 %v2567, %v2946
    %v3225 = vmax.f32 %v2569, %v2948
    %v3226 = vmax.f32 %v2571, %v2950
    %v3227 = vmax.f32 %v2572, %v2952
    %v3228 = vmax.f32 %v2574, %v2954
    %v3229 = vmax.f32 %v2576, %v2956
    %v3230 = vmax.f32 %v2578, %v2958
    %v3231 = vmax.f32 %v2579, %v2960
    %v3232 = vmax.f32 %v2581, %v2962
    %v3233 = vmax.f32 %v2583, %v2964
    %v3234 = vmax.f32 %v2585, %v2966
    %v3235 = vmax.f32 %v2586, %v2968
    %v3236 = vmax.f32 %v2588, %v2970
    %v3237 = vmax.f32 %v2590, %v2972
    %v3238 = vmax.f32 %v2592, %v2974
    %v3239 = vmax.f32 %v2593, %v2976
    %v3240 = vmax.f32 %v2595, %v2978
    %v3241 = vmax.f32 %v2597, %v2980
    %v3242 = vmax.f32 %v2599, %v2982
    %v3243 = vmax.f32 %v2600, %v2984
    %v3244 = vmax.f32 %v2602, %v2986
    %v3245 = vmax.f32 %v2604, %v2988
    %v3246 = vmax.f32 %v2606, %v2990
    %v3375 = vperm.slane %v3119, 0
    %v3376 = vperm.slane %v3119, 2
    %v3377 = vperm.slane %v3120, 0
    %v3378 = vperm.slane %v3120, 2
    %v3379 = vperm.slane %v3121, 0
    %v3380 = vperm.slane %v3121, 2
    %v3381 = vperm.slane %v3122, 0
    %v3382 = vperm.slane %v3122, 2
    %v3383 = vperm.slane %v3123, 0
    %v3384 = vperm.slane %v3123, 2
    %v3385 = vperm.slane %v3124, 0
    %v3386 = vperm.slane %v3124, 2
    %v3387 = vperm.slane %v3125, 0
    %v3388 = vperm.slane %v3125, 2
    %v3389 = vperm.slane %v3126, 0
    %v3390 = vperm.slane %v3126, 2
    %v3391 = vperm.slane %v3127, 0
    %v3392 = vperm.slane %v3127, 2
    %v3393 = vperm.slane %v3128, 0
    %v3394 = vperm.slane %v3128, 2
    %v3395 = vperm.slane %v3129, 0
    %v3396 = vperm.slane %v3129, 2
    %v3397 = vperm.slane %v3130, 0
    %v3398 = vperm.slane %v3130, 2
    %v3399 = vperm.slane %v3131, 0
    %v3400 = vperm.slane %v3131, 2
    %v3401 = vperm.slane %v3132, 0
    %v3402 = vperm.slane %v3132, 2
    %v3403 = vperm.slane %v3133, 0
    %v3404 = vperm.slane %v3133, 2
    %v3405 = vperm.slane %v3134, 0
    %v3406 = vperm.slane %v3134, 2
    %v3407 = vperm.slane %v3135, 0
    %v3408 = vperm.slane %v3135, 2
    %v3409 = vperm.slane %v3136, 0
    %v3410 = vperm.slane %v3136, 2
    %v3411 = vperm.slane %v3137, 0
    %v3412 = vperm.slane %v3137, 2
    %v3413 = vperm.slane %v3138, 0
    %v3414 = vperm.slane %v3138, 2
    %v3415 = vperm.slane %v3139, 0
    %v3416 = vperm.slane %v3139, 2
    %v3417 = vperm.slane %v3140, 0
    %v3418 = vperm.slane %v3140, 2
    %v3419 = vperm.slane %v3141, 0
    %v3420 = vperm.slane %v3141, 2
    %v3421 = vperm.slane %v3142, 0
    %v3422 = vperm.slane %v3142, 2
    %v3423 = vperm.slane %v3143, 0
    %v3424 = vperm.slane %v3143, 2
    %v3425 = vperm.slane %v3144, 0
    %v3426 = vperm.slane %v3144, 2
    %v3427 = vperm.slane %v3145, 0
    %v3428 = vperm.slane %v3145, 2
    %v3429 = vperm.slane %v3146, 0
    %v3430 = vperm.slane %v3146, 2
    %v3431 = vperm.slane %v3147, 0
    %v3432 = vperm.slane %v3147, 2
    %v3433 = vperm.slane %v3148, 0
    %v3434 = vperm.slane %v3148, 2
    %v3435 = vperm.slane %v3149, 0
    %v3436 = vperm.slane %v3149, 2
    %v3437 = vperm.slane %v3150, 0
    %v3438 = vperm.slane %v3150, 2
    %v3439 = vperm.slane %v3151, 0
    %v3440 = vperm.slane %v3151, 2
    %v3441 = vperm.slane %v3152, 0
    %v3442 = vperm.slane %v3152, 2
    %v3443 = vperm.slane %v3153, 0
    %v3444 = vperm.slane %v3153, 2
    %v3445 = vperm.slane %v3154, 0
    %v3446 = vperm.slane %v3154, 2
    %v3447 = vperm.slane %v3155, 0
    %v3448 = vperm.slane %v3155, 2
    %v3449 = vperm.slane %v3156, 0
    %v3450 = vperm.slane %v3156, 2
    %v3451 = vperm.slane %v3157, 0
    %v3452 = vperm.slane %v3157, 2
    %v3453 = vperm.slane %v3158, 0
    %v3454 = vperm.slane %v3158, 2
    %v3455 = vperm.slane %v3159, 0
    %v3456 = vperm.slane %v3159, 2
    %v3457 = vperm.slane %v3160, 0
    %v3458 = vperm.slane %v3160, 2
    %v3459 = vperm.slane %v3161, 0
    %v3460 = vperm.slane %v3161, 2
    %v3461 = vperm.slane %v3162, 0
    %v3462 = vperm.slane %v3162, 2
    %v3463 = vperm.slane %v3163, 0
    %v3464 = vperm.slane %v3163, 2
    %v3465 = vperm.slane %v3164, 0
    %v3466 = vperm.slane %v3164, 2
    %v3467 = vperm.slane %v3165, 0
    %v3468 = vperm.slane %v3165, 2
    %v3469 = vperm.slane %v3166, 0
    %v3470 = vperm.slane %v3166, 2
    %v3471 = vperm.slane %v3167, 0
    %v3472 = vperm.slane %v3167, 2
    %v3473 = vperm.slane %v3168, 0
    %v3474 = vperm.slane %v3168, 2
    %v3475 = vperm.slane %v3169, 0
    %v3476 = vperm.slane %v3169, 2
    %v3477 = vperm.slane %v3170, 0
    %v3478 = vperm.slane %v3170, 2
    %v3479 = vperm.slane %v3171, 0
    %v3480 = vperm.slane %v3171, 2
    %v3481 = vperm.slane %v3172, 0
    %v3482 = vperm.slane %v3172, 2
    %v3483 = vperm.slane %v3173, 0
    %v3484 = vperm.slane %v3173, 2
    %v3485 = vperm.slane %v3174, 0
    %v3486 = vperm.slane %v3174, 2
    %v3487 = vperm.slane %v3175, 0
    %v3488 = vperm.slane %v3175, 2
    %v3489 = vperm.slane %v3176, 0
    %v3490 = vperm.slane %v3176, 2
    %v3491 = vperm.slane %v3177, 0
    %v3492 = vperm.slane %v3177, 2
    %v3493 = vperm.slane %v3178, 0
    %v3494 = vperm.slane %v3178, 2
    %v3495 = vperm.slane %v3179, 0
    %v3496 = vperm.slane %v3179, 2
    %v3497 = vperm.slane %v3180, 0
    %v3498 = vperm.slane %v3180, 2
    %v3499 = vperm.slane %v3181, 0
    %v3500 = vperm.slane %v3181, 2
    %v3501 = vperm.slane %v3182, 0
    %v3502 = vperm.slane %v3182, 2
    %v3503 = vperm.slane %v3183, 0
    %v3504 = vperm.slane %v3183, 2
    %v3505 = vperm.slane %v3184, 0
    %v3506 = vperm.slane %v3184, 2
    %v3507 = vperm.slane %v3185, 0
    %v3508 = vperm.slane %v3185, 2
    %v3509 = vperm.slane %v3186, 0
    %v3510 = vperm.slane %v3186, 2
    %v3511 = vperm.slane %v3187, 0
    %v3512 = vperm.slane %v3187, 2
    %v3513 = vperm.slane %v3188, 0
    %v3514 = vperm.slane %v3188, 2
    %v3515 = vperm.slane %v3189, 0
    %v3516 = vperm.slane %v3189, 2
    %v3517 = vperm.slane %v3190, 0
    %v3518 = vperm.slane %v3190, 2
    %v3519 = vperm.slane %v3191, 0
    %v3520 = vperm.slane %v3191, 2
    %v3521 = vperm.slane %v3192, 0
    %v3522 = vperm.slane %v3192, 2
    %v3523 = vperm.slane %v3193, 0
    %v3524 = vperm.slane %v3193, 2
    %v3525 = vperm.slane %v3194, 0
    %v3526 = vperm.slane %v3194, 2
    %v3527 = vperm.slane %v3195, 0
    %v3528 = vperm.slane %v3195, 2
    %v3529 = vperm.slane %v3196, 0
    %v3530 = vperm.slane %v3196, 2
    %v3531 = vperm.slane %v3197, 0
    %v3532 = vperm.slane %v3197, 2
    %v3533 = vperm.slane %v3198, 0
    %v3534 = vperm.slane %v3198, 2
    %v3535 = vperm.slane %v3199, 0
    %v3536 = vperm.slane %v3199, 2
    %v3537 = vperm.slane %v3200, 0
    %v3538 = vperm.slane %v3200, 2
    %v3539 = vperm.slane %v3201, 0
    %v3540 = vperm.slane %v3201, 2
    %v3541 = vperm.slane %v3202, 0
    %v3542 = vperm.slane %v3202, 2
    %v3543 = vperm.slane %v3203, 0
    %v3544 = vperm.slane %v3203, 2
    %v3545 = vperm.slane %v3204, 0
    %v3546 = vperm.slane %v3204, 2
    %v3547 = vperm.slane %v3205, 0
    %v3548 = vperm.slane %v3205, 2
    %v3549 = vperm.slane %v3206, 0
    %v3550 = vperm.slane %v3206, 2
    %v3551 = vperm.slane %v3207, 0
    %v3552 = vperm.slane %v3207, 2
    %v3553 = vperm.slane %v3208, 0
    %v3554 = vperm.slane %v3208, 2
    %v3555 = vperm.slane %v3209, 0
    %v3556 = vperm.slane %v3209, 2
    %v3557 = vperm.slane %v3210, 0
    %v3558 = vperm.slane %v3210, 2
    %v3559 = vperm.slane %v3211, 0
    %v3560 = vperm.slane %v3211, 2
    %v3561 = vperm.slane %v3212, 0
    %v3562 = vperm.slane %v3212, 2
    %v3563 = vperm.slane %v3213, 0
    %v3564 = vperm.slane %v3213, 2
    %v3565 = vperm.slane %v3214, 0
    %v3566 = vperm.slane %v3214, 2
    %v3567 = vperm.slane %v3215, 0
    %v3568 = vperm.slane %v3215, 2
    %v3569 = vperm.slane %v3216, 0
    %v3570 = vperm.slane %v3216, 2
    %v3571 = vperm.slane %v3217, 0
    %v3572 = vperm.slane %v3217, 2
    %v3573 = vperm.slane %v3218, 0
    %v3574 = vperm.slane %v3218, 2
    %v3575 = vperm.slane %v3219, 0
    %v3576 = vperm.slane %v3219, 2
    %v3577 = vperm.slane %v3220, 0
    %v3578 = vperm.slane %v3220, 2
    %v3579 = vperm.slane %v3221, 0
    %v3580 = vperm.slane %v3221, 2
    %v3581 = vperm.slane %v3222, 0
    %v3582 = vperm.slane %v3222, 2
    %v3583 = vperm.slane %v3223, 0
    %v3584 = vperm.slane %v3223, 2
    %v3585 = vperm.slane %v3224, 0
    %v3586 = vperm.slane %v3224, 2
    %v3587 = vperm.slane %v3225, 0
    %v3588 = vperm.slane %v3225, 2
    %v3589 = vperm.slane %v3226, 0
    %v3590 = vperm.slane %v3226, 2
    %v3591 = vperm.slane %v3227, 0
    %v3592 = vperm.slane %v3227, 2
    %v3593 = vperm.slane %v3228, 0
    %v3594 = vperm.slane %v3228, 2
    %v3595 = vperm.slane %v3229, 0
    %v3596 = vperm.slane %v3229, 2
    %v3597 = vperm.slane %v3230, 0
    %v3598 = vperm.slane %v3230, 2
    %v3599 = vperm.slane %v3231, 0
    %v3600 = vperm.slane %v3231, 2
    %v3601 = vperm.slane %v3232, 0
    %v3602 = vperm.slane %v3232, 2
    %v3603 = vperm.slane %v3233, 0
    %v3604 = vperm.slane %v3233, 2
    %v3605 = vperm.slane %v3234, 0
    %v3606 = vperm.slane %v3234, 2
    %v3607 = vperm.slane %v3235, 0
    %v3608 = vperm.slane %v3235, 2
    %v3609 = vperm.slane %v3236, 0
    %v3610 = vperm.slane %v3236, 2
    %v3611 = vperm.slane %v3237, 0
    %v3612 = vperm.slane %v3237, 2
    %v3613 = vperm.slane %v3238, 0
    %v3614 = vperm.slane %v3238, 2
    %v3615 = vperm.slane %v3239, 0
    %v3616 = vperm.slane %v3239, 2
    %v3617 = vperm.slane %v3240, 0
    %v3618 = vperm.slane %v3240, 2
    %v3619 = vperm.slane %v3241, 0
    %v3620 = vperm.slane %v3241, 2
    %v3621 = vperm.slane %v3242, 0
    %v3622 = vperm.slane %v3242, 2
    %v3623 = vperm.slane %v3243, 0
    %v3624 = vperm.slane %v3243, 2
    %v3625 = vperm.slane %v3244, 0
    %v3626 = vperm.slane %v3244, 2
    %v3627 = vperm.slane %v3245, 0
    %v3628 = vperm.slane %v3245, 2
    %v3629 = vperm.slane %v3246, 0
    %v3630 = vperm.slane %v3246, 2
    %v3887 = vpack.c.bf16 %v3376, %v3375
    %v3888 = vpack.c.bf16 %v3378, %v3377
    %v3889 = vpack.c.bf16 %v3380, %v3379
    %v3890 = vpack.c.bf16 %v3382, %v3381
    %v3891 = vpack.c.bf16 %v3384, %v3383
    %v3892 = vpack.c.bf16 %v3386, %v3385
    %v3893 = vpack.c.bf16 %v3388, %v3387
    %v3894 = vpack.c.bf16 %v3390, %v3389
    %v3895 = vpack.c.bf16 %v3392, %v3391
    %v3896 = vpack.c.bf16 %v3394, %v3393
    %v3897 = vpack.c.bf16 %v3396, %v3395
    %v3898 = vpack.c.bf16 %v3398, %v3397
    %v3899 = vpack.c.bf16 %v3400, %v3399
    %v3900 = vpack.c.bf16 %v3402, %v3401
    %v3901 = vpack.c.bf16 %v3404, %v3403
    %v3902 = vpack.c.bf16 %v3406, %v3405
    %v3903 = vpack.c.bf16 %v3408, %v3407
    %v3904 = vpack.c.bf16 %v3410, %v3409
    %v3905 = vpack.c.bf16 %v3412, %v3411
    %v3906 = vpack.c.bf16 %v3414, %v3413
    %v3907 = vpack.c.bf16 %v3416, %v3415
    %v3908 = vpack.c.bf16 %v3418, %v3417
    %v3909 = vpack.c.bf16 %v3420, %v3419
    %v3910 = vpack.c.bf16 %v3422, %v3421
    %v3911 = vpack.c.bf16 %v3424, %v3423
    %v3912 = vpack.c.bf16 %v3426, %v3425
    %v3913 = vpack.c.bf16 %v3428, %v3427
    %v3914 = vpack.c.bf16 %v3430, %v3429
    %v3915 = vpack.c.bf16 %v3432, %v3431
    %v3916 = vpack.c.bf16 %v3434, %v3433
    %v3917 = vpack.c.bf16 %v3436, %v3435
    %v3918 = vpack.c.bf16 %v3438, %v3437
    %v3919 = vpack.c.bf16 %v3440, %v3439
    %v3920 = vpack.c.bf16 %v3442, %v3441
    %v3921 = vpack.c.bf16 %v3444, %v3443
    %v3922 = vpack.c.bf16 %v3446, %v3445
    %v3923 = vpack.c.bf16 %v3448, %v3447
    %v3924 = vpack.c.bf16 %v3450, %v3449
    %v3925 = vpack.c.bf16 %v3452, %v3451
    %v3926 = vpack.c.bf16 %v3454, %v3453
    %v3927 = vpack.c.bf16 %v3456, %v3455
    %v3928 = vpack.c.bf16 %v3458, %v3457
    %v3929 = vpack.c.bf16 %v3460, %v3459
    %v3930 = vpack.c.bf16 %v3462, %v3461
    %v3931 = vpack.c.bf16 %v3464, %v3463
    %v3932 = vpack.c.bf16 %v3466, %v3465
    %v3933 = vpack.c.bf16 %v3468, %v3467
    %v3934 = vpack.c.bf16 %v3470, %v3469
    %v3935 = vpack.c.bf16 %v3472, %v3471
    %v3936 = vpack.c.bf16 %v3474, %v3473
    %v3937 = vpack.c.bf16 %v3476, %v3475
    %v3938 = vpack.c.bf16 %v3478, %v3477
    %v3939 = vpack.c.bf16 %v3480, %v3479
    %v3940 = vpack.c.bf16 %v3482, %v3481
    %v3941 = vpack.c.bf16 %v3484, %v3483
    %v3942 = vpack.c.bf16 %v3486, %v3485
    %v3943 = vpack.c.bf16 %v3488, %v3487
    %v3944 = vpack.c.bf16 %v3490, %v3489
    %v3945 = vpack.c.bf16 %v3492, %v3491
    %v3946 = vpack.c.bf16 %v3494, %v3493
    %v3947 = vpack.c.bf16 %v3496, %v3495
    %v3948 = vpack.c.bf16 %v3498, %v3497
    %v3949 = vpack.c.bf16 %v3500, %v3499
    %v3950 = vpack.c.bf16 %v3502, %v3501
    %v3951 = vpack.c.bf16 %v3504, %v3503
    %v3952 = vpack.c.bf16 %v3506, %v3505
    %v3953 = vpack.c.bf16 %v3508, %v3507
    %v3954 = vpack.c.bf16 %v3510, %v3509
    %v3955 = vpack.c.bf16 %v3512, %v3511
    %v3956 = vpack.c.bf16 %v3514, %v3513
    %v3957 = vpack.c.bf16 %v3516, %v3515
    %v3958 = vpack.c.bf16 %v3518, %v3517
    %v3959 = vpack.c.bf16 %v3520, %v3519
    %v3960 = vpack.c.bf16 %v3522, %v3521
    %v3961 = vpack.c.bf16 %v3524, %v3523
    %v3962 = vpack.c.bf16 %v3526, %v3525
    %v3963 = vpack.c.bf16 %v3528, %v3527
    %v3964 = vpack.c.bf16 %v3530, %v3529
    %v3965 = vpack.c.bf16 %v3532, %v3531
    %v3966 = vpack.c.bf16 %v3534, %v3533
    %v3967 = vpack.c.bf16 %v3536, %v3535
    %v3968 = vpack.c.bf16 %v3538, %v3537
    %v3969 = vpack.c.bf16 %v3540, %v3539
    %v3970 = vpack.c.bf16 %v3542, %v3541
    %v3971 = vpack.c.bf16 %v3544, %v3543
    %v3972 = vpack.c.bf16 %v3546, %v3545
    %v3973 = vpack.c.bf16 %v3548, %v3547
    %v3974 = vpack.c.bf16 %v3550, %v3549
    %v3975 = vpack.c.bf16 %v3552, %v3551
    %v3976 = vpack.c.bf16 %v3554, %v3553
    %v3977 = vpack.c.bf16 %v3556, %v3555
    %v3978 = vpack.c.bf16 %v3558, %v3557
    %v3979 = vpack.c.bf16 %v3560, %v3559
    %v3980 = vpack.c.bf16 %v3562, %v3561
    %v3981 = vpack.c.bf16 %v3564, %v3563
    %v3982 = vpack.c.bf16 %v3566, %v3565
    %v3983 = vpack.c.bf16 %v3568, %v3567
    %v3984 = vpack.c.bf16 %v3570, %v3569
    %v3985 = vpack.c.bf16 %v3572, %v3571
    %v3986 = vpack.c.bf16 %v3574, %v3573
    %v3987 = vpack.c.bf16 %v3576, %v3575
    %v3988 = vpack.c.bf16 %v3578, %v3577
    %v3989 = vpack.c.bf16 %v3580, %v3579
    %v3990 = vpack.c.bf16 %v3582, %v3581
    %v3991 = vpack.c.bf16 %v3584, %v3583
    %v3992 = vpack.c.bf16 %v3586, %v3585
    %v3993 = vpack.c.bf16 %v3588, %v3587
    %v3994 = vpack.c.bf16 %v3590, %v3589
    %v3995 = vpack.c.bf16 %v3592, %v3591
    %v3996 = vpack.c.bf16 %v3594, %v3593
    %v3997 = vpack.c.bf16 %v3596, %v3595
    %v3998 = vpack.c.bf16 %v3598, %v3597
    %v3999 = vpack.c.bf16 %v3600, %v3599
    %v4000 = vpack.c.bf16 %v3602, %v3601
    %v4001 = vpack.c.bf16 %v3604, %v3603
    %v4002 = vpack.c.bf16 %v3606, %v3605
    %v4003 = vpack.c.bf16 %v3608, %v3607
    %v4004 = vpack.c.bf16 %v3610, %v3609
    %v4005 = vpack.c.bf16 %v3612, %v3611
    %v4006 = vpack.c.bf16 %v3614, %v3613
    %v4007 = vpack.c.bf16 %v3616, %v3615
    %v4008 = vpack.c.bf16 %v3618, %v3617
    %v4009 = vpack.c.bf16 %v3620, %v3619
    %v4010 = vpack.c.bf16 %v3622, %v3621
    %v4011 = vpack.c.bf16 %v3624, %v3623
    %v4012 = vpack.c.bf16 %v3626, %v3625
    %v4013 = vpack.c.bf16 %v3628, %v3627
    %v4014 = vpack.c.bf16 %v3630, %v3629
    %v4015 = vld [vmem:[#allocation2] sm:$0xff]
    %v4016 = vld [vmem:[#allocation2 + $0x8] sm:$0xff]
    %v4017 = vld [vmem:[#allocation2 + $0x10] sm:$0xff]
    %v4018 = vld [vmem:[#allocation2 + $0x18] sm:$0xff]
    %v4019 = vld [vmem:[#allocation2 + $0x20] sm:$0xff]
    %v4020 = vld [vmem:[#allocation2 + $0x28] sm:$0xff]
    %v4021 = vld [vmem:[#allocation2 + $0x30] sm:$0xff]
    %v4022 = vld [vmem:[#allocation2 + $0x38] sm:$0xff]
    %s4023 = scalar_lea.vmem [#allocation2], 64
    %v4024 = vld [vmem:[%s4023] sm:$0xff]
    %v4025 = vld [vmem:[%s4023 + $0x8] sm:$0xff]
    %v4026 = vld [vmem:[%s4023 + $0x10] sm:$0xff]
    %v4027 = vld [vmem:[%s4023 + $0x18] sm:$0xff]
    %v4028 = vld [vmem:[%s4023 + $0x20] sm:$0xff]
    %v4029 = vld [vmem:[%s4023 + $0x28] sm:$0xff]
    %v4030 = vld [vmem:[%s4023 + $0x30] sm:$0xff]
    %v4031 = vld [vmem:[%s4023 + $0x38] sm:$0xff]
    %v4040 = vunpack.c.l.b16 %v3888
    %v4041 = vunpack.c.h.b16 %v3888
    %v4042 = vunpack.c.l.b16 %v3904
    %v4043 = vunpack.c.h.b16 %v3904
    %v4044 = vunpack.c.l.b16 %v3920
    %v4045 = vunpack.c.h.b16 %v3920
    %v4046 = vunpack.c.l.b16 %v3936
    %v4047 = vunpack.c.h.b16 %v3936
    %v4048 = vunpack.c.l.b16 %v3952
    %v4049 = vunpack.c.h.b16 %v3952
    %v4050 = vunpack.c.l.b16 %v3968
    %v4051 = vunpack.c.h.b16 %v3968
    %v4052 = vunpack.c.l.b16 %v3984
    %v4053 = vunpack.c.h.b16 %v3984
    %v4054 = vunpack.c.l.b16 %v4000
    %v4055 = vunpack.c.h.b16 %v4000
    %v4056 = vpack.c.b16 %v4040, %v4040
    %v4057 = vpack.c.b16 %v4041, %v4041
    %v4058 = vpack.c.b16 %v4042, %v4042
    %v4059 = vpack.c.b16 %v4043, %v4043
    %v4060 = vpack.c.b16 %v4044, %v4044
    %v4061 = vpack.c.b16 %v4045, %v4045
    %v4062 = vpack.c.b16 %v4046, %v4046
    %v4063 = vpack.c.b16 %v4047, %v4047
    %v4064 = vpack.c.b16 %v4048, %v4048
    %v4065 = vpack.c.b16 %v4049, %v4049
    %v4066 = vpack.c.b16 %v4050, %v4050
    %v4067 = vpack.c.b16 %v4051, %v4051
    %v4068 = vpack.c.b16 %v4052, %v4052
    %v4069 = vpack.c.b16 %v4053, %v4053
    %v4070 = vpack.c.b16 %v4054, %v4054
    %v4071 = vpack.c.b16 %v4055, %v4055
    %v4072 = vunpack.c.l.b16 %v4056
    %v4073 = vunpack.c.l.b16 %v4057
    %v4074 = vunpack.c.l.b16 %v4058
    %v4075 = vunpack.c.l.b16 %v4059
    %v4076 = vunpack.c.l.b16 %v4060
    %v4077 = vunpack.c.l.b16 %v4061
    %v4078 = vunpack.c.l.b16 %v4062
    %v4079 = vunpack.c.l.b16 %v4063
    %v4080 = vunpack.c.l.b16 %v4064
    %v4081 = vunpack.c.l.b16 %v4065
    %v4082 = vunpack.c.l.b16 %v4066
    %v4083 = vunpack.c.l.b16 %v4067
    %v4084 = vunpack.c.l.b16 %v4068
    %v4085 = vunpack.c.l.b16 %v4069
    %v4086 = vunpack.c.l.b16 %v4070
    %v4087 = vunpack.c.l.b16 %v4071
    %v4088 = vrot.slane %v4074, 7
    %vm4089 = vcmask 1041409
    %v4090 = vsel %vm4089, %v4088, %v4072
    %v4091 = vrot.slane %v4076, 6
    %vm4092 = vcmask 1042434
    %v4093 = vsel %vm4092, %v4091, %v4090
    %v4094 = vrot.slane %v4078, 5
    %vm4095 = vcmask 1043459
    %v4096 = vsel %vm4095, %v4094, %v4093
    %v4097 = vrot.slane %v4080, 4
    %vm4098 = vcmask 1044484
    %v4099 = vsel %vm4098, %v4097, %v4096
    %v4100 = vrot.slane %v4082, 3
    %vm4101 = vcmask 1045509
    %v4102 = vsel %vm4101, %v4100, %v4099
    %v4103 = vrot.slane %v4084, 2
    %vm4104 = vcmask 1046534
    %v4105 = vsel %vm4104, %v4103, %v4102
    %v4106 = vrot.slane %v4086, 1
    %vm4107 = vcmask 1047559
    %v4108 = vsel %vm4107, %v4106, %v4105
    %v4109 = vrot.slane %v4075, 7
    %v4110 = vsel %vm4089, %v4109, %v4073
    %v4111 = vrot.slane %v4077, 6
    %v4112 = vsel %vm4092, %v4111, %v4110
    %v4113 = vrot.slane %v4079, 5
    %v4114 = vsel %vm4095, %v4113, %v4112
    %v4115 = vrot.slane %v4081, 4
    %v4116 = vsel %vm4098, %v4115, %v4114
    %v4117 = vrot.slane %v4083, 3
    %v4118 = vsel %vm4101, %v4117, %v4116
    %v4119 = vrot.slane %v4085, 2
    %v4120 = vsel %vm4104, %v4119, %v4118
    %v4121 = vrot.slane %v4087, 1
    %v4122 = vsel %vm4107, %v4121, %v4120
    %v4123 = vpack.c.b16 %v4108, %v4108
    %v4124 = vpack.c.b16 %v4122, %v4122
    %v4135 = vunpack.c.l.b16 %v4024
    %v4136 = vunpack.c.h.b16 %v4024
    %v4137 = vunpack.c.l.b16 %v4025
    %v4138 = vunpack.c.h.b16 %v4025
    %v4139 = vunpack.c.l.b16 %v4026
    %v4140 = vunpack.c.h.b16 %v4026
    %v4141 = vunpack.c.l.b16 %v4027
    %v4142 = vunpack.c.h.b16 %v4027
    %v4143 = vunpack.c.l.b16 %v4028
    %v4144 = vunpack.c.h.b16 %v4028
    %v4145 = vunpack.c.l.b16 %v4029
    %v4146 = vunpack.c.h.b16 %v4029
    %v4147 = vunpack.c.l.b16 %v4030
    %v4148 = vunpack.c.h.b16 %v4030
    %v4149 = vunpack.c.l.b16 %v4031
    %v4150 = vunpack.c.h.b16 %v4031
    %v4151 = vpack.c.b16 %v4137, %v4135
    %v4152 = vpack.c.b16 %v4138, %v4136
    %v4153 = vpack.c.b16 %v4141, %v4139
    %v4154 = vpack.c.b16 %v4142, %v4140
    %v4155 = vpack.c.b16 %v4145, %v4143
    %v4156 = vpack.c.b16 %v4146, %v4144
    %v4157 = vpack.c.b16 %v4149, %v4147
    %v4158 = vpack.c.b16 %v4150, %v4148
    %4167 = vmatpush.bf16.xpose.msra.mxu0 0
    %4168 = vmatpush.bf16.xpose.msra.mxu0 0
    %4169 = vmatpush.bf16.xpose.msra.mxu0 0
    %4170 = vmatpush.bf16.xpose.msra.mxu0 0
    %4171 = vmatpush.bf16.xpose.msra.mxu0 %v4157
    %4172 = vmatpush.bf16.xpose.msra.mxu0 %v4155
    %4173 = vmatpush.bf16.xpose.msra.mxu0 %v4153
    %4174 = vmatpush.bf16.xpose.msra.mxu0 %v4151
    %4175 = vmatmul.bf16.gmra.mxu0 %v4123
    %v4176 = vpop.f32.mrf.mxu0
    %v4177 = vadd.f32 0.0, %v4176
    %v4178 = vpop.f32.mrf.mxu0
    %4179 = vdwg.mxu0
    %4180 = vmatpush.bf16.xpose.msra.mxu0 0
    %4181 = vmatpush.bf16.xpose.msra.mxu0 0
    %4182 = vmatpush.bf16.xpose.msra.mxu0 0
    %4183 = vmatpush.bf16.xpose.msra.mxu0 0
    %4184 = vmatpush.bf16.xpose.msra.mxu0 %v4158
    %4185 = vmatpush.bf16.xpose.msra.mxu0 %v4156
    %4186 = vmatpush.bf16.xpose.msra.mxu0 %v4154
    %4187 = vmatpush.bf16.xpose.msra.mxu0 %v4152
    %4188 = vmatmul.bf16.gmra.mxu0 %v4124
    %v4189 = vpop.f32.mrf.mxu0
    %v4190 = vadd.f32 %v4177, %v4189
    %v4191 = vpop.f32.mrf.mxu0
    %4192 = vdwg.mxu0
    %v4201 = vunpack.c.l.b16 %v3887
    %v4202 = vunpack.c.h.b16 %v3887
    %v4203 = vunpack.c.l.b16 %v3903
    %v4204 = vunpack.c.h.b16 %v3903
    %v4205 = vunpack.c.l.b16 %v3919
    %v4206 = vunpack.c.h.b16 %v3919
    %v4207 = vunpack.c.l.b16 %v3935
    %v4208 = vunpack.c.h.b16 %v3935
    %v4209 = vunpack.c.l.b16 %v3951
    %v4210 = vunpack.c.h.b16 %v3951
    %v4211 = vunpack.c.l.b16 %v3967
    %v4212 = vunpack.c.h.b16 %v3967
    %v4213 = vunpack.c.l.b16 %v3983
    %v4214 = vunpack.c.h.b16 %v3983
    %v4215 = vunpack.c.l.b16 %v3999
    %v4216 = vunpack.c.h.b16 %v3999
    %v4217 = vpack.c.b16 %v4201, %v4201
    %v4218 = vpack.c.b16 %v4202, %v4202
    %v4219 = vpack.c.b16 %v4203, %v4203
    %v4220 = vpack.c.b16 %v4204, %v4204
    %v4221 = vpack.c.b16 %v4205, %v4205
    %v4222 = vpack.c.b16 %v4206, %v4206
    %v4223 = vpack.c.b16 %v4207, %v4207
    %v4224 = vpack.c.b16 %v4208, %v4208
    %v4225 = vpack.c.b16 %v4209, %v4209
    %v4226 = vpack.c.b16 %v4210, %v4210
    %v4227 = vpack.c.b16 %v4211, %v4211
    %v4228 = vpack.c.b16 %v4212, %v4212
    %v4229 = vpack.c.b16 %v4213, %v4213
    %v4230 = vpack.c.b16 %v4214, %v4214
    %v4231 = vpack.c.b16 %v4215, %v4215
    %v4232 = vpack.c.b16 %v4216, %v4216
    %v4233 = vunpack.c.l.b16 %v4217
    %v4234 = vunpack.c.l.b16 %v4218
    %v4235 = vunpack.c.l.b16 %v4219
    %v4236 = vunpack.c.l.b16 %v4220
    %v4237 = vunpack.c.l.b16 %v4221
    %v4238 = vunpack.c.l.b16 %v4222
    %v4239 = vunpack.c.l.b16 %v4223
    %v4240 = vunpack.c.l.b16 %v4224
    %v4241 = vunpack.c.l.b16 %v4225
    %v4242 = vunpack.c.l.b16 %v4226
    %v4243 = vunpack.c.l.b16 %v4227
    %v4244 = vunpack.c.l.b16 %v4228
    %v4245 = vunpack.c.l.b16 %v4229
    %v4246 = vunpack.c.l.b16 %v4230
    %v4247 = vunpack.c.l.b16 %v4231
    %v4248 = vunpack.c.l.b16 %v4232
    %v4249 = vrot.slane %v4235, 7
    %v4250 = vsel %vm4089, %v4249, %v4233
    %v4251 = vrot.slane %v4237, 6
    %v4252 = vsel %vm4092, %v4251, %v4250
    %v4253 = vrot.slane %v4239, 5
    %v4254 = vsel %vm4095, %v4253, %v4252
    %v4255 = vrot.slane %v4241, 4
    %v4256 = vsel %vm4098, %v4255, %v4254
    %v4257 = vrot.slane %v4243, 3
    %v4258 = vsel %vm4101, %v4257, %v4256
    %v4259 = vrot.slane %v4245, 2
    %v4260 = vsel %vm4104, %v4259, %v4258
    %v4261 = vrot.slane %v4247, 1
    %v4262 = vsel %vm4107, %v4261, %v4260
    %v4263 = vrot.slane %v4236, 7
    %v4264 = vsel %vm4089, %v4263, %v4234
    %v4265 = vrot.slane %v4238, 6
    %v4266 = vsel %vm4092, %v4265, %v4264
    %v4267 = vrot.slane %v4240, 5
    %v4268 = vsel %vm4095, %v4267, %v4266
    %v4269 = vrot.slane %v4242, 4
    %v4270 = vsel %vm4098, %v4269, %v4268
    %v4271 = vrot.slane %v4244, 3
    %v4272 = vsel %vm4101, %v4271, %v4270
    %v4273 = vrot.slane %v4246, 2
    %v4274 = vsel %vm4104, %v4273, %v4272
    %v4275 = vrot.slane %v4248, 1
    %v4276 = vsel %vm4107, %v4275, %v4274
    %v4277 = vpack.c.b16 %v4262, %v4262
    %v4278 = vpack.c.b16 %v4276, %v4276
    %v4289 = vunpack.c.l.b16 %v4015
    %v4290 = vunpack.c.h.b16 %v4015
    %v4291 = vunpack.c.l.b16 %v4016
    %v4292 = vunpack.c.h.b16 %v4016
    %v4293 = vunpack.c.l.b16 %v4017
    %v4294 = vunpack.c.h.b16 %v4017
    %v4295 = vunpack.c.l.b16 %v4018
    %v4296 = vunpack.c.h.b16 %v4018
    %v4297 = vunpack.c.l.b16 %v4019
    %v4298 = vunpack.c.h.b16 %v4019
    %v4299 = vunpack.c.l.b16 %v4020
    %v4300 = vunpack.c.h.b16 %v4020
    %v4301 = vunpack.c.l.b16 %v4021
    %v4302 = vunpack.c.h.b16 %v4021
    %v4303 = vunpack.c.l.b16 %v4022
    %v4304 = vunpack.c.h.b16 %v4022
    %v4305 = vpack.c.b16 %v4291, %v4289
    %v4306 = vpack.c.b16 %v4292, %v4290
    %v4307 = vpack.c.b16 %v4295, %v4293
    %v4308 = vpack.c.b16 %v4296, %v4294
    %v4309 = vpack.c.b16 %v4299, %v4297
    %v4310 = vpack.c.b16 %v4300, %v4298
    %v4311 = vpack.c.b16 %v4303, %v4301
    %v4312 = vpack.c.b16 %v4304, %v4302
    %4321 = vmatpush.bf16.xpose.msra.mxu0 0
    %4322 = vmatpush.bf16.xpose.msra.mxu0 0
    %4323 = vmatpush.bf16.xpose.msra.mxu0 0
    %4324 = vmatpush.bf16.xpose.msra.mxu0 0
    %4325 = vmatpush.bf16.xpose.msra.mxu0 %v4311
    %4326 = vmatpush.bf16.xpose.msra.mxu0 %v4309
    %4327 = vmatpush.bf16.xpose.msra.mxu0 %v4307
    %4328 = vmatpush.bf16.xpose.msra.mxu0 %v4305
    %4329 = vmatmul.bf16.gmra.mxu0 %v4277
    %v4330 = vpop.f32.mrf.mxu0
    %v4331 = vadd.f32 %v4190, %v4330
    %v4332 = vpop.f32.mrf.mxu0
    %4333 = vdwg.mxu0
    %4334 = vmatpush.bf16.xpose.msra.mxu0 0
    %4335 = vmatpush.bf16.xpose.msra.mxu0 0
    %4336 = vmatpush.bf16.xpose.msra.mxu0 0
    %4337 = vmatpush.bf16.xpose.msra.mxu0 0
    %4338 = vmatpush.bf16.xpose.msra.mxu0 %v4312
    %4339 = vmatpush.bf16.xpose.msra.mxu0 %v4310
    %4340 = vmatpush.bf16.xpose.msra.mxu0 %v4308
    %4341 = vmatpush.bf16.xpose.msra.mxu0 %v4306
    %4342 = vmatmul.bf16.gmra.mxu0 %v4278
    %v4343 = vpop.f32.mrf.mxu0
    %v4344 = vadd.f32 %v4331, %v4343
    %v4345 = vpop.f32.mrf.mxu0
    %4346 = vdwg.mxu0
    %s4347 = scalar_lea.vmem [#allocation2], 128
    %v4348 = vld [vmem:[%s4347] sm:$0xff]
    %v4349 = vld [vmem:[%s4347 + $0x8] sm:$0xff]
    %v4350 = vld [vmem:[%s4347 + $0x10] sm:$0xff]
    %v4351 = vld [vmem:[%s4347 + $0x18] sm:$0xff]
    %v4352 = vld [vmem:[%s4347 + $0x20] sm:$0xff]
    %v4353 = vld [vmem:[%s4347 + $0x28] sm:$0xff]
    %v4354 = vld [vmem:[%s4347 + $0x30] sm:$0xff]
    %v4355 = vld [vmem:[%s4347 + $0x38] sm:$0xff]
    %v4364 = vunpack.c.l.b16 %v3889
    %v4365 = vunpack.c.h.b16 %v3889
    %v4366 = vunpack.c.l.b16 %v3905
    %v4367 = vunpack.c.h.b16 %v3905
    %v4368 = vunpack.c.l.b16 %v3921
    %v4369 = vunpack.c.h.b16 %v3921
    %v4370 = vunpack.c.l.b16 %v3937
    %v4371 = vunpack.c.h.b16 %v3937
    %v4372 = vunpack.c.l.b16 %v3953
    %v4373 = vunpack.c.h.b16 %v3953
    %v4374 = vunpack.c.l.b16 %v3969
    %v4375 = vunpack.c.h.b16 %v3969
    %v4376 = vunpack.c.l.b16 %v3985
    %v4377 = vunpack.c.h.b16 %v3985
    %v4378 = vunpack.c.l.b16 %v4001
    %v4379 = vunpack.c.h.b16 %v4001
    %v4380 = vpack.c.b16 %v4364, %v4364
    %v4381 = vpack.c.b16 %v4365, %v4365
    %v4382 = vpack.c.b16 %v4366, %v4366
    %v4383 = vpack.c.b16 %v4367, %v4367
    %v4384 = vpack.c.b16 %v4368, %v4368
    %v4385 = vpack.c.b16 %v4369, %v4369
    %v4386 = vpack.c.b16 %v4370, %v4370
    %v4387 = vpack.c.b16 %v4371, %v4371
    %v4388 = vpack.c.b16 %v4372, %v4372
    %v4389 = vpack.c.b16 %v4373, %v4373
    %v4390 = vpack.c.b16 %v4374, %v4374
    %v4391 = vpack.c.b16 %v4375, %v4375
    %v4392 = vpack.c.b16 %v4376, %v4376
    %v4393 = vpack.c.b16 %v4377, %v4377
    %v4394 = vpack.c.b16 %v4378, %v4378
    %v4395 = vpack.c.b16 %v4379, %v4379
    %v4396 = vunpack.c.l.b16 %v4380
    %v4397 = vunpack.c.l.b16 %v4381
    %v4398 = vunpack.c.l.b16 %v4382
    %v4399 = vunpack.c.l.b16 %v4383
    %v4400 = vunpack.c.l.b16 %v4384
    %v4401 = vunpack.c.l.b16 %v4385
    %v4402 = vunpack.c.l.b16 %v4386
    %v4403 = vunpack.c.l.b16 %v4387
    %v4404 = vunpack.c.l.b16 %v4388
    %v4405 = vunpack.c.l.b16 %v4389
    %v4406 = vunpack.c.l.b16 %v4390
    %v4407 = vunpack.c.l.b16 %v4391
    %v4408 = vunpack.c.l.b16 %v4392
    %v4409 = vunpack.c.l.b16 %v4393
    %v4410 = vunpack.c.l.b16 %v4394
    %v4411 = vunpack.c.l.b16 %v4395
    %v4412 = vrot.slane %v4398, 7
    %v4413 = vsel %vm4089, %v4412, %v4396
    %v4414 = vrot.slane %v4400, 6
    %v4415 = vsel %vm4092, %v4414, %v4413
    %v4416 = vrot.slane %v4402, 5
    %v4417 = vsel %vm4095, %v4416, %v4415
    %v4418 = vrot.slane %v4404, 4
    %v4419 = vsel %vm4098, %v4418, %v4417
    %v4420 = vrot.slane %v4406, 3
    %v4421 = vsel %vm4101, %v4420, %v4419
    %v4422 = vrot.slane %v4408, 2
    %v4423 = vsel %vm4104, %v4422, %v4421
    %v4424 = vrot.slane %v4410, 1
    %v4425 = vsel %vm4107, %v4424, %v4423
    %v4426 = vrot.slane %v4399, 7
    %v4427 = vsel %vm4089, %v4426, %v4397
    %v4428 = vrot.slane %v4401, 6
    %v4429 = vsel %vm4092, %v4428, %v4427
    %v4430 = vrot.slane %v4403, 5
    %v4431 = vsel %vm4095, %v4430, %v4429
    %v4432 = vrot.slane %v4405, 4
    %v4433 = vsel %vm4098, %v4432, %v4431
    %v4434 = vrot.slane %v4407, 3
    %v4435 = vsel %vm4101, %v4434, %v4433
    %v4436 = vrot.slane %v4409, 2
    %v4437 = vsel %vm4104, %v4436, %v4435
    %v4438 = vrot.slane %v4411, 1
    %v4439 = vsel %vm4107, %v4438, %v4437
    %v4440 = vpack.c.b16 %v4425, %v4425
    %v4441 = vpack.c.b16 %v4439, %v4439
    %v4452 = vunpack.c.l.b16 %v4348
    %v4453 = vunpack.c.h.b16 %v4348
    %v4454 = vunpack.c.l.b16 %v4349
    %v4455 = vunpack.c.h.b16 %v4349
    %v4456 = vunpack.c.l.b16 %v4350
    %v4457 = vunpack.c.h.b16 %v4350
    %v4458 = vunpack.c.l.b16 %v4351
    %v4459 = vunpack.c.h.b16 %v4351
    %v4460 = vunpack.c.l.b16 %v4352
    %v4461 = vunpack.c.h.b16 %v4352
    %v4462 = vunpack.c.l.b16 %v4353
    %v4463 = vunpack.c.h.b16 %v4353
    %v4464 = vunpack.c.l.b16 %v4354
    %v4465 = vunpack.c.h.b16 %v4354
    %v4466 = vunpack.c.l.b16 %v4355
    %v4467 = vunpack.c.h.b16 %v4355
    %v4468 = vpack.c.b16 %v4454, %v4452
    %v4469 = vpack.c.b16 %v4455, %v4453
    %v4470 = vpack.c.b16 %v4458, %v4456
    %v4471 = vpack.c.b16 %v4459, %v4457
    %v4472 = vpack.c.b16 %v4462, %v4460
    %v4473 = vpack.c.b16 %v4463, %v4461
    %v4474 = vpack.c.b16 %v4466, %v4464
    %v4475 = vpack.c.b16 %v4467, %v4465
    %4484 = vmatpush.bf16.xpose.msra.mxu0 0
    %4485 = vmatpush.bf16.xpose.msra.mxu0 0
    %4486 = vmatpush.bf16.xpose.msra.mxu0 0
    %4487 = vmatpush.bf16.xpose.msra.mxu0 0
    %4488 = vmatpush.bf16.xpose.msra.mxu0 %v4474
    %4489 = vmatpush.bf16.xpose.msra.mxu0 %v4472
    %4490 = vmatpush.bf16.xpose.msra.mxu0 %v4470
    %4491 = vmatpush.bf16.xpose.msra.mxu0 %v4468
    %4492 = vmatmul.bf16.gmra.mxu0 %v4440
    %v4493 = vpop.f32.mrf.mxu0
    %v4494 = vadd.f32 0.0, %v4493
    %v4495 = vpop.f32.mrf.mxu0
    %4496 = vdwg.mxu0
    %4497 = vmatpush.bf16.xpose.msra.mxu0 0
    %4498 = vmatpush.bf16.xpose.msra.mxu0 0
    %4499 = vmatpush.bf16.xpose.msra.mxu0 0
    %4500 = vmatpush.bf16.xpose.msra.mxu0 0
    %4501 = vmatpush.bf16.xpose.msra.mxu0 %v4475
    %4502 = vmatpush.bf16.xpose.msra.mxu0 %v4473
    %4503 = vmatpush.bf16.xpose.msra.mxu0 %v4471
    %4504 = vmatpush.bf16.xpose.msra.mxu0 %v4469
    %4505 = vmatmul.bf16.gmra.mxu0 %v4441
    %v4506 = vpop.f32.mrf.mxu0
    %v4507 = vadd.f32 %v4494, %v4506
    %v4508 = vpop.f32.mrf.mxu0
    %4509 = vdwg.mxu0
    %v4510 = vadd.f32 %v4344, %v4507
    %s4511 = scalar_lea.vmem [#allocation2], 192
    %v4512 = vld [vmem:[%s4511] sm:$0xff]
    %v4513 = vld [vmem:[%s4511 + $0x8] sm:$0xff]
    %v4514 = vld [vmem:[%s4511 + $0x10] sm:$0xff]
    %v4515 = vld [vmem:[%s4511 + $0x18] sm:$0xff]
    %v4516 = vld [vmem:[%s4511 + $0x20] sm:$0xff]
    %v4517 = vld [vmem:[%s4511 + $0x28] sm:$0xff]
    %v4518 = vld [vmem:[%s4511 + $0x30] sm:$0xff]
    %v4519 = vld [vmem:[%s4511 + $0x38] sm:$0xff]
    %v4528 = vunpack.c.l.b16 %v3890
    %v4529 = vunpack.c.h.b16 %v3890
    %v4530 = vunpack.c.l.b16 %v3906
    %v4531 = vunpack.c.h.b16 %v3906
    %v4532 = vunpack.c.l.b16 %v3922
    %v4533 = vunpack.c.h.b16 %v3922
    %v4534 = vunpack.c.l.b16 %v3938
    %v4535 = vunpack.c.h.b16 %v3938
    %v4536 = vunpack.c.l.b16 %v3954
    %v4537 = vunpack.c.h.b16 %v3954
    %v4538 = vunpack.c.l.b16 %v3970
    %v4539 = vunpack.c.h.b16 %v3970
    %v4540 = vunpack.c.l.b16 %v3986
    %v4541 = vunpack.c.h.b16 %v3986
    %v4542 = vunpack.c.l.b16 %v4002
    %v4543 = vunpack.c.h.b16 %v4002
    %v4544 = vpack.c.b16 %v4528, %v4528
    %v4545 = vpack.c.b16 %v4529, %v4529
    %v4546 = vpack.c.b16 %v4530, %v4530
    %v4547 = vpack.c.b16 %v4531, %v4531
    %v4548 = vpack.c.b16 %v4532, %v4532
    %v4549 = vpack.c.b16 %v4533, %v4533
    %v4550 = vpack.c.b16 %v4534, %v4534
    %v4551 = vpack.c.b16 %v4535, %v4535
    %v4552 = vpack.c.b16 %v4536, %v4536
    %v4553 = vpack.c.b16 %v4537, %v4537
    %v4554 = vpack.c.b16 %v4538, %v4538
    %v4555 = vpack.c.b16 %v4539, %v4539
    %v4556 = vpack.c.b16 %v4540, %v4540
    %v4557 = vpack.c.b16 %v4541, %v4541
    %v4558 = vpack.c.b16 %v4542, %v4542
    %v4559 = vpack.c.b16 %v4543, %v4543
    %v4560 = vunpack.c.l.b16 %v4544
    %v4561 = vunpack.c.l.b16 %v4545
    %v4562 = vunpack.c.l.b16 %v4546
    %v4563 = vunpack.c.l.b16 %v4547
    %v4564 = vunpack.c.l.b16 %v4548
    %v4565 = vunpack.c.l.b16 %v4549
    %v4566 = vunpack.c.l.b16 %v4550
    %v4567 = vunpack.c.l.b16 %v4551
    %v4568 = vunpack.c.l.b16 %v4552
    %v4569 = vunpack.c.l.b16 %v4553
    %v4570 = vunpack.c.l.b16 %v4554
    %v4571 = vunpack.c.l.b16 %v4555
    %v4572 = vunpack.c.l.b16 %v4556
    %v4573 = vunpack.c.l.b16 %v4557
    %v4574 = vunpack.c.l.b16 %v4558
    %v4575 = vunpack.c.l.b16 %v4559
    %v4576 = vrot.slane %v4562, 7
    %v4577 = vsel %vm4089, %v4576, %v4560
    %v4578 = vrot.slane %v4564, 6
    %v4579 = vsel %vm4092, %v4578, %v4577
    %v4580 = vrot.slane %v4566, 5
    %v4581 = vsel %vm4095, %v4580, %v4579
    %v4582 = vrot.slane %v4568, 4
    %v4583 = vsel %vm4098, %v4582, %v4581
    %v4584 = vrot.slane %v4570, 3
    %v4585 = vsel %vm4101, %v4584, %v4583
    %v4586 = vrot.slane %v4572, 2
    %v4587 = vsel %vm4104, %v4586, %v4585
    %v4588 = vrot.slane %v4574, 1
    %v4589 = vsel %vm4107, %v4588, %v4587
    %v4590 = vrot.slane %v4563, 7
    %v4591 = vsel %vm4089, %v4590, %v4561
    %v4592 = vrot.slane %v4565, 6
    %v4593 = vsel %vm4092, %v4592, %v4591
    %v4594 = vrot.slane %v4567, 5
    %v4595 = vsel %vm4095, %v4594, %v4593
    %v4596 = vrot.slane %v4569, 4
    %v4597 = vsel %vm4098, %v4596, %v4595
    %v4598 = vrot.slane %v4571, 3
    %v4599 = vsel %vm4101, %v4598, %v4597
    %v4600 = vrot.slane %v4573, 2
    %v4601 = vsel %vm4104, %v4600, %v4599
    %v4602 = vrot.slane %v4575, 1
    %v4603 = vsel %vm4107, %v4602, %v4601
    %v4604 = vpack.c.b16 %v4589, %v4589
    %v4605 = vpack.c.b16 %v4603, %v4603
    %v4616 = vunpack.c.l.b16 %v4512
    %v4617 = vunpack.c.h.b16 %v4512
    %v4618 = vunpack.c.l.b16 %v4513
    %v4619 = vunpack.c.h.b16 %v4513
    %v4620 = vunpack.c.l.b16 %v4514
    %v4621 = vunpack.c.h.b16 %v4514
    %v4622 = vunpack.c.l.b16 %v4515
    %v4623 = vunpack.c.h.b16 %v4515
    %v4624 = vunpack.c.l.b16 %v4516
    %v4625 = vunpack.c.h.b16 %v4516
    %v4626 = vunpack.c.l.b16 %v4517
    %v4627 = vunpack.c.h.b16 %v4517
    %v4628 = vunpack.c.l.b16 %v4518
    %v4629 = vunpack.c.h.b16 %v4518
    %v4630 = vunpack.c.l.b16 %v4519
    %v4631 = vunpack.c.h.b16 %v4519
    %v4632 = vpack.c.b16 %v4618, %v4616
    %v4633 = vpack.c.b16 %v4619, %v4617
    %v4634 = vpack.c.b16 %v4622, %v4620
    %v4635 = vpack.c.b16 %v4623, %v4621
    %v4636 = vpack.c.b16 %v4626, %v4624
    %v4637 = vpack.c.b16 %v4627, %v4625
    %v4638 = vpack.c.b16 %v4630, %v4628
    %v4639 = vpack.c.b16 %v4631, %v4629
    %4648 = vmatpush.bf16.xpose.msra.mxu0 0
    %4649 = vmatpush.bf16.xpose.msra.mxu0 0
    %4650 = vmatpush.bf16.xpose.msra.mxu0 0
    %4651 = vmatpush.bf16.xpose.msra.mxu0 0
    %4652 = vmatpush.bf16.xpose.msra.mxu0 %v4638
    %4653 = vmatpush.bf16.xpose.msra.mxu0 %v4636
    %4654 = vmatpush.bf16.xpose.msra.mxu0 %v4634
    %4655 = vmatpush.bf16.xpose.msra.mxu0 %v4632
    %4656 = vmatmul.bf16.gmra.mxu0 %v4604
    %v4657 = vpop.f32.mrf.mxu0
    %v4658 = vadd.f32 0.0, %v4657
    %v4659 = vpop.f32.mrf.mxu0
    %4660 = vdwg.mxu0
    %4661 = vmatpush.bf16.xpose.msra.mxu0 0
    %4662 = vmatpush.bf16.xpose.msra.mxu0 0
    %4663 = vmatpush.bf16.xpose.msra.mxu0 0
    %4664 = vmatpush.bf16.xpose.msra.mxu0 0
    %4665 = vmatpush.bf16.xpose.msra.mxu0 %v4639
    %4666 = vmatpush.bf16.xpose.msra.mxu0 %v4637
    %4667 = vmatpush.bf16.xpose.msra.mxu0 %v4635
    %4668 = vmatpush.bf16.xpose.msra.mxu0 %v4633
    %4669 = vmatmul.bf16.gmra.mxu0 %v4605
    %v4670 = vpop.f32.mrf.mxu0
    %v4671 = vadd.f32 %v4658, %v4670
    %v4672 = vpop.f32.mrf.mxu0
    %4673 = vdwg.mxu0
    %v4674 = vadd.f32 %v4510, %v4671
    %s4675 = scalar_lea.vmem [#allocation2], 256
    %v4676 = vld [vmem:[%s4675] sm:$0xff]
    %v4677 = vld [vmem:[%s4675 + $0x8] sm:$0xff]
    %v4678 = vld [vmem:[%s4675 + $0x10] sm:$0xff]
    %v4679 = vld [vmem:[%s4675 + $0x18] sm:$0xff]
    %v4680 = vld [vmem:[%s4675 + $0x20] sm:$0xff]
    %v4681 = vld [vmem:[%s4675 + $0x28] sm:$0xff]
    %v4682 = vld [vmem:[%s4675 + $0x30] sm:$0xff]
    %v4683 = vld [vmem:[%s4675 + $0x38] sm:$0xff]
    %v4692 = vunpack.c.l.b16 %v3891
    %v4693 = vunpack.c.h.b16 %v3891
    %v4694 = vunpack.c.l.b16 %v3907
    %v4695 = vunpack.c.h.b16 %v3907
    %v4696 = vunpack.c.l.b16 %v3923
    %v4697 = vunpack.c.h.b16 %v3923
    %v4698 = vunpack.c.l.b16 %v3939
    %v4699 = vunpack.c.h.b16 %v3939
    %v4700 = vunpack.c.l.b16 %v3955
    %v4701 = vunpack.c.h.b16 %v3955
    %v4702 = vunpack.c.l.b16 %v3971
    %v4703 = vunpack.c.h.b16 %v3971
    %v4704 = vunpack.c.l.b16 %v3987
    %v4705 = vunpack.c.h.b16 %v3987
    %v4706 = vunpack.c.l.b16 %v4003
    %v4707 = vunpack.c.h.b16 %v4003
    %v4708 = vpack.c.b16 %v4692, %v4692
    %v4709 = vpack.c.b16 %v4693, %v4693
    %v4710 = vpack.c.b16 %v4694, %v4694
    %v4711 = vpack.c.b16 %v4695, %v4695
    %v4712 = vpack.c.b16 %v4696, %v4696
    %v4713 = vpack.c.b16 %v4697, %v4697
    %v4714 = vpack.c.b16 %v4698, %v4698
    %v4715 = vpack.c.b16 %v4699, %v4699
    %v4716 = vpack.c.b16 %v4700, %v4700
    %v4717 = vpack.c.b16 %v4701, %v4701
    %v4718 = vpack.c.b16 %v4702, %v4702
    %v4719 = vpack.c.b16 %v4703, %v4703
    %v4720 = vpack.c.b16 %v4704, %v4704
    %v4721 = vpack.c.b16 %v4705, %v4705
    %v4722 = vpack.c.b16 %v4706, %v4706
    %v4723 = vpack.c.b16 %v4707, %v4707
    %v4724 = vunpack.c.l.b16 %v4708
    %v4725 = vunpack.c.l.b16 %v4709
    %v4726 = vunpack.c.l.b16 %v4710
    %v4727 = vunpack.c.l.b16 %v4711
    %v4728 = vunpack.c.l.b16 %v4712
    %v4729 = vunpack.c.l.b16 %v4713
    %v4730 = vunpack.c.l.b16 %v4714
    %v4731 = vunpack.c.l.b16 %v4715
    %v4732 = vunpack.c.l.b16 %v4716
    %v4733 = vunpack.c.l.b16 %v4717
    %v4734 = vunpack.c.l.b16 %v4718
    %v4735 = vunpack.c.l.b16 %v4719
    %v4736 = vunpack.c.l.b16 %v4720
    %v4737 = vunpack.c.l.b16 %v4721
    %v4738 = vunpack.c.l.b16 %v4722
    %v4739 = vunpack.c.l.b16 %v4723
    %v4740 = vrot.slane %v4726, 7
    %v4741 = vsel %vm4089, %v4740, %v4724
    %v4742 = vrot.slane %v4728, 6
    %v4743 = vsel %vm4092, %v4742, %v4741
    %v4744 = vrot.slane %v4730, 5
    %v4745 = vsel %vm4095, %v4744, %v4743
    %v4746 = vrot.slane %v4732, 4
    %v4747 = vsel %vm4098, %v4746, %v4745
    %v4748 = vrot.slane %v4734, 3
    %v4749 = vsel %vm4101, %v4748, %v4747
    %v4750 = vrot.slane %v4736, 2
    %v4751 = vsel %vm4104, %v4750, %v4749
    %v4752 = vrot.slane %v4738, 1
    %v4753 = vsel %vm4107, %v4752, %v4751
    %v4754 = vrot.slane %v4727, 7
    %v4755 = vsel %vm4089, %v4754, %v4725
    %v4756 = vrot.slane %v4729, 6
    %v4757 = vsel %vm4092, %v4756, %v4755
    %v4758 = vrot.slane %v4731, 5
    %v4759 = vsel %vm4095, %v4758, %v4757
    %v4760 = vrot.slane %v4733, 4
    %v4761 = vsel %vm4098, %v4760, %v4759
    %v4762 = vrot.slane %v4735, 3
    %v4763 = vsel %vm4101, %v4762, %v4761
    %v4764 = vrot.slane %v4737, 2
    %v4765 = vsel %vm4104, %v4764, %v4763
    %v4766 = vrot.slane %v4739, 1
    %v4767 = vsel %vm4107, %v4766, %v4765
    %v4768 = vpack.c.b16 %v4753, %v4753
    %v4769 = vpack.c.b16 %v4767, %v4767
    %v4780 = vunpack.c.l.b16 %v4676
    %v4781 = vunpack.c.h.b16 %v4676
    %v4782 = vunpack.c.l.b16 %v4677
    %v4783 = vunpack.c.h.b16 %v4677
    %v4784 = vunpack.c.l.b16 %v4678
    %v4785 = vunpack.c.h.b16 %v4678
    %v4786 = vunpack.c.l.b16 %v4679
    %v4787 = vunpack.c.h.b16 %v4679
    %v4788 = vunpack.c.l.b16 %v4680
    %v4789 = vunpack.c.h.b16 %v4680
    %v4790 = vunpack.c.l.b16 %v4681
    %v4791 = vunpack.c.h.b16 %v4681
    %v4792 = vunpack.c.l.b16 %v4682
    %v4793 = vunpack.c.h.b16 %v4682
    %v4794 = vunpack.c.l.b16 %v4683
    %v4795 = vunpack.c.h.b16 %v4683
    %v4796 = vpack.c.b16 %v4782, %v4780
    %v4797 = vpack.c.b16 %v4783, %v4781
    %v4798 = vpack.c.b16 %v4786, %v4784
    %v4799 = vpack.c.b16 %v4787, %v4785
    %v4800 = vpack.c.b16 %v4790, %v4788
    %v4801 = vpack.c.b16 %v4791, %v4789
    %v4802 = vpack.c.b16 %v4794, %v4792
    %v4803 = vpack.c.b16 %v4795, %v4793
    %4812 = vmatpush.bf16.xpose.msra.mxu0 0
    %4813 = vmatpush.bf16.xpose.msra.mxu0 0
    %4814 = vmatpush.bf16.xpose.msra.mxu0 0
    %4815 = vmatpush.bf16.xpose.msra.mxu0 0
    %4816 = vmatpush.bf16.xpose.msra.mxu0 %v4802
    %4817 = vmatpush.bf16.xpose.msra.mxu0 %v4800
    %4818 = vmatpush.bf16.xpose.msra.mxu0 %v4798
    %4819 = vmatpush.bf16.xpose.msra.mxu0 %v4796
    %4820 = vmatmul.bf16.gmra.mxu0 %v4768
    %v4821 = vpop.f32.mrf.mxu0
    %v4822 = vadd.f32 0.0, %v4821
    %v4823 = vpop.f32.mrf.mxu0
    %4824 = vdwg.mxu0
    %4825 = vmatpush.bf16.xpose.msra.mxu0 0
    %4826 = vmatpush.bf16.xpose.msra.mxu0 0
    %4827 = vmatpush.bf16.xpose.msra.mxu0 0
    %4828 = vmatpush.bf16.xpose.msra.mxu0 0
    %4829 = vmatpush.bf16.xpose.msra.mxu0 %v4803
    %4830 = vmatpush.bf16.xpose.msra.mxu0 %v4801
    %4831 = vmatpush.bf16.xpose.msra.mxu0 %v4799
    %4832 = vmatpush.bf16.xpose.msra.mxu0 %v4797
    %4833 = vmatmul.bf16.gmra.mxu0 %v4769
    %v4834 = vpop.f32.mrf.mxu0
    %v4835 = vadd.f32 %v4822, %v4834
    %v4836 = vpop.f32.mrf.mxu0
    %4837 = vdwg.mxu0
    %v4838 = vadd.f32 %v4674, %v4835
    %s4839 = scalar_lea.vmem [#allocation2], 320
    %v4840 = vld [vmem:[%s4839] sm:$0xff]
    %v4841 = vld [vmem:[%s4839 + $0x8] sm:$0xff]
    %v4842 = vld [vmem:[%s4839 + $0x10] sm:$0xff]
    %v4843 = vld [vmem:[%s4839 + $0x18] sm:$0xff]
    %v4844 = vld [vmem:[%s4839 + $0x20] sm:$0xff]
    %v4845 = vld [vmem:[%s4839 + $0x28] sm:$0xff]
    %v4846 = vld [vmem:[%s4839 + $0x30] sm:$0xff]
    %v4847 = vld [vmem:[%s4839 + $0x38] sm:$0xff]
    %v4856 = vunpack.c.l.b16 %v3892
    %v4857 = vunpack.c.h.b16 %v3892
    %v4858 = vunpack.c.l.b16 %v3908
    %v4859 = vunpack.c.h.b16 %v3908
    %v4860 = vunpack.c.l.b16 %v3924
    %v4861 = vunpack.c.h.b16 %v3924
    %v4862 = vunpack.c.l.b16 %v3940
    %v4863 = vunpack.c.h.b16 %v3940
    %v4864 = vunpack.c.l.b16 %v3956
    %v4865 = vunpack.c.h.b16 %v3956
    %v4866 = vunpack.c.l.b16 %v3972
    %v4867 = vunpack.c.h.b16 %v3972
    %v4868 = vunpack.c.l.b16 %v3988
    %v4869 = vunpack.c.h.b16 %v3988
    %v4870 = vunpack.c.l.b16 %v4004
    %v4871 = vunpack.c.h.b16 %v4004
    %v4872 = vpack.c.b16 %v4856, %v4856
    %v4873 = vpack.c.b16 %v4857, %v4857
    %v4874 = vpack.c.b16 %v4858, %v4858
    %v4875 = vpack.c.b16 %v4859, %v4859
    %v4876 = vpack.c.b16 %v4860, %v4860
    %v4877 = vpack.c.b16 %v4861, %v4861
    %v4878 = vpack.c.b16 %v4862, %v4862
    %v4879 = vpack.c.b16 %v4863, %v4863
    %v4880 = vpack.c.b16 %v4864, %v4864
    %v4881 = vpack.c.b16 %v4865, %v4865
    %v4882 = vpack.c.b16 %v4866, %v4866
    %v4883 = vpack.c.b16 %v4867, %v4867
    %v4884 = vpack.c.b16 %v4868, %v4868
    %v4885 = vpack.c.b16 %v4869, %v4869
    %v4886 = vpack.c.b16 %v4870, %v4870
    %v4887 = vpack.c.b16 %v4871, %v4871
    %v4888 = vunpack.c.l.b16 %v4872
    %v4889 = vunpack.c.l.b16 %v4873
    %v4890 = vunpack.c.l.b16 %v4874
    %v4891 = vunpack.c.l.b16 %v4875
    %v4892 = vunpack.c.l.b16 %v4876
    %v4893 = vunpack.c.l.b16 %v4877
    %v4894 = vunpack.c.l.b16 %v4878
    %v4895 = vunpack.c.l.b16 %v4879
    %v4896 = vunpack.c.l.b16 %v4880
    %v4897 = vunpack.c.l.b16 %v4881
    %v4898 = vunpack.c.l.b16 %v4882
    %v4899 = vunpack.c.l.b16 %v4883
    %v4900 = vunpack.c.l.b16 %v4884
    %v4901 = vunpack.c.l.b16 %v4885
    %v4902 = vunpack.c.l.b16 %v4886
    %v4903 = vunpack.c.l.b16 %v4887
    %v4904 = vrot.slane %v4890, 7
    %v4905 = vsel %vm4089, %v4904, %v4888
    %v4906 = vrot.slane %v4892, 6
    %v4907 = vsel %vm4092, %v4906, %v4905
    %v4908 = vrot.slane %v4894, 5
    %v4909 = vsel %vm4095, %v4908, %v4907
    %v4910 = vrot.slane %v4896, 4
    %v4911 = vsel %vm4098, %v4910, %v4909
    %v4912 = vrot.slane %v4898, 3
    %v4913 = vsel %vm4101, %v4912, %v4911
    %v4914 = vrot.slane %v4900, 2
    %v4915 = vsel %vm4104, %v4914, %v4913
    %v4916 = vrot.slane %v4902, 1
    %v4917 = vsel %vm4107, %v4916, %v4915
    %v4918 = vrot.slane %v4891, 7
    %v4919 = vsel %vm4089, %v4918, %v4889
    %v4920 = vrot.slane %v4893, 6
    %v4921 = vsel %vm4092, %v4920, %v4919
    %v4922 = vrot.slane %v4895, 5
    %v4923 = vsel %vm4095, %v4922, %v4921
    %v4924 = vrot.slane %v4897, 4
    %v4925 = vsel %vm4098, %v4924, %v4923
    %v4926 = vrot.slane %v4899, 3
    %v4927 = vsel %vm4101, %v4926, %v4925
    %v4928 = vrot.slane %v4901, 2
    %v4929 = vsel %vm4104, %v4928, %v4927
    %v4930 = vrot.slane %v4903, 1
    %v4931 = vsel %vm4107, %v4930, %v4929
    %v4932 = vpack.c.b16 %v4917, %v4917
    %v4933 = vpack.c.b16 %v4931, %v4931
    %v4944 = vunpack.c.l.b16 %v4840
    %v4945 = vunpack.c.h.b16 %v4840
    %v4946 = vunpack.c.l.b16 %v4841
    %v4947 = vunpack.c.h.b16 %v4841
    %v4948 = vunpack.c.l.b16 %v4842
    %v4949 = vunpack.c.h.b16 %v4842
    %v4950 = vunpack.c.l.b16 %v4843
    %v4951 = vunpack.c.h.b16 %v4843
    %v4952 = vunpack.c.l.b16 %v4844
    %v4953 = vunpack.c.h.b16 %v4844
    %v4954 = vunpack.c.l.b16 %v4845
    %v4955 = vunpack.c.h.b16 %v4845
    %v4956 = vunpack.c.l.b16 %v4846
    %v4957 = vunpack.c.h.b16 %v4846
    %v4958 = vunpack.c.l.b16 %v4847
    %v4959 = vunpack.c.h.b16 %v4847
    %v4960 = vpack.c.b16 %v4946, %v4944
    %v4961 = vpack.c.b16 %v4947, %v4945
    %v4962 = vpack.c.b16 %v4950, %v4948
    %v4963 = vpack.c.b16 %v4951, %v4949
    %v4964 = vpack.c.b16 %v4954, %v4952
    %v4965 = vpack.c.b16 %v4955, %v4953
    %v4966 = vpack.c.b16 %v4958, %v4956
    %v4967 = vpack.c.b16 %v4959, %v4957
    %4976 = vmatpush.bf16.xpose.msra.mxu0 0
    %4977 = vmatpush.bf16.xpose.msra.mxu0 0
    %4978 = vmatpush.bf16.xpose.msra.mxu0 0
    %4979 = vmatpush.bf16.xpose.msra.mxu0 0
    %4980 = vmatpush.bf16.xpose.msra.mxu0 %v4966
    %4981 = vmatpush.bf16.xpose.msra.mxu0 %v4964
    %4982 = vmatpush.bf16.xpose.msra.mxu0 %v4962
    %4983 = vmatpush.bf16.xpose.msra.mxu0 %v4960
    %4984 = vmatmul.bf16.gmra.mxu0 %v4932
    %v4985 = vpop.f32.mrf.mxu0
    %v4986 = vadd.f32 0.0, %v4985
    %v4987 = vpop.f32.mrf.mxu0
    %4988 = vdwg.mxu0
    %4989 = vmatpush.bf16.xpose.msra.mxu0 0
    %4990 = vmatpush.bf16.xpose.msra.mxu0 0
    %4991 = vmatpush.bf16.xpose.msra.mxu0 0
    %4992 = vmatpush.bf16.xpose.msra.mxu0 0
    %4993 = vmatpush.bf16.xpose.msra.mxu0 %v4967
    %4994 = vmatpush.bf16.xpose.msra.mxu0 %v4965
    %4995 = vmatpush.bf16.xpose.msra.mxu0 %v4963
    %4996 = vmatpush.bf16.xpose.msra.mxu0 %v4961
    %4997 = vmatmul.bf16.gmra.mxu0 %v4933
    %v4998 = vpop.f32.mrf.mxu0
    %v4999 = vadd.f32 %v4986, %v4998
    %v5000 = vpop.f32.mrf.mxu0
    %5001 = vdwg.mxu0
    %v5002 = vadd.f32 %v4838, %v4999
    %s5003 = scalar_lea.vmem [#allocation2], 384
    %v5004 = vld [vmem:[%s5003] sm:$0xff]
    %v5005 = vld [vmem:[%s5003 + $0x8] sm:$0xff]
    %v5006 = vld [vmem:[%s5003 + $0x10] sm:$0xff]
    %v5007 = vld [vmem:[%s5003 + $0x18] sm:$0xff]
    %v5008 = vld [vmem:[%s5003 + $0x20] sm:$0xff]
    %v5009 = vld [vmem:[%s5003 + $0x28] sm:$0xff]
    %v5010 = vld [vmem:[%s5003 + $0x30] sm:$0xff]
    %v5011 = vld [vmem:[%s5003 + $0x38] sm:$0xff]
    %v5020 = vunpack.c.l.b16 %v3893
    %v5021 = vunpack.c.h.b16 %v3893
    %v5022 = vunpack.c.l.b16 %v3909
    %v5023 = vunpack.c.h.b16 %v3909
    %v5024 = vunpack.c.l.b16 %v3925
    %v5025 = vunpack.c.h.b16 %v3925
    %v5026 = vunpack.c.l.b16 %v3941
    %v5027 = vunpack.c.h.b16 %v3941
    %v5028 = vunpack.c.l.b16 %v3957
    %v5029 = vunpack.c.h.b16 %v3957
    %v5030 = vunpack.c.l.b16 %v3973
    %v5031 = vunpack.c.h.b16 %v3973
    %v5032 = vunpack.c.l.b16 %v3989
    %v5033 = vunpack.c.h.b16 %v3989
    %v5034 = vunpack.c.l.b16 %v4005
    %v5035 = vunpack.c.h.b16 %v4005
    %v5036 = vpack.c.b16 %v5020, %v5020
    %v5037 = vpack.c.b16 %v5021, %v5021
    %v5038 = vpack.c.b16 %v5022, %v5022
    %v5039 = vpack.c.b16 %v5023, %v5023
    %v5040 = vpack.c.b16 %v5024, %v5024
    %v5041 = vpack.c.b16 %v5025, %v5025
    %v5042 = vpack.c.b16 %v5026, %v5026
    %v5043 = vpack.c.b16 %v5027, %v5027
    %v5044 = vpack.c.b16 %v5028, %v5028
    %v5045 = vpack.c.b16 %v5029, %v5029
    %v5046 = vpack.c.b16 %v5030, %v5030
    %v5047 = vpack.c.b16 %v5031, %v5031
    %v5048 = vpack.c.b16 %v5032, %v5032
    %v5049 = vpack.c.b16 %v5033, %v5033
    %v5050 = vpack.c.b16 %v5034, %v5034
    %v5051 = vpack.c.b16 %v5035, %v5035
    %v5052 = vunpack.c.l.b16 %v5036
    %v5053 = vunpack.c.l.b16 %v5037
    %v5054 = vunpack.c.l.b16 %v5038
    %v5055 = vunpack.c.l.b16 %v5039
    %v5056 = vunpack.c.l.b16 %v5040
    %v5057 = vunpack.c.l.b16 %v5041
    %v5058 = vunpack.c.l.b16 %v5042
    %v5059 = vunpack.c.l.b16 %v5043
    %v5060 = vunpack.c.l.b16 %v5044
    %v5061 = vunpack.c.l.b16 %v5045
    %v5062 = vunpack.c.l.b16 %v5046
    %v5063 = vunpack.c.l.b16 %v5047
    %v5064 = vunpack.c.l.b16 %v5048
    %v5065 = vunpack.c.l.b16 %v5049
    %v5066 = vunpack.c.l.b16 %v5050
    %v5067 = vunpack.c.l.b16 %v5051
    %v5068 = vrot.slane %v5054, 7
    %v5069 = vsel %vm4089, %v5068, %v5052
    %v5070 = vrot.slane %v5056, 6
    %v5071 = vsel %vm4092, %v5070, %v5069
    %v5072 = vrot.slane %v5058, 5
    %v5073 = vsel %vm4095, %v5072, %v5071
    %v5074 = vrot.slane %v5060, 4
    %v5075 = vsel %vm4098, %v5074, %v5073
    %v5076 = vrot.slane %v5062, 3
    %v5077 = vsel %vm4101, %v5076, %v5075
    %v5078 = vrot.slane %v5064, 2
    %v5079 = vsel %vm4104, %v5078, %v5077
    %v5080 = vrot.slane %v5066, 1
    %v5081 = vsel %vm4107, %v5080, %v5079
    %v5082 = vrot.slane %v5055, 7
    %v5083 = vsel %vm4089, %v5082, %v5053
    %v5084 = vrot.slane %v5057, 6
    %v5085 = vsel %vm4092, %v5084, %v5083
    %v5086 = vrot.slane %v5059, 5
    %v5087 = vsel %vm4095, %v5086, %v5085
    %v5088 = vrot.slane %v5061, 4
    %v5089 = vsel %vm4098, %v5088, %v5087
    %v5090 = vrot.slane %v5063, 3
    %v5091 = vsel %vm4101, %v5090, %v5089
    %v5092 = vrot.slane %v5065, 2
    %v5093 = vsel %vm4104, %v5092, %v5091
    %v5094 = vrot.slane %v5067, 1
    %v5095 = vsel %vm4107, %v5094, %v5093
    %v5096 = vpack.c.b16 %v5081, %v5081
    %v5097 = vpack.c.b16 %v5095, %v5095
    %v5108 = vunpack.c.l.b16 %v5004
    %v5109 = vunpack.c.h.b16 %v5004
    %v5110 = vunpack.c.l.b16 %v5005
    %v5111 = vunpack.c.h.b16 %v5005
    %v5112 = vunpack.c.l.b16 %v5006
    %v5113 = vunpack.c.h.b16 %v5006
    %v5114 = vunpack.c.l.b16 %v5007
    %v5115 = vunpack.c.h.b16 %v5007
    %v5116 = vunpack.c.l.b16 %v5008
    %v5117 = vunpack.c.h.b16 %v5008
    %v5118 = vunpack.c.l.b16 %v5009
    %v5119 = vunpack.c.h.b16 %v5009
    %v5120 = vunpack.c.l.b16 %v5010
    %v5121 = vunpack.c.h.b16 %v5010
    %v5122 = vunpack.c.l.b16 %v5011
    %v5123 = vunpack.c.h.b16 %v5011
    %v5124 = vpack.c.b16 %v5110, %v5108
    %v5125 = vpack.c.b16 %v5111, %v5109
    %v5126 = vpack.c.b16 %v5114, %v5112
    %v5127 = vpack.c.b16 %v5115, %v5113
    %v5128 = vpack.c.b16 %v5118, %v5116
    %v5129 = vpack.c.b16 %v5119, %v5117
    %v5130 = vpack.c.b16 %v5122, %v5120
    %v5131 = vpack.c.b16 %v5123, %v5121
    %5140 = vmatpush.bf16.xpose.msra.mxu0 0
    %5141 = vmatpush.bf16.xpose.msra.mxu0 0
    %5142 = vmatpush.bf16.xpose.msra.mxu0 0
    %5143 = vmatpush.bf16.xpose.msra.mxu0 0
    %5144 = vmatpush.bf16.xpose.msra.mxu0 %v5130
    %5145 = vmatpush.bf16.xpose.msra.mxu0 %v5128
    %5146 = vmatpush.bf16.xpose.msra.mxu0 %v5126
    %5147 = vmatpush.bf16.xpose.msra.mxu0 %v5124
    %5148 = vmatmul.bf16.gmra.mxu0 %v5096
    %v5149 = vpop.f32.mrf.mxu0
    %v5150 = vadd.f32 0.0, %v5149
    %v5151 = vpop.f32.mrf.mxu0
    %5152 = vdwg.mxu0
    %5153 = vmatpush.bf16.xpose.msra.mxu0 0
    %5154 = vmatpush.bf16.xpose.msra.mxu0 0
    %5155 = vmatpush.bf16.xpose.msra.mxu0 0
    %5156 = vmatpush.bf16.xpose.msra.mxu0 0
    %5157 = vmatpush.bf16.xpose.msra.mxu0 %v5131
    %5158 = vmatpush.bf16.xpose.msra.mxu0 %v5129
    %5159 = vmatpush.bf16.xpose.msra.mxu0 %v5127
    %5160 = vmatpush.bf16.xpose.msra.mxu0 %v5125
    %5161 = vmatmul.bf16.gmra.mxu0 %v5097
    %v5162 = vpop.f32.mrf.mxu0
    %v5163 = vadd.f32 %v5150, %v5162
    %v5164 = vpop.f32.mrf.mxu0
    %5165 = vdwg.mxu0
    %v5166 = vadd.f32 %v5002, %v5163
    %s5167 = scalar_lea.vmem [#allocation2], 448
    %v5168 = vld [vmem:[%s5167] sm:$0xff]
    %v5169 = vld [vmem:[%s5167 + $0x8] sm:$0xff]
    %v5170 = vld [vmem:[%s5167 + $0x10] sm:$0xff]
    %v5171 = vld [vmem:[%s5167 + $0x18] sm:$0xff]
    %v5172 = vld [vmem:[%s5167 + $0x20] sm:$0xff]
    %v5173 = vld [vmem:[%s5167 + $0x28] sm:$0xff]
    %v5174 = vld [vmem:[%s5167 + $0x30] sm:$0xff]
    %v5175 = vld [vmem:[%s5167 + $0x38] sm:$0xff]
    %v5184 = vunpack.c.l.b16 %v3894
    %v5185 = vunpack.c.h.b16 %v3894
    %v5186 = vunpack.c.l.b16 %v3910
    %v5187 = vunpack.c.h.b16 %v3910
    %v5188 = vunpack.c.l.b16 %v3926
    %v5189 = vunpack.c.h.b16 %v3926
    %v5190 = vunpack.c.l.b16 %v3942
    %v5191 = vunpack.c.h.b16 %v3942
    %v5192 = vunpack.c.l.b16 %v3958
    %v5193 = vunpack.c.h.b16 %v3958
    %v5194 = vunpack.c.l.b16 %v3974
    %v5195 = vunpack.c.h.b16 %v3974
    %v5196 = vunpack.c.l.b16 %v3990
    %v5197 = vunpack.c.h.b16 %v3990
    %v5198 = vunpack.c.l.b16 %v4006
    %v5199 = vunpack.c.h.b16 %v4006
    %v5200 = vpack.c.b16 %v5184, %v5184
    %v5201 = vpack.c.b16 %v5185, %v5185
    %v5202 = vpack.c.b16 %v5186, %v5186
    %v5203 = vpack.c.b16 %v5187, %v5187
    %v5204 = vpack.c.b16 %v5188, %v5188
    %v5205 = vpack.c.b16 %v5189, %v5189
    %v5206 = vpack.c.b16 %v5190, %v5190
    %v5207 = vpack.c.b16 %v5191, %v5191
    %v5208 = vpack.c.b16 %v5192, %v5192
    %v5209 = vpack.c.b16 %v5193, %v5193
    %v5210 = vpack.c.b16 %v5194, %v5194
    %v5211 = vpack.c.b16 %v5195, %v5195
    %v5212 = vpack.c.b16 %v5196, %v5196
    %v5213 = vpack.c.b16 %v5197, %v5197
    %v5214 = vpack.c.b16 %v5198, %v5198
    %v5215 = vpack.c.b16 %v5199, %v5199
    %v5216 = vunpack.c.l.b16 %v5200
    %v5217 = vunpack.c.l.b16 %v5201
    %v5218 = vunpack.c.l.b16 %v5202
    %v5219 = vunpack.c.l.b16 %v5203
    %v5220 = vunpack.c.l.b16 %v5204
    %v5221 = vunpack.c.l.b16 %v5205
    %v5222 = vunpack.c.l.b16 %v5206
    %v5223 = vunpack.c.l.b16 %v5207
    %v5224 = vunpack.c.l.b16 %v5208
    %v5225 = vunpack.c.l.b16 %v5209
    %v5226 = vunpack.c.l.b16 %v5210
    %v5227 = vunpack.c.l.b16 %v5211
    %v5228 = vunpack.c.l.b16 %v5212
    %v5229 = vunpack.c.l.b16 %v5213
    %v5230 = vunpack.c.l.b16 %v5214
    %v5231 = vunpack.c.l.b16 %v5215
    %v5232 = vrot.slane %v5218, 7
    %v5233 = vsel %vm4089, %v5232, %v5216
    %v5234 = vrot.slane %v5220, 6
    %v5235 = vsel %vm4092, %v5234, %v5233
    %v5236 = vrot.slane %v5222, 5
    %v5237 = vsel %vm4095, %v5236, %v5235
    %v5238 = vrot.slane %v5224, 4
    %v5239 = vsel %vm4098, %v5238, %v5237
    %v5240 = vrot.slane %v5226, 3
    %v5241 = vsel %vm4101, %v5240, %v5239
    %v5242 = vrot.slane %v5228, 2
    %v5243 = vsel %vm4104, %v5242, %v5241
    %v5244 = vrot.slane %v5230, 1
    %v5245 = vsel %vm4107, %v5244, %v5243
    %v5246 = vrot.slane %v5219, 7
    %v5247 = vsel %vm4089, %v5246, %v5217
    %v5248 = vrot.slane %v5221, 6
    %v5249 = vsel %vm4092, %v5248, %v5247
    %v5250 = vrot.slane %v5223, 5
    %v5251 = vsel %vm4095, %v5250, %v5249
    %v5252 = vrot.slane %v5225, 4
    %v5253 = vsel %vm4098, %v5252, %v5251
    %v5254 = vrot.slane %v5227, 3
    %v5255 = vsel %vm4101, %v5254, %v5253
    %v5256 = vrot.slane %v5229, 2
    %v5257 = vsel %vm4104, %v5256, %v5255
    %v5258 = vrot.slane %v5231, 1
    %v5259 = vsel %vm4107, %v5258, %v5257
    %v5260 = vpack.c.b16 %v5245, %v5245
    %v5261 = vpack.c.b16 %v5259, %v5259
    %v5272 = vunpack.c.l.b16 %v5168
    %v5273 = vunpack.c.h.b16 %v5168
    %v5274 = vunpack.c.l.b16 %v5169
    %v5275 = vunpack.c.h.b16 %v5169
    %v5276 = vunpack.c.l.b16 %v5170
    %v5277 = vunpack.c.h.b16 %v5170
    %v5278 = vunpack.c.l.b16 %v5171
    %v5279 = vunpack.c.h.b16 %v5171
    %v5280 = vunpack.c.l.b16 %v5172
    %v5281 = vunpack.c.h.b16 %v5172
    %v5282 = vunpack.c.l.b16 %v5173
    %v5283 = vunpack.c.h.b16 %v5173
    %v5284 = vunpack.c.l.b16 %v5174
    %v5285 = vunpack.c.h.b16 %v5174
    %v5286 = vunpack.c.l.b16 %v5175
    %v5287 = vunpack.c.h.b16 %v5175
    %v5288 = vpack.c.b16 %v5274, %v5272
    %v5289 = vpack.c.b16 %v5275, %v5273
    %v5290 = vpack.c.b16 %v5278, %v5276
    %v5291 = vpack.c.b16 %v5279, %v5277
    %v5292 = vpack.c.b16 %v5282, %v5280
    %v5293 = vpack.c.b16 %v5283, %v5281
    %v5294 = vpack.c.b16 %v5286, %v5284
    %v5295 = vpack.c.b16 %v5287, %v5285
    %5304 = vmatpush.bf16.xpose.msra.mxu0 0
    %5305 = vmatpush.bf16.xpose.msra.mxu0 0
    %5306 = vmatpush.bf16.xpose.msra.mxu0 0
    %5307 = vmatpush.bf16.xpose.msra.mxu0 0
    %5308 = vmatpush.bf16.xpose.msra.mxu0 %v5294
    %5309 = vmatpush.bf16.xpose.msra.mxu0 %v5292
    %5310 = vmatpush.bf16.xpose.msra.mxu0 %v5290
    %5311 = vmatpush.bf16.xpose.msra.mxu0 %v5288
    %5312 = vmatmul.bf16.gmra.mxu0 %v5260
    %v5313 = vpop.f32.mrf.mxu0
    %v5314 = vadd.f32 0.0, %v5313
    %v5315 = vpop.f32.mrf.mxu0
    %5316 = vdwg.mxu0
    %5317 = vmatpush.bf16.xpose.msra.mxu0 0
    %5318 = vmatpush.bf16.xpose.msra.mxu0 0
    %5319 = vmatpush.bf16.xpose.msra.mxu0 0
    %5320 = vmatpush.bf16.xpose.msra.mxu0 0
    %5321 = vmatpush.bf16.xpose.msra.mxu0 %v5295
    %5322 = vmatpush.bf16.xpose.msra.mxu0 %v5293
    %5323 = vmatpush.bf16.xpose.msra.mxu0 %v5291
    %5324 = vmatpush.bf16.xpose.msra.mxu0 %v5289
    %5325 = vmatmul.bf16.gmra.mxu0 %v5261
    %v5326 = vpop.f32.mrf.mxu0
    %v5327 = vadd.f32 %v5314, %v5326
    %v5328 = vpop.f32.mrf.mxu0
    %5329 = vdwg.mxu0
    %v5330 = vadd.f32 %v5166, %v5327
    %s5331 = scalar_lea.vmem [#allocation2], 512
    %v5332 = vld [vmem:[%s5331] sm:$0xff]
    %v5333 = vld [vmem:[%s5331 + $0x8] sm:$0xff]
    %v5334 = vld [vmem:[%s5331 + $0x10] sm:$0xff]
    %v5335 = vld [vmem:[%s5331 + $0x18] sm:$0xff]
    %v5336 = vld [vmem:[%s5331 + $0x20] sm:$0xff]
    %v5337 = vld [vmem:[%s5331 + $0x28] sm:$0xff]
    %v5338 = vld [vmem:[%s5331 + $0x30] sm:$0xff]
    %v5339 = vld [vmem:[%s5331 + $0x38] sm:$0xff]
    %v5348 = vunpack.c.l.b16 %v3895
    %v5349 = vunpack.c.h.b16 %v3895
    %v5350 = vunpack.c.l.b16 %v3911
    %v5351 = vunpack.c.h.b16 %v3911
    %v5352 = vunpack.c.l.b16 %v3927
    %v5353 = vunpack.c.h.b16 %v3927
    %v5354 = vunpack.c.l.b16 %v3943
    %v5355 = vunpack.c.h.b16 %v3943
    %v5356 = vunpack.c.l.b16 %v3959
    %v5357 = vunpack.c.h.b16 %v3959
    %v5358 = vunpack.c.l.b16 %v3975
    %v5359 = vunpack.c.h.b16 %v3975
    %v5360 = vunpack.c.l.b16 %v3991
    %v5361 = vunpack.c.h.b16 %v3991
    %v5362 = vunpack.c.l.b16 %v4007
    %v5363 = vunpack.c.h.b16 %v4007
    %v5364 = vpack.c.b16 %v5348, %v5348
    %v5365 = vpack.c.b16 %v5349, %v5349
    %v5366 = vpack.c.b16 %v5350, %v5350
    %v5367 = vpack.c.b16 %v5351, %v5351
    %v5368 = vpack.c.b16 %v5352, %v5352
    %v5369 = vpack.c.b16 %v5353, %v5353
    %v5370 = vpack.c.b16 %v5354, %v5354
    %v5371 = vpack.c.b16 %v5355, %v5355
    %v5372 = vpack.c.b16 %v5356, %v5356
    %v5373 = vpack.c.b16 %v5357, %v5357
    %v5374 = vpack.c.b16 %v5358, %v5358
    %v5375 = vpack.c.b16 %v5359, %v5359
    %v5376 = vpack.c.b16 %v5360, %v5360
    %v5377 = vpack.c.b16 %v5361, %v5361
    %v5378 = vpack.c.b16 %v5362, %v5362
    %v5379 = vpack.c.b16 %v5363, %v5363
    %v5380 = vunpack.c.l.b16 %v5364
    %v5381 = vunpack.c.l.b16 %v5365
    %v5382 = vunpack.c.l.b16 %v5366
    %v5383 = vunpack.c.l.b16 %v5367
    %v5384 = vunpack.c.l.b16 %v5368
    %v5385 = vunpack.c.l.b16 %v5369
    %v5386 = vunpack.c.l.b16 %v5370
    %v5387 = vunpack.c.l.b16 %v5371
    %v5388 = vunpack.c.l.b16 %v5372
    %v5389 = vunpack.c.l.b16 %v5373
    %v5390 = vunpack.c.l.b16 %v5374
    %v5391 = vunpack.c.l.b16 %v5375
    %v5392 = vunpack.c.l.b16 %v5376
    %v5393 = vunpack.c.l.b16 %v5377
    %v5394 = vunpack.c.l.b16 %v5378
    %v5395 = vunpack.c.l.b16 %v5379
    %v5396 = vrot.slane %v5382, 7
    %v5397 = vsel %vm4089, %v5396, %v5380
    %v5398 = vrot.slane %v5384, 6
    %v5399 = vsel %vm4092, %v5398, %v5397
    %v5400 = vrot.slane %v5386, 5
    %v5401 = vsel %vm4095, %v5400, %v5399
    %v5402 = vrot.slane %v5388, 4
    %v5403 = vsel %vm4098, %v5402, %v5401
    %v5404 = vrot.slane %v5390, 3
    %v5405 = vsel %vm4101, %v5404, %v5403
    %v5406 = vrot.slane %v5392, 2
    %v5407 = vsel %vm4104, %v5406, %v5405
    %v5408 = vrot.slane %v5394, 1
    %v5409 = vsel %vm4107, %v5408, %v5407
    %v5410 = vrot.slane %v5383, 7
    %v5411 = vsel %vm4089, %v5410, %v5381
    %v5412 = vrot.slane %v5385, 6
    %v5413 = vsel %vm4092, %v5412, %v5411
    %v5414 = vrot.slane %v5387, 5
    %v5415 = vsel %vm4095, %v5414, %v5413
    %v5416 = vrot.slane %v5389, 4
    %v5417 = vsel %vm4098, %v5416, %v5415
    %v5418 = vrot.slane %v5391, 3
    %v5419 = vsel %vm4101, %v5418, %v5417
    %v5420 = vrot.slane %v5393, 2
    %v5421 = vsel %vm4104, %v5420, %v5419
    %v5422 = vrot.slane %v5395, 1
    %v5423 = vsel %vm4107, %v5422, %v5421
    %v5424 = vpack.c.b16 %v5409, %v5409
    %v5425 = vpack.c.b16 %v5423, %v5423
    %v5436 = vunpack.c.l.b16 %v5332
    %v5437 = vunpack.c.h.b16 %v5332
    %v5438 = vunpack.c.l.b16 %v5333
    %v5439 = vunpack.c.h.b16 %v5333
    %v5440 = vunpack.c.l.b16 %v5334
    %v5441 = vunpack.c.h.b16 %v5334
    %v5442 = vunpack.c.l.b16 %v5335
    %v5443 = vunpack.c.h.b16 %v5335
    %v5444 = vunpack.c.l.b16 %v5336
    %v5445 = vunpack.c.h.b16 %v5336
    %v5446 = vunpack.c.l.b16 %v5337
    %v5447 = vunpack.c.h.b16 %v5337
    %v5448 = vunpack.c.l.b16 %v5338
    %v5449 = vunpack.c.h.b16 %v5338
    %v5450 = vunpack.c.l.b16 %v5339
    %v5451 = vunpack.c.h.b16 %v5339
    %v5452 = vpack.c.b16 %v5438, %v5436
    %v5453 = vpack.c.b16 %v5439, %v5437
    %v5454 = vpack.c.b16 %v5442, %v5440
    %v5455 = vpack.c.b16 %v5443, %v5441
    %v5456 = vpack.c.b16 %v5446, %v5444
    %v5457 = vpack.c.b16 %v5447, %v5445
    %v5458 = vpack.c.b16 %v5450, %v5448
    %v5459 = vpack.c.b16 %v5451, %v5449
    %5468 = vmatpush.bf16.xpose.msra.mxu0 0
    %5469 = vmatpush.bf16.xpose.msra.mxu0 0
    %5470 = vmatpush.bf16.xpose.msra.mxu0 0
    %5471 = vmatpush.bf16.xpose.msra.mxu0 0
    %5472 = vmatpush.bf16.xpose.msra.mxu0 %v5458
    %5473 = vmatpush.bf16.xpose.msra.mxu0 %v5456
    %5474 = vmatpush.bf16.xpose.msra.mxu0 %v5454
    %5475 = vmatpush.bf16.xpose.msra.mxu0 %v5452
    %5476 = vmatmul.bf16.gmra.mxu0 %v5424
    %v5477 = vpop.f32.mrf.mxu0
    %v5478 = vadd.f32 0.0, %v5477
    %v5479 = vpop.f32.mrf.mxu0
    %5480 = vdwg.mxu0
    %5481 = vmatpush.bf16.xpose.msra.mxu0 0
    %5482 = vmatpush.bf16.xpose.msra.mxu0 0
    %5483 = vmatpush.bf16.xpose.msra.mxu0 0
    %5484 = vmatpush.bf16.xpose.msra.mxu0 0
    %5485 = vmatpush.bf16.xpose.msra.mxu0 %v5459
    %5486 = vmatpush.bf16.xpose.msra.mxu0 %v5457
    %5487 = vmatpush.bf16.xpose.msra.mxu0 %v5455
    %5488 = vmatpush.bf16.xpose.msra.mxu0 %v5453
    %5489 = vmatmul.bf16.gmra.mxu0 %v5425
    %v5490 = vpop.f32.mrf.mxu0
    %v5491 = vadd.f32 %v5478, %v5490
    %v5492 = vpop.f32.mrf.mxu0
    %5493 = vdwg.mxu0
    %v5494 = vadd.f32 %v5330, %v5491
    %s5495 = scalar_lea.vmem [#allocation2], 576
    %v5496 = vld [vmem:[%s5495] sm:$0xff]
    %v5497 = vld [vmem:[%s5495 + $0x8] sm:$0xff]
    %v5498 = vld [vmem:[%s5495 + $0x10] sm:$0xff]
    %v5499 = vld [vmem:[%s5495 + $0x18] sm:$0xff]
    %v5500 = vld [vmem:[%s5495 + $0x20] sm:$0xff]
    %v5501 = vld [vmem:[%s5495 + $0x28] sm:$0xff]
    %v5502 = vld [vmem:[%s5495 + $0x30] sm:$0xff]
    %v5503 = vld [vmem:[%s5495 + $0x38] sm:$0xff]
    %v5512 = vunpack.c.l.b16 %v3896
    %v5513 = vunpack.c.h.b16 %v3896
    %v5514 = vunpack.c.l.b16 %v3912
    %v5515 = vunpack.c.h.b16 %v3912
    %v5516 = vunpack.c.l.b16 %v3928
    %v5517 = vunpack.c.h.b16 %v3928
    %v5518 = vunpack.c.l.b16 %v3944
    %v5519 = vunpack.c.h.b16 %v3944
    %v5520 = vunpack.c.l.b16 %v3960
    %v5521 = vunpack.c.h.b16 %v3960
    %v5522 = vunpack.c.l.b16 %v3976
    %v5523 = vunpack.c.h.b16 %v3976
    %v5524 = vunpack.c.l.b16 %v3992
    %v5525 = vunpack.c.h.b16 %v3992
    %v5526 = vunpack.c.l.b16 %v4008
    %v5527 = vunpack.c.h.b16 %v4008
    %v5528 = vpack.c.b16 %v5512, %v5512
    %v5529 = vpack.c.b16 %v5513, %v5513
    %v5530 = vpack.c.b16 %v5514, %v5514
    %v5531 = vpack.c.b16 %v5515, %v5515
    %v5532 = vpack.c.b16 %v5516, %v5516
    %v5533 = vpack.c.b16 %v5517, %v5517
    %v5534 = vpack.c.b16 %v5518, %v5518
    %v5535 = vpack.c.b16 %v5519, %v5519
    %v5536 = vpack.c.b16 %v5520, %v5520
    %v5537 = vpack.c.b16 %v5521, %v5521
    %v5538 = vpack.c.b16 %v5522, %v5522
    %v5539 = vpack.c.b16 %v5523, %v5523
    %v5540 = vpack.c.b16 %v5524, %v5524
    %v5541 = vpack.c.b16 %v5525, %v5525
    %v5542 = vpack.c.b16 %v5526, %v5526
    %v5543 = vpack.c.b16 %v5527, %v5527
    %v5544 = vunpack.c.l.b16 %v5528
    %v5545 = vunpack.c.l.b16 %v5529
    %v5546 = vunpack.c.l.b16 %v5530
    %v5547 = vunpack.c.l.b16 %v5531
    %v5548 = vunpack.c.l.b16 %v5532
    %v5549 = vunpack.c.l.b16 %v5533
    %v5550 = vunpack.c.l.b16 %v5534
    %v5551 = vunpack.c.l.b16 %v5535
    %v5552 = vunpack.c.l.b16 %v5536
    %v5553 = vunpack.c.l.b16 %v5537
    %v5554 = vunpack.c.l.b16 %v5538
    %v5555 = vunpack.c.l.b16 %v5539
    %v5556 = vunpack.c.l.b16 %v5540
    %v5557 = vunpack.c.l.b16 %v5541
    %v5558 = vunpack.c.l.b16 %v5542
    %v5559 = vunpack.c.l.b16 %v5543
    %v5560 = vrot.slane %v5546, 7
    %v5561 = vsel %vm4089, %v5560, %v5544
    %v5562 = vrot.slane %v5548, 6
    %v5563 = vsel %vm4092, %v5562, %v5561
    %v5564 = vrot.slane %v5550, 5
    %v5565 = vsel %vm4095, %v5564, %v5563
    %v5566 = vrot.slane %v5552, 4
    %v5567 = vsel %vm4098, %v5566, %v5565
    %v5568 = vrot.slane %v5554, 3
    %v5569 = vsel %vm4101, %v5568, %v5567
    %v5570 = vrot.slane %v5556, 2
    %v5571 = vsel %vm4104, %v5570, %v5569
    %v5572 = vrot.slane %v5558, 1
    %v5573 = vsel %vm4107, %v5572, %v5571
    %v5574 = vrot.slane %v5547, 7
    %v5575 = vsel %vm4089, %v5574, %v5545
    %v5576 = vrot.slane %v5549, 6
    %v5577 = vsel %vm4092, %v5576, %v5575
    %v5578 = vrot.slane %v5551, 5
    %v5579 = vsel %vm4095, %v5578, %v5577
    %v5580 = vrot.slane %v5553, 4
    %v5581 = vsel %vm4098, %v5580, %v5579
    %v5582 = vrot.slane %v5555, 3
    %v5583 = vsel %vm4101, %v5582, %v5581
    %v5584 = vrot.slane %v5557, 2
    %v5585 = vsel %vm4104, %v5584, %v5583
    %v5586 = vrot.slane %v5559, 1
    %v5587 = vsel %vm4107, %v5586, %v5585
    %v5588 = vpack.c.b16 %v5573, %v5573
    %v5589 = vpack.c.b16 %v5587, %v5587
    %v5600 = vunpack.c.l.b16 %v5496
    %v5601 = vunpack.c.h.b16 %v5496
    %v5602 = vunpack.c.l.b16 %v5497
    %v5603 = vunpack.c.h.b16 %v5497
    %v5604 = vunpack.c.l.b16 %v5498
    %v5605 = vunpack.c.h.b16 %v5498
    %v5606 = vunpack.c.l.b16 %v5499
    %v5607 = vunpack.c.h.b16 %v5499
    %v5608 = vunpack.c.l.b16 %v5500
    %v5609 = vunpack.c.h.b16 %v5500
    %v5610 = vunpack.c.l.b16 %v5501
    %v5611 = vunpack.c.h.b16 %v5501
    %v5612 = vunpack.c.l.b16 %v5502
    %v5613 = vunpack.c.h.b16 %v5502
    %v5614 = vunpack.c.l.b16 %v5503
    %v5615 = vunpack.c.h.b16 %v5503
    %v5616 = vpack.c.b16 %v5602, %v5600
    %v5617 = vpack.c.b16 %v5603, %v5601
    %v5618 = vpack.c.b16 %v5606, %v5604
    %v5619 = vpack.c.b16 %v5607, %v5605
    %v5620 = vpack.c.b16 %v5610, %v5608
    %v5621 = vpack.c.b16 %v5611, %v5609
    %v5622 = vpack.c.b16 %v5614, %v5612
    %v5623 = vpack.c.b16 %v5615, %v5613
    %5632 = vmatpush.bf16.xpose.msra.mxu0 0
    %5633 = vmatpush.bf16.xpose.msra.mxu0 0
    %5634 = vmatpush.bf16.xpose.msra.mxu0 0
    %5635 = vmatpush.bf16.xpose.msra.mxu0 0
    %5636 = vmatpush.bf16.xpose.msra.mxu0 %v5622
    %5637 = vmatpush.bf16.xpose.msra.mxu0 %v5620
    %5638 = vmatpush.bf16.xpose.msra.mxu0 %v5618
    %5639 = vmatpush.bf16.xpose.msra.mxu0 %v5616
    %5640 = vmatmul.bf16.gmra.mxu0 %v5588
    %v5641 = vpop.f32.mrf.mxu0
    %v5642 = vadd.f32 0.0, %v5641
    %v5643 = vpop.f32.mrf.mxu0
    %5644 = vdwg.mxu0
    %5645 = vmatpush.bf16.xpose.msra.mxu0 0
    %5646 = vmatpush.bf16.xpose.msra.mxu0 0
    %5647 = vmatpush.bf16.xpose.msra.mxu0 0
    %5648 = vmatpush.bf16.xpose.msra.mxu0 0
    %5649 = vmatpush.bf16.xpose.msra.mxu0 %v5623
    %5650 = vmatpush.bf16.xpose.msra.mxu0 %v5621
    %5651 = vmatpush.bf16.xpose.msra.mxu0 %v5619
    %5652 = vmatpush.bf16.xpose.msra.mxu0 %v5617
    %5653 = vmatmul.bf16.gmra.mxu0 %v5589
    %v5654 = vpop.f32.mrf.mxu0
    %v5655 = vadd.f32 %v5642, %v5654
    %v5656 = vpop.f32.mrf.mxu0
    %5657 = vdwg.mxu0
    %v5658 = vadd.f32 %v5494, %v5655
    %s5659 = scalar_lea.vmem [#allocation2], 640
    %v5660 = vld [vmem:[%s5659] sm:$0xff]
    %v5661 = vld [vmem:[%s5659 + $0x8] sm:$0xff]
    %v5662 = vld [vmem:[%s5659 + $0x10] sm:$0xff]
    %v5663 = vld [vmem:[%s5659 + $0x18] sm:$0xff]
    %v5664 = vld [vmem:[%s5659 + $0x20] sm:$0xff]
    %v5665 = vld [vmem:[%s5659 + $0x28] sm:$0xff]
    %v5666 = vld [vmem:[%s5659 + $0x30] sm:$0xff]
    %v5667 = vld [vmem:[%s5659 + $0x38] sm:$0xff]
    %v5676 = vunpack.c.l.b16 %v3897
    %v5677 = vunpack.c.h.b16 %v3897
    %v5678 = vunpack.c.l.b16 %v3913
    %v5679 = vunpack.c.h.b16 %v3913
    %v5680 = vunpack.c.l.b16 %v3929
    %v5681 = vunpack.c.h.b16 %v3929
    %v5682 = vunpack.c.l.b16 %v3945
    %v5683 = vunpack.c.h.b16 %v3945
    %v5684 = vunpack.c.l.b16 %v3961
    %v5685 = vunpack.c.h.b16 %v3961
    %v5686 = vunpack.c.l.b16 %v3977
    %v5687 = vunpack.c.h.b16 %v3977
    %v5688 = vunpack.c.l.b16 %v3993
    %v5689 = vunpack.c.h.b16 %v3993
    %v5690 = vunpack.c.l.b16 %v4009
    %v5691 = vunpack.c.h.b16 %v4009
    %v5692 = vpack.c.b16 %v5676, %v5676
    %v5693 = vpack.c.b16 %v5677, %v5677
    %v5694 = vpack.c.b16 %v5678, %v5678
    %v5695 = vpack.c.b16 %v5679, %v5679
    %v5696 = vpack.c.b16 %v5680, %v5680
    %v5697 = vpack.c.b16 %v5681, %v5681
    %v5698 = vpack.c.b16 %v5682, %v5682
    %v5699 = vpack.c.b16 %v5683, %v5683
    %v5700 = vpack.c.b16 %v5684, %v5684
    %v5701 = vpack.c.b16 %v5685, %v5685
    %v5702 = vpack.c.b16 %v5686, %v5686
    %v5703 = vpack.c.b16 %v5687, %v5687
    %v5704 = vpack.c.b16 %v5688, %v5688
    %v5705 = vpack.c.b16 %v5689, %v5689
    %v5706 = vpack.c.b16 %v5690, %v5690
    %v5707 = vpack.c.b16 %v5691, %v5691
    %v5708 = vunpack.c.l.b16 %v5692
    %v5709 = vunpack.c.l.b16 %v5693
    %v5710 = vunpack.c.l.b16 %v5694
    %v5711 = vunpack.c.l.b16 %v5695
    %v5712 = vunpack.c.l.b16 %v5696
    %v5713 = vunpack.c.l.b16 %v5697
    %v5714 = vunpack.c.l.b16 %v5698
    %v5715 = vunpack.c.l.b16 %v5699
    %v5716 = vunpack.c.l.b16 %v5700
    %v5717 = vunpack.c.l.b16 %v5701
    %v5718 = vunpack.c.l.b16 %v5702
    %v5719 = vunpack.c.l.b16 %v5703
    %v5720 = vunpack.c.l.b16 %v5704
    %v5721 = vunpack.c.l.b16 %v5705
    %v5722 = vunpack.c.l.b16 %v5706
    %v5723 = vunpack.c.l.b16 %v5707
    %v5724 = vrot.slane %v5710, 7
    %v5725 = vsel %vm4089, %v5724, %v5708
    %v5726 = vrot.slane %v5712, 6
    %v5727 = vsel %vm4092, %v5726, %v5725
    %v5728 = vrot.slane %v5714, 5
    %v5729 = vsel %vm4095, %v5728, %v5727
    %v5730 = vrot.slane %v5716, 4
    %v5731 = vsel %vm4098, %v5730, %v5729
    %v5732 = vrot.slane %v5718, 3
    %v5733 = vsel %vm4101, %v5732, %v5731
    %v5734 = vrot.slane %v5720, 2
    %v5735 = vsel %vm4104, %v5734, %v5733
    %v5736 = vrot.slane %v5722, 1
    %v5737 = vsel %vm4107, %v5736, %v5735
    %v5738 = vrot.slane %v5711, 7
    %v5739 = vsel %vm4089, %v5738, %v5709
    %v5740 = vrot.slane %v5713, 6
    %v5741 = vsel %vm4092, %v5740, %v5739
    %v5742 = vrot.slane %v5715, 5
    %v5743 = vsel %vm4095, %v5742, %v5741
    %v5744 = vrot.slane %v5717, 4
    %v5745 = vsel %vm4098, %v5744, %v5743
    %v5746 = vrot.slane %v5719, 3
    %v5747 = vsel %vm4101, %v5746, %v5745
    %v5748 = vrot.slane %v5721, 2
    %v5749 = vsel %vm4104, %v5748, %v5747
    %v5750 = vrot.slane %v5723, 1
    %v5751 = vsel %vm4107, %v5750, %v5749
    %v5752 = vpack.c.b16 %v5737, %v5737
    %v5753 = vpack.c.b16 %v5751, %v5751
    %v5764 = vunpack.c.l.b16 %v5660
    %v5765 = vunpack.c.h.b16 %v5660
    %v5766 = vunpack.c.l.b16 %v5661
    %v5767 = vunpack.c.h.b16 %v5661
    %v5768 = vunpack.c.l.b16 %v5662
    %v5769 = vunpack.c.h.b16 %v5662
    %v5770 = vunpack.c.l.b16 %v5663
    %v5771 = vunpack.c.h.b16 %v5663
    %v5772 = vunpack.c.l.b16 %v5664
    %v5773 = vunpack.c.h.b16 %v5664
    %v5774 = vunpack.c.l.b16 %v5665
    %v5775 = vunpack.c.h.b16 %v5665
    %v5776 = vunpack.c.l.b16 %v5666
    %v5777 = vunpack.c.h.b16 %v5666
    %v5778 = vunpack.c.l.b16 %v5667
    %v5779 = vunpack.c.h.b16 %v5667
    %v5780 = vpack.c.b16 %v5766, %v5764
    %v5781 = vpack.c.b16 %v5767, %v5765
    %v5782 = vpack.c.b16 %v5770, %v5768
    %v5783 = vpack.c.b16 %v5771, %v5769
    %v5784 = vpack.c.b16 %v5774, %v5772
    %v5785 = vpack.c.b16 %v5775, %v5773
    %v5786 = vpack.c.b16 %v5778, %v5776
    %v5787 = vpack.c.b16 %v5779, %v5777
    %5796 = vmatpush.bf16.xpose.msra.mxu0 0
    %5797 = vmatpush.bf16.xpose.msra.mxu0 0
    %5798 = vmatpush.bf16.xpose.msra.mxu0 0
    %5799 = vmatpush.bf16.xpose.msra.mxu0 0
    %5800 = vmatpush.bf16.xpose.msra.mxu0 %v5786
    %5801 = vmatpush.bf16.xpose.msra.mxu0 %v5784
    %5802 = vmatpush.bf16.xpose.msra.mxu0 %v5782
    %5803 = vmatpush.bf16.xpose.msra.mxu0 %v5780
    %5804 = vmatmul.bf16.gmra.mxu0 %v5752
    %v5805 = vpop.f32.mrf.mxu0
    %v5806 = vadd.f32 0.0, %v5805
    %v5807 = vpop.f32.mrf.mxu0
    %5808 = vdwg.mxu0
    %5809 = vmatpush.bf16.xpose.msra.mxu0 0
    %5810 = vmatpush.bf16.xpose.msra.mxu0 0
    %5811 = vmatpush.bf16.xpose.msra.mxu0 0
    %5812 = vmatpush.bf16.xpose.msra.mxu0 0
    %5813 = vmatpush.bf16.xpose.msra.mxu0 %v5787
    %5814 = vmatpush.bf16.xpose.msra.mxu0 %v5785
    %5815 = vmatpush.bf16.xpose.msra.mxu0 %v5783
    %5816 = vmatpush.bf16.xpose.msra.mxu0 %v5781
    %5817 = vmatmul.bf16.gmra.mxu0 %v5753
    %v5818 = vpop.f32.mrf.mxu0
    %v5819 = vadd.f32 %v5806, %v5818
    %v5820 = vpop.f32.mrf.mxu0
    %5821 = vdwg.mxu0
    %v5822 = vadd.f32 %v5658, %v5819
    %s5823 = scalar_lea.vmem [#allocation2], 704
    %v5824 = vld [vmem:[%s5823] sm:$0xff]
    %v5825 = vld [vmem:[%s5823 + $0x8] sm:$0xff]
    %v5826 = vld [vmem:[%s5823 + $0x10] sm:$0xff]
    %v5827 = vld [vmem:[%s5823 + $0x18] sm:$0xff]
    %v5828 = vld [vmem:[%s5823 + $0x20] sm:$0xff]
    %v5829 = vld [vmem:[%s5823 + $0x28] sm:$0xff]
    %v5830 = vld [vmem:[%s5823 + $0x30] sm:$0xff]
    %v5831 = vld [vmem:[%s5823 + $0x38] sm:$0xff]
    %v5840 = vunpack.c.l.b16 %v3898
    %v5841 = vunpack.c.h.b16 %v3898
    %v5842 = vunpack.c.l.b16 %v3914
    %v5843 = vunpack.c.h.b16 %v3914
    %v5844 = vunpack.c.l.b16 %v3930
    %v5845 = vunpack.c.h.b16 %v3930
    %v5846 = vunpack.c.l.b16 %v3946
    %v5847 = vunpack.c.h.b16 %v3946
    %v5848 = vunpack.c.l.b16 %v3962
    %v5849 = vunpack.c.h.b16 %v3962
    %v5850 = vunpack.c.l.b16 %v3978
    %v5851 = vunpack.c.h.b16 %v3978
    %v5852 = vunpack.c.l.b16 %v3994
    %v5853 = vunpack.c.h.b16 %v3994
    %v5854 = vunpack.c.l.b16 %v4010
    %v5855 = vunpack.c.h.b16 %v4010
    %v5856 = vpack.c.b16 %v5840, %v5840
    %v5857 = vpack.c.b16 %v5841, %v5841
    %v5858 = vpack.c.b16 %v5842, %v5842
    %v5859 = vpack.c.b16 %v5843, %v5843
    %v5860 = vpack.c.b16 %v5844, %v5844
    %v5861 = vpack.c.b16 %v5845, %v5845
    %v5862 = vpack.c.b16 %v5846, %v5846
    %v5863 = vpack.c.b16 %v5847, %v5847
    %v5864 = vpack.c.b16 %v5848, %v5848
    %v5865 = vpack.c.b16 %v5849, %v5849
    %v5866 = vpack.c.b16 %v5850, %v5850
    %v5867 = vpack.c.b16 %v5851, %v5851
    %v5868 = vpack.c.b16 %v5852, %v5852
    %v5869 = vpack.c.b16 %v5853, %v5853
    %v5870 = vpack.c.b16 %v5854, %v5854
    %v5871 = vpack.c.b16 %v5855, %v5855
    %v5872 = vunpack.c.l.b16 %v5856
    %v5873 = vunpack.c.l.b16 %v5857
    %v5874 = vunpack.c.l.b16 %v5858
    %v5875 = vunpack.c.l.b16 %v5859
    %v5876 = vunpack.c.l.b16 %v5860
    %v5877 = vunpack.c.l.b16 %v5861
    %v5878 = vunpack.c.l.b16 %v5862
    %v5879 = vunpack.c.l.b16 %v5863
    %v5880 = vunpack.c.l.b16 %v5864
    %v5881 = vunpack.c.l.b16 %v5865
    %v5882 = vunpack.c.l.b16 %v5866
    %v5883 = vunpack.c.l.b16 %v5867
    %v5884 = vunpack.c.l.b16 %v5868
    %v5885 = vunpack.c.l.b16 %v5869
    %v5886 = vunpack.c.l.b16 %v5870
    %v5887 = vunpack.c.l.b16 %v5871
    %v5888 = vrot.slane %v5874, 7
    %v5889 = vsel %vm4089, %v5888, %v5872
    %v5890 = vrot.slane %v5876, 6
    %v5891 = vsel %vm4092, %v5890, %v5889
    %v5892 = vrot.slane %v5878, 5
    %v5893 = vsel %vm4095, %v5892, %v5891
    %v5894 = vrot.slane %v5880, 4
    %v5895 = vsel %vm4098, %v5894, %v5893
    %v5896 = vrot.slane %v5882, 3
    %v5897 = vsel %vm4101, %v5896, %v5895
    %v5898 = vrot.slane %v5884, 2
    %v5899 = vsel %vm4104, %v5898, %v5897
    %v5900 = vrot.slane %v5886, 1
    %v5901 = vsel %vm4107, %v5900, %v5899
    %v5902 = vrot.slane %v5875, 7
    %v5903 = vsel %vm4089, %v5902, %v5873
    %v5904 = vrot.slane %v5877, 6
    %v5905 = vsel %vm4092, %v5904, %v5903
    %v5906 = vrot.slane %v5879, 5
    %v5907 = vsel %vm4095, %v5906, %v5905
    %v5908 = vrot.slane %v5881, 4
    %v5909 = vsel %vm4098, %v5908, %v5907
    %v5910 = vrot.slane %v5883, 3
    %v5911 = vsel %vm4101, %v5910, %v5909
    %v5912 = vrot.slane %v5885, 2
    %v5913 = vsel %vm4104, %v5912, %v5911
    %v5914 = vrot.slane %v5887, 1
    %v5915 = vsel %vm4107, %v5914, %v5913
    %v5916 = vpack.c.b16 %v5901, %v5901
    %v5917 = vpack.c.b16 %v5915, %v5915
    %v5928 = vunpack.c.l.b16 %v5824
    %v5929 = vunpack.c.h.b16 %v5824
    %v5930 = vunpack.c.l.b16 %v5825
    %v5931 = vunpack.c.h.b16 %v5825
    %v5932 = vunpack.c.l.b16 %v5826
    %v5933 = vunpack.c.h.b16 %v5826
    %v5934 = vunpack.c.l.b16 %v5827
    %v5935 = vunpack.c.h.b16 %v5827
    %v5936 = vunpack.c.l.b16 %v5828
    %v5937 = vunpack.c.h.b16 %v5828
    %v5938 = vunpack.c.l.b16 %v5829
    %v5939 = vunpack.c.h.b16 %v5829
    %v5940 = vunpack.c.l.b16 %v5830
    %v5941 = vunpack.c.h.b16 %v5830
    %v5942 = vunpack.c.l.b16 %v5831
    %v5943 = vunpack.c.h.b16 %v5831
    %v5944 = vpack.c.b16 %v5930, %v5928
    %v5945 = vpack.c.b16 %v5931, %v5929
    %v5946 = vpack.c.b16 %v5934, %v5932
    %v5947 = vpack.c.b16 %v5935, %v5933
    %v5948 = vpack.c.b16 %v5938, %v5936
    %v5949 = vpack.c.b16 %v5939, %v5937
    %v5950 = vpack.c.b16 %v5942, %v5940
    %v5951 = vpack.c.b16 %v5943, %v5941
    %5960 = vmatpush.bf16.xpose.msra.mxu0 0
    %5961 = vmatpush.bf16.xpose.msra.mxu0 0
    %5962 = vmatpush.bf16.xpose.msra.mxu0 0
    %5963 = vmatpush.bf16.xpose.msra.mxu0 0
    %5964 = vmatpush.bf16.xpose.msra.mxu0 %v5950
    %5965 = vmatpush.bf16.xpose.msra.mxu0 %v5948
    %5966 = vmatpush.bf16.xpose.msra.mxu0 %v5946
    %5967 = vmatpush.bf16.xpose.msra.mxu0 %v5944
    %5968 = vmatmul.bf16.gmra.mxu0 %v5916
    %v5969 = vpop.f32.mrf.mxu0
    %v5970 = vadd.f32 0.0, %v5969
    %v5971 = vpop.f32.mrf.mxu0
    %5972 = vdwg.mxu0
    %5973 = vmatpush.bf16.xpose.msra.mxu0 0
    %5974 = vmatpush.bf16.xpose.msra.mxu0 0
    %5975 = vmatpush.bf16.xpose.msra.mxu0 0
    %5976 = vmatpush.bf16.xpose.msra.mxu0 0
    %5977 = vmatpush.bf16.xpose.msra.mxu0 %v5951
    %5978 = vmatpush.bf16.xpose.msra.mxu0 %v5949
    %5979 = vmatpush.bf16.xpose.msra.mxu0 %v5947
    %5980 = vmatpush.bf16.xpose.msra.mxu0 %v5945
    %5981 = vmatmul.bf16.gmra.mxu0 %v5917
    %v5982 = vpop.f32.mrf.mxu0
    %v5983 = vadd.f32 %v5970, %v5982
    %v5984 = vpop.f32.mrf.mxu0
    %5985 = vdwg.mxu0
    %v5986 = vadd.f32 %v5822, %v5983
    %s5987 = scalar_lea.vmem [#allocation2], 768
    %v5988 = vld [vmem:[%s5987] sm:$0xff]
    %v5989 = vld [vmem:[%s5987 + $0x8] sm:$0xff]
    %v5990 = vld [vmem:[%s5987 + $0x10] sm:$0xff]
    %v5991 = vld [vmem:[%s5987 + $0x18] sm:$0xff]
    %v5992 = vld [vmem:[%s5987 + $0x20] sm:$0xff]
    %v5993 = vld [vmem:[%s5987 + $0x28] sm:$0xff]
    %v5994 = vld [vmem:[%s5987 + $0x30] sm:$0xff]
    %v5995 = vld [vmem:[%s5987 + $0x38] sm:$0xff]
    %v6004 = vunpack.c.l.b16 %v3899
    %v6005 = vunpack.c.h.b16 %v3899
    %v6006 = vunpack.c.l.b16 %v3915
    %v6007 = vunpack.c.h.b16 %v3915
    %v6008 = vunpack.c.l.b16 %v3931
    %v6009 = vunpack.c.h.b16 %v3931
    %v6010 = vunpack.c.l.b16 %v3947
    %v6011 = vunpack.c.h.b16 %v3947
    %v6012 = vunpack.c.l.b16 %v3963
    %v6013 = vunpack.c.h.b16 %v3963
    %v6014 = vunpack.c.l.b16 %v3979
    %v6015 = vunpack.c.h.b16 %v3979
    %v6016 = vunpack.c.l.b16 %v3995
    %v6017 = vunpack.c.h.b16 %v3995
    %v6018 = vunpack.c.l.b16 %v4011
    %v6019 = vunpack.c.h.b16 %v4011
    %v6020 = vpack.c.b16 %v6004, %v6004
    %v6021 = vpack.c.b16 %v6005, %v6005
    %v6022 = vpack.c.b16 %v6006, %v6006
    %v6023 = vpack.c.b16 %v6007, %v6007
    %v6024 = vpack.c.b16 %v6008, %v6008
    %v6025 = vpack.c.b16 %v6009, %v6009
    %v6026 = vpack.c.b16 %v6010, %v6010
    %v6027 = vpack.c.b16 %v6011, %v6011
    %v6028 = vpack.c.b16 %v6012, %v6012
    %v6029 = vpack.c.b16 %v6013, %v6013
    %v6030 = vpack.c.b16 %v6014, %v6014
    %v6031 = vpack.c.b16 %v6015, %v6015
    %v6032 = vpack.c.b16 %v6016, %v6016
    %v6033 = vpack.c.b16 %v6017, %v6017
    %v6034 = vpack.c.b16 %v6018, %v6018
    %v6035 = vpack.c.b16 %v6019, %v6019
    %v6036 = vunpack.c.l.b16 %v6020
    %v6037 = vunpack.c.l.b16 %v6021
    %v6038 = vunpack.c.l.b16 %v6022
    %v6039 = vunpack.c.l.b16 %v6023
    %v6040 = vunpack.c.l.b16 %v6024
    %v6041 = vunpack.c.l.b16 %v6025
    %v6042 = vunpack.c.l.b16 %v6026
    %v6043 = vunpack.c.l.b16 %v6027
    %v6044 = vunpack.c.l.b16 %v6028
    %v6045 = vunpack.c.l.b16 %v6029
    %v6046 = vunpack.c.l.b16 %v6030
    %v6047 = vunpack.c.l.b16 %v6031
    %v6048 = vunpack.c.l.b16 %v6032
    %v6049 = vunpack.c.l.b16 %v6033
    %v6050 = vunpack.c.l.b16 %v6034
    %v6051 = vunpack.c.l.b16 %v6035
    %v6052 = vrot.slane %v6038, 7
    %v6053 = vsel %vm4089, %v6052, %v6036
    %v6054 = vrot.slane %v6040, 6
    %v6055 = vsel %vm4092, %v6054, %v6053
    %v6056 = vrot.slane %v6042, 5
    %v6057 = vsel %vm4095, %v6056, %v6055
    %v6058 = vrot.slane %v6044, 4
    %v6059 = vsel %vm4098, %v6058, %v6057
    %v6060 = vrot.slane %v6046, 3
    %v6061 = vsel %vm4101, %v6060, %v6059
    %v6062 = vrot.slane %v6048, 2
    %v6063 = vsel %vm4104, %v6062, %v6061
    %v6064 = vrot.slane %v6050, 1
    %v6065 = vsel %vm4107, %v6064, %v6063
    %v6066 = vrot.slane %v6039, 7
    %v6067 = vsel %vm4089, %v6066, %v6037
    %v6068 = vrot.slane %v6041, 6
    %v6069 = vsel %vm4092, %v6068, %v6067
    %v6070 = vrot.slane %v6043, 5
    %v6071 = vsel %vm4095, %v6070, %v6069
    %v6072 = vrot.slane %v6045, 4
    %v6073 = vsel %vm4098, %v6072, %v6071
    %v6074 = vrot.slane %v6047, 3
    %v6075 = vsel %vm4101, %v6074, %v6073
    %v6076 = vrot.slane %v6049, 2
    %v6077 = vsel %vm4104, %v6076, %v6075
    %v6078 = vrot.slane %v6051, 1
    %v6079 = vsel %vm4107, %v6078, %v6077
    %v6080 = vpack.c.b16 %v6065, %v6065
    %v6081 = vpack.c.b16 %v6079, %v6079
    %v6092 = vunpack.c.l.b16 %v5988
    %v6093 = vunpack.c.h.b16 %v5988
    %v6094 = vunpack.c.l.b16 %v5989
    %v6095 = vunpack.c.h.b16 %v5989
    %v6096 = vunpack.c.l.b16 %v5990
    %v6097 = vunpack.c.h.b16 %v5990
    %v6098 = vunpack.c.l.b16 %v5991
    %v6099 = vunpack.c.h.b16 %v5991
    %v6100 = vunpack.c.l.b16 %v5992
    %v6101 = vunpack.c.h.b16 %v5992
    %v6102 = vunpack.c.l.b16 %v5993
    %v6103 = vunpack.c.h.b16 %v5993
    %v6104 = vunpack.c.l.b16 %v5994
    %v6105 = vunpack.c.h.b16 %v5994
    %v6106 = vunpack.c.l.b16 %v5995
    %v6107 = vunpack.c.h.b16 %v5995
    %v6108 = vpack.c.b16 %v6094, %v6092
    %v6109 = vpack.c.b16 %v6095, %v6093
    %v6110 = vpack.c.b16 %v6098, %v6096
    %v6111 = vpack.c.b16 %v6099, %v6097
    %v6112 = vpack.c.b16 %v6102, %v6100
    %v6113 = vpack.c.b16 %v6103, %v6101
    %v6114 = vpack.c.b16 %v6106, %v6104
    %v6115 = vpack.c.b16 %v6107, %v6105
    %6124 = vmatpush.bf16.xpose.msra.mxu0 0
    %6125 = vmatpush.bf16.xpose.msra.mxu0 0
    %6126 = vmatpush.bf16.xpose.msra.mxu0 0
    %6127 = vmatpush.bf16.xpose.msra.mxu0 0
    %6128 = vmatpush.bf16.xpose.msra.mxu0 %v6114
    %6129 = vmatpush.bf16.xpose.msra.mxu0 %v6112
    %6130 = vmatpush.bf16.xpose.msra.mxu0 %v6110
    %6131 = vmatpush.bf16.xpose.msra.mxu0 %v6108
    %6132 = vmatmul.bf16.gmra.mxu0 %v6080
    %v6133 = vpop.f32.mrf.mxu0
    %v6134 = vadd.f32 0.0, %v6133
    %v6135 = vpop.f32.mrf.mxu0
    %6136 = vdwg.mxu0
    %6137 = vmatpush.bf16.xpose.msra.mxu0 0
    %6138 = vmatpush.bf16.xpose.msra.mxu0 0
    %6139 = vmatpush.bf16.xpose.msra.mxu0 0
    %6140 = vmatpush.bf16.xpose.msra.mxu0 0
    %6141 = vmatpush.bf16.xpose.msra.mxu0 %v6115
    %6142 = vmatpush.bf16.xpose.msra.mxu0 %v6113
    %6143 = vmatpush.bf16.xpose.msra.mxu0 %v6111
    %6144 = vmatpush.bf16.xpose.msra.mxu0 %v6109
    %6145 = vmatmul.bf16.gmra.mxu0 %v6081
    %v6146 = vpop.f32.mrf.mxu0
    %v6147 = vadd.f32 %v6134, %v6146
    %v6148 = vpop.f32.mrf.mxu0
    %6149 = vdwg.mxu0
    %v6150 = vadd.f32 %v5986, %v6147
    %s6151 = scalar_lea.vmem [#allocation2], 832
    %v6152 = vld [vmem:[%s6151] sm:$0xff]
    %v6153 = vld [vmem:[%s6151 + $0x8] sm:$0xff]
    %v6154 = vld [vmem:[%s6151 + $0x10] sm:$0xff]
    %v6155 = vld [vmem:[%s6151 + $0x18] sm:$0xff]
    %v6156 = vld [vmem:[%s6151 + $0x20] sm:$0xff]
    %v6157 = vld [vmem:[%s6151 + $0x28] sm:$0xff]
    %v6158 = vld [vmem:[%s6151 + $0x30] sm:$0xff]
    %v6159 = vld [vmem:[%s6151 + $0x38] sm:$0xff]
    %v6168 = vunpack.c.l.b16 %v3900
    %v6169 = vunpack.c.h.b16 %v3900
    %v6170 = vunpack.c.l.b16 %v3916
    %v6171 = vunpack.c.h.b16 %v3916
    %v6172 = vunpack.c.l.b16 %v3932
    %v6173 = vunpack.c.h.b16 %v3932
    %v6174 = vunpack.c.l.b16 %v3948
    %v6175 = vunpack.c.h.b16 %v3948
    %v6176 = vunpack.c.l.b16 %v3964
    %v6177 = vunpack.c.h.b16 %v3964
    %v6178 = vunpack.c.l.b16 %v3980
    %v6179 = vunpack.c.h.b16 %v3980
    %v6180 = vunpack.c.l.b16 %v3996
    %v6181 = vunpack.c.h.b16 %v3996
    %v6182 = vunpack.c.l.b16 %v4012
    %v6183 = vunpack.c.h.b16 %v4012
    %v6184 = vpack.c.b16 %v6168, %v6168
    %v6185 = vpack.c.b16 %v6169, %v6169
    %v6186 = vpack.c.b16 %v6170, %v6170
    %v6187 = vpack.c.b16 %v6171, %v6171
    %v6188 = vpack.c.b16 %v6172, %v6172
    %v6189 = vpack.c.b16 %v6173, %v6173
    %v6190 = vpack.c.b16 %v6174, %v6174
    %v6191 = vpack.c.b16 %v6175, %v6175
    %v6192 = vpack.c.b16 %v6176, %v6176
    %v6193 = vpack.c.b16 %v6177, %v6177
    %v6194 = vpack.c.b16 %v6178, %v6178
    %v6195 = vpack.c.b16 %v6179, %v6179
    %v6196 = vpack.c.b16 %v6180, %v6180
    %v6197 = vpack.c.b16 %v6181, %v6181
    %v6198 = vpack.c.b16 %v6182, %v6182
    %v6199 = vpack.c.b16 %v6183, %v6183
    %v6200 = vunpack.c.l.b16 %v6184
    %v6201 = vunpack.c.l.b16 %v6185
    %v6202 = vunpack.c.l.b16 %v6186
    %v6203 = vunpack.c.l.b16 %v6187
    %v6204 = vunpack.c.l.b16 %v6188
    %v6205 = vunpack.c.l.b16 %v6189
    %v6206 = vunpack.c.l.b16 %v6190
    %v6207 = vunpack.c.l.b16 %v6191
    %v6208 = vunpack.c.l.b16 %v6192
    %v6209 = vunpack.c.l.b16 %v6193
    %v6210 = vunpack.c.l.b16 %v6194
    %v6211 = vunpack.c.l.b16 %v6195
    %v6212 = vunpack.c.l.b16 %v6196
    %v6213 = vunpack.c.l.b16 %v6197
    %v6214 = vunpack.c.l.b16 %v6198
    %v6215 = vunpack.c.l.b16 %v6199
    %v6216 = vrot.slane %v6202, 7
    %v6217 = vsel %vm4089, %v6216, %v6200
    %v6218 = vrot.slane %v6204, 6
    %v6219 = vsel %vm4092, %v6218, %v6217
    %v6220 = vrot.slane %v6206, 5
    %v6221 = vsel %vm4095, %v6220, %v6219
    %v6222 = vrot.slane %v6208, 4
    %v6223 = vsel %vm4098, %v6222, %v6221
    %v6224 = vrot.slane %v6210, 3
    %v6225 = vsel %vm4101, %v6224, %v6223
    %v6226 = vrot.slane %v6212, 2
    %v6227 = vsel %vm4104, %v6226, %v6225
    %v6228 = vrot.slane %v6214, 1
    %v6229 = vsel %vm4107, %v6228, %v6227
    %v6230 = vrot.slane %v6203, 7
    %v6231 = vsel %vm4089, %v6230, %v6201
    %v6232 = vrot.slane %v6205, 6
    %v6233 = vsel %vm4092, %v6232, %v6231
    %v6234 = vrot.slane %v6207, 5
    %v6235 = vsel %vm4095, %v6234, %v6233
    %v6236 = vrot.slane %v6209, 4
    %v6237 = vsel %vm4098, %v6236, %v6235
    %v6238 = vrot.slane %v6211, 3
    %v6239 = vsel %vm4101, %v6238, %v6237
    %v6240 = vrot.slane %v6213, 2
    %v6241 = vsel %vm4104, %v6240, %v6239
    %v6242 = vrot.slane %v6215, 1
    %v6243 = vsel %vm4107, %v6242, %v6241
    %v6244 = vpack.c.b16 %v6229, %v6229
    %v6245 = vpack.c.b16 %v6243, %v6243
    %v6256 = vunpack.c.l.b16 %v6152
    %v6257 = vunpack.c.h.b16 %v6152
    %v6258 = vunpack.c.l.b16 %v6153
    %v6259 = vunpack.c.h.b16 %v6153
    %v6260 = vunpack.c.l.b16 %v6154
    %v6261 = vunpack.c.h.b16 %v6154
    %v6262 = vunpack.c.l.b16 %v6155
    %v6263 = vunpack.c.h.b16 %v6155
    %v6264 = vunpack.c.l.b16 %v6156
    %v6265 = vunpack.c.h.b16 %v6156
    %v6266 = vunpack.c.l.b16 %v6157
    %v6267 = vunpack.c.h.b16 %v6157
    %v6268 = vunpack.c.l.b16 %v6158
    %v6269 = vunpack.c.h.b16 %v6158
    %v6270 = vunpack.c.l.b16 %v6159
    %v6271 = vunpack.c.h.b16 %v6159
    %v6272 = vpack.c.b16 %v6258, %v6256
    %v6273 = vpack.c.b16 %v6259, %v6257
    %v6274 = vpack.c.b16 %v6262, %v6260
    %v6275 = vpack.c.b16 %v6263, %v6261
    %v6276 = vpack.c.b16 %v6266, %v6264
    %v6277 = vpack.c.b16 %v6267, %v6265
    %v6278 = vpack.c.b16 %v6270, %v6268
    %v6279 = vpack.c.b16 %v6271, %v6269
    %6288 = vmatpush.bf16.xpose.msra.mxu0 0
    %6289 = vmatpush.bf16.xpose.msra.mxu0 0
    %6290 = vmatpush.bf16.xpose.msra.mxu0 0
    %6291 = vmatpush.bf16.xpose.msra.mxu0 0
    %6292 = vmatpush.bf16.xpose.msra.mxu0 %v6278
    %6293 = vmatpush.bf16.xpose.msra.mxu0 %v6276
    %6294 = vmatpush.bf16.xpose.msra.mxu0 %v6274
    %6295 = vmatpush.bf16.xpose.msra.mxu0 %v6272
    %6296 = vmatmul.bf16.gmra.mxu0 %v6244
    %v6297 = vpop.f32.mrf.mxu0
    %v6298 = vadd.f32 0.0, %v6297
    %v6299 = vpop.f32.mrf.mxu0
    %6300 = vdwg.mxu0
    %6301 = vmatpush.bf16.xpose.msra.mxu0 0
    %6302 = vmatpush.bf16.xpose.msra.mxu0 0
    %6303 = vmatpush.bf16.xpose.msra.mxu0 0
    %6304 = vmatpush.bf16.xpose.msra.mxu0 0
    %6305 = vmatpush.bf16.xpose.msra.mxu0 %v6279
    %6306 = vmatpush.bf16.xpose.msra.mxu0 %v6277
    %6307 = vmatpush.bf16.xpose.msra.mxu0 %v6275
    %6308 = vmatpush.bf16.xpose.msra.mxu0 %v6273
    %6309 = vmatmul.bf16.gmra.mxu0 %v6245
    %v6310 = vpop.f32.mrf.mxu0
    %v6311 = vadd.f32 %v6298, %v6310
    %v6312 = vpop.f32.mrf.mxu0
    %6313 = vdwg.mxu0
    %v6314 = vadd.f32 %v6150, %v6311
    %s6315 = scalar_lea.vmem [#allocation2], 896
    %v6316 = vld [vmem:[%s6315] sm:$0xff]
    %v6317 = vld [vmem:[%s6315 + $0x8] sm:$0xff]
    %v6318 = vld [vmem:[%s6315 + $0x10] sm:$0xff]
    %v6319 = vld [vmem:[%s6315 + $0x18] sm:$0xff]
    %v6320 = vld [vmem:[%s6315 + $0x20] sm:$0xff]
    %v6321 = vld [vmem:[%s6315 + $0x28] sm:$0xff]
    %v6322 = vld [vmem:[%s6315 + $0x30] sm:$0xff]
    %v6323 = vld [vmem:[%s6315 + $0x38] sm:$0xff]
    %v6332 = vunpack.c.l.b16 %v3901
    %v6333 = vunpack.c.h.b16 %v3901
    %v6334 = vunpack.c.l.b16 %v3917
    %v6335 = vunpack.c.h.b16 %v3917
    %v6336 = vunpack.c.l.b16 %v3933
    %v6337 = vunpack.c.h.b16 %v3933
    %v6338 = vunpack.c.l.b16 %v3949
    %v6339 = vunpack.c.h.b16 %v3949
    %v6340 = vunpack.c.l.b16 %v3965
    %v6341 = vunpack.c.h.b16 %v3965
    %v6342 = vunpack.c.l.b16 %v3981
    %v6343 = vunpack.c.h.b16 %v3981
    %v6344 = vunpack.c.l.b16 %v3997
    %v6345 = vunpack.c.h.b16 %v3997
    %v6346 = vunpack.c.l.b16 %v4013
    %v6347 = vunpack.c.h.b16 %v4013
    %v6348 = vpack.c.b16 %v6332, %v6332
    %v6349 = vpack.c.b16 %v6333, %v6333
    %v6350 = vpack.c.b16 %v6334, %v6334
    %v6351 = vpack.c.b16 %v6335, %v6335
    %v6352 = vpack.c.b16 %v6336, %v6336
    %v6353 = vpack.c.b16 %v6337, %v6337
    %v6354 = vpack.c.b16 %v6338, %v6338
    %v6355 = vpack.c.b16 %v6339, %v6339
    %v6356 = vpack.c.b16 %v6340, %v6340
    %v6357 = vpack.c.b16 %v6341, %v6341
    %v6358 = vpack.c.b16 %v6342, %v6342
    %v6359 = vpack.c.b16 %v6343, %v6343
    %v6360 = vpack.c.b16 %v6344, %v6344
    %v6361 = vpack.c.b16 %v6345, %v6345
    %v6362 = vpack.c.b16 %v6346, %v6346
    %v6363 = vpack.c.b16 %v6347, %v6347
    %v6364 = vunpack.c.l.b16 %v6348
    %v6365 = vunpack.c.l.b16 %v6349
    %v6366 = vunpack.c.l.b16 %v6350
    %v6367 = vunpack.c.l.b16 %v6351
    %v6368 = vunpack.c.l.b16 %v6352
    %v6369 = vunpack.c.l.b16 %v6353
    %v6370 = vunpack.c.l.b16 %v6354
    %v6371 = vunpack.c.l.b16 %v6355
    %v6372 = vunpack.c.l.b16 %v6356
    %v6373 = vunpack.c.l.b16 %v6357
    %v6374 = vunpack.c.l.b16 %v6358
    %v6375 = vunpack.c.l.b16 %v6359
    %v6376 = vunpack.c.l.b16 %v6360
    %v6377 = vunpack.c.l.b16 %v6361
    %v6378 = vunpack.c.l.b16 %v6362
    %v6379 = vunpack.c.l.b16 %v6363
    %v6380 = vrot.slane %v6366, 7
    %v6381 = vsel %vm4089, %v6380, %v6364
    %v6382 = vrot.slane %v6368, 6
    %v6383 = vsel %vm4092, %v6382, %v6381
    %v6384 = vrot.slane %v6370, 5
    %v6385 = vsel %vm4095, %v6384, %v6383
    %v6386 = vrot.slane %v6372, 4
    %v6387 = vsel %vm4098, %v6386, %v6385
    %v6388 = vrot.slane %v6374, 3
    %v6389 = vsel %vm4101, %v6388, %v6387
    %v6390 = vrot.slane %v6376, 2
    %v6391 = vsel %vm4104, %v6390, %v6389
    %v6392 = vrot.slane %v6378, 1
    %v6393 = vsel %vm4107, %v6392, %v6391
    %v6394 = vrot.slane %v6367, 7
    %v6395 = vsel %vm4089, %v6394, %v6365
    %v6396 = vrot.slane %v6369, 6
    %v6397 = vsel %vm4092, %v6396, %v6395
    %v6398 = vrot.slane %v6371, 5
    %v6399 = vsel %vm4095, %v6398, %v6397
    %v6400 = vrot.slane %v6373, 4
    %v6401 = vsel %vm4098, %v6400, %v6399
    %v6402 = vrot.slane %v6375, 3
    %v6403 = vsel %vm4101, %v6402, %v6401
    %v6404 = vrot.slane %v6377, 2
    %v6405 = vsel %vm4104, %v6404, %v6403
    %v6406 = vrot.slane %v6379, 1
    %v6407 = vsel %vm4107, %v6406, %v6405
    %v6408 = vpack.c.b16 %v6393, %v6393
    %v6409 = vpack.c.b16 %v6407, %v6407
    %v6420 = vunpack.c.l.b16 %v6316
    %v6421 = vunpack.c.h.b16 %v6316
    %v6422 = vunpack.c.l.b16 %v6317
    %v6423 = vunpack.c.h.b16 %v6317
    %v6424 = vunpack.c.l.b16 %v6318
    %v6425 = vunpack.c.h.b16 %v6318
    %v6426 = vunpack.c.l.b16 %v6319
    %v6427 = vunpack.c.h.b16 %v6319
    %v6428 = vunpack.c.l.b16 %v6320
    %v6429 = vunpack.c.h.b16 %v6320
    %v6430 = vunpack.c.l.b16 %v6321
    %v6431 = vunpack.c.h.b16 %v6321
    %v6432 = vunpack.c.l.b16 %v6322
    %v6433 = vunpack.c.h.b16 %v6322
    %v6434 = vunpack.c.l.b16 %v6323
    %v6435 = vunpack.c.h.b16 %v6323
    %v6436 = vpack.c.b16 %v6422, %v6420
    %v6437 = vpack.c.b16 %v6423, %v6421
    %v6438 = vpack.c.b16 %v6426, %v6424
    %v6439 = vpack.c.b16 %v6427, %v6425
    %v6440 = vpack.c.b16 %v6430, %v6428
    %v6441 = vpack.c.b16 %v6431, %v6429
    %v6442 = vpack.c.b16 %v6434, %v6432
    %v6443 = vpack.c.b16 %v6435, %v6433
    %6452 = vmatpush.bf16.xpose.msra.mxu0 0
    %6453 = vmatpush.bf16.xpose.msra.mxu0 0
    %6454 = vmatpush.bf16.xpose.msra.mxu0 0
    %6455 = vmatpush.bf16.xpose.msra.mxu0 0
    %6456 = vmatpush.bf16.xpose.msra.mxu0 %v6442
    %6457 = vmatpush.bf16.xpose.msra.mxu0 %v6440
    %6458 = vmatpush.bf16.xpose.msra.mxu0 %v6438
    %6459 = vmatpush.bf16.xpose.msra.mxu0 %v6436
    %6460 = vmatmul.bf16.gmra.mxu0 %v6408
    %v6461 = vpop.f32.mrf.mxu0
    %v6462 = vadd.f32 0.0, %v6461
    %v6463 = vpop.f32.mrf.mxu0
    %6464 = vdwg.mxu0
    %6465 = vmatpush.bf16.xpose.msra.mxu0 0
    %6466 = vmatpush.bf16.xpose.msra.mxu0 0
    %6467 = vmatpush.bf16.xpose.msra.mxu0 0
    %6468 = vmatpush.bf16.xpose.msra.mxu0 0
    %6469 = vmatpush.bf16.xpose.msra.mxu0 %v6443
    %6470 = vmatpush.bf16.xpose.msra.mxu0 %v6441
    %6471 = vmatpush.bf16.xpose.msra.mxu0 %v6439
    %6472 = vmatpush.bf16.xpose.msra.mxu0 %v6437
    %6473 = vmatmul.bf16.gmra.mxu0 %v6409
    %v6474 = vpop.f32.mrf.mxu0
    %v6475 = vadd.f32 %v6462, %v6474
    %v6476 = vpop.f32.mrf.mxu0
    %6477 = vdwg.mxu0
    %v6478 = vadd.f32 %v6314, %v6475
    %s6479 = scalar_lea.vmem [#allocation2], 960
    %v6480 = vld [vmem:[%s6479] sm:$0xff]
    %v6481 = vld [vmem:[%s6479 + $0x8] sm:$0xff]
    %v6482 = vld [vmem:[%s6479 + $0x10] sm:$0xff]
    %v6483 = vld [vmem:[%s6479 + $0x18] sm:$0xff]
    %v6484 = vld [vmem:[%s6479 + $0x20] sm:$0xff]
    %v6485 = vld [vmem:[%s6479 + $0x28] sm:$0xff]
    %v6486 = vld [vmem:[%s6479 + $0x30] sm:$0xff]
    %v6487 = vld [vmem:[%s6479 + $0x38] sm:$0xff]
    %v6496 = vunpack.c.l.b16 %v3902
    %v6497 = vunpack.c.h.b16 %v3902
    %v6498 = vunpack.c.l.b16 %v3918
    %v6499 = vunpack.c.h.b16 %v3918
    %v6500 = vunpack.c.l.b16 %v3934
    %v6501 = vunpack.c.h.b16 %v3934
    %v6502 = vunpack.c.l.b16 %v3950
    %v6503 = vunpack.c.h.b16 %v3950
    %v6504 = vunpack.c.l.b16 %v3966
    %v6505 = vunpack.c.h.b16 %v3966
    %v6506 = vunpack.c.l.b16 %v3982
    %v6507 = vunpack.c.h.b16 %v3982
    %v6508 = vunpack.c.l.b16 %v3998
    %v6509 = vunpack.c.h.b16 %v3998
    %v6510 = vunpack.c.l.b16 %v4014
    %v6511 = vunpack.c.h.b16 %v4014
    %v6512 = vpack.c.b16 %v6496, %v6496
    %v6513 = vpack.c.b16 %v6497, %v6497
    %v6514 = vpack.c.b16 %v6498, %v6498
    %v6515 = vpack.c.b16 %v6499, %v6499
    %v6516 = vpack.c.b16 %v6500, %v6500
    %v6517 = vpack.c.b16 %v6501, %v6501
    %v6518 = vpack.c.b16 %v6502, %v6502
    %v6519 = vpack.c.b16 %v6503, %v6503
    %v6520 = vpack.c.b16 %v6504, %v6504
    %v6521 = vpack.c.b16 %v6505, %v6505
    %v6522 = vpack.c.b16 %v6506, %v6506
    %v6523 = vpack.c.b16 %v6507, %v6507
    %v6524 = vpack.c.b16 %v6508, %v6508
    %v6525 = vpack.c.b16 %v6509, %v6509
    %v6526 = vpack.c.b16 %v6510, %v6510
    %v6527 = vpack.c.b16 %v6511, %v6511
    %v6528 = vunpack.c.l.b16 %v6512
    %v6529 = vunpack.c.l.b16 %v6513
    %v6530 = vunpack.c.l.b16 %v6514
    %v6531 = vunpack.c.l.b16 %v6515
    %v6532 = vunpack.c.l.b16 %v6516
    %v6533 = vunpack.c.l.b16 %v6517
    %v6534 = vunpack.c.l.b16 %v6518
    %v6535 = vunpack.c.l.b16 %v6519
    %v6536 = vunpack.c.l.b16 %v6520
    %v6537 = vunpack.c.l.b16 %v6521
    %v6538 = vunpack.c.l.b16 %v6522
    %v6539 = vunpack.c.l.b16 %v6523
    %v6540 = vunpack.c.l.b16 %v6524
    %v6541 = vunpack.c.l.b16 %v6525
    %v6542 = vunpack.c.l.b16 %v6526
    %v6543 = vunpack.c.l.b16 %v6527
    %v6544 = vrot.slane %v6530, 7
    %v6545 = vsel %vm4089, %v6544, %v6528
    %v6546 = vrot.slane %v6532, 6
    %v6547 = vsel %vm4092, %v6546, %v6545
    %v6548 = vrot.slane %v6534, 5
    %v6549 = vsel %vm4095, %v6548, %v6547
    %v6550 = vrot.slane %v6536, 4
    %v6551 = vsel %vm4098, %v6550, %v6549
    %v6552 = vrot.slane %v6538, 3
    %v6553 = vsel %vm4101, %v6552, %v6551
    %v6554 = vrot.slane %v6540, 2
    %v6555 = vsel %vm4104, %v6554, %v6553
    %v6556 = vrot.slane %v6542, 1
    %v6557 = vsel %vm4107, %v6556, %v6555
    %v6558 = vrot.slane %v6531, 7
    %v6559 = vsel %vm4089, %v6558, %v6529
    %v6560 = vrot.slane %v6533, 6
    %v6561 = vsel %vm4092, %v6560, %v6559
    %v6562 = vrot.slane %v6535, 5
    %v6563 = vsel %vm4095, %v6562, %v6561
    %v6564 = vrot.slane %v6537, 4
    %v6565 = vsel %vm4098, %v6564, %v6563
    %v6566 = vrot.slane %v6539, 3
    %v6567 = vsel %vm4101, %v6566, %v6565
    %v6568 = vrot.slane %v6541, 2
    %v6569 = vsel %vm4104, %v6568, %v6567
    %v6570 = vrot.slane %v6543, 1
    %v6571 = vsel %vm4107, %v6570, %v6569
    %v6572 = vpack.c.b16 %v6557, %v6557
    %v6573 = vpack.c.b16 %v6571, %v6571
    %v6584 = vunpack.c.l.b16 %v6480
    %v6585 = vunpack.c.h.b16 %v6480
    %v6586 = vunpack.c.l.b16 %v6481
    %v6587 = vunpack.c.h.b16 %v6481
    %v6588 = vunpack.c.l.b16 %v6482
    %v6589 = vunpack.c.h.b16 %v6482
    %v6590 = vunpack.c.l.b16 %v6483
    %v6591 = vunpack.c.h.b16 %v6483
    %v6592 = vunpack.c.l.b16 %v6484
    %v6593 = vunpack.c.h.b16 %v6484
    %v6594 = vunpack.c.l.b16 %v6485
    %v6595 = vunpack.c.h.b16 %v6485
    %v6596 = vunpack.c.l.b16 %v6486
    %v6597 = vunpack.c.h.b16 %v6486
    %v6598 = vunpack.c.l.b16 %v6487
    %v6599 = vunpack.c.h.b16 %v6487
    %v6600 = vpack.c.b16 %v6586, %v6584
    %v6601 = vpack.c.b16 %v6587, %v6585
    %v6602 = vpack.c.b16 %v6590, %v6588
    %v6603 = vpack.c.b16 %v6591, %v6589
    %v6604 = vpack.c.b16 %v6594, %v6592
    %v6605 = vpack.c.b16 %v6595, %v6593
    %v6606 = vpack.c.b16 %v6598, %v6596
    %v6607 = vpack.c.b16 %v6599, %v6597
    %6616 = vmatpush.bf16.xpose.msra.mxu0 0
    %6617 = vmatpush.bf16.xpose.msra.mxu0 0
    %6618 = vmatpush.bf16.xpose.msra.mxu0 0
    %6619 = vmatpush.bf16.xpose.msra.mxu0 0
    %6620 = vmatpush.bf16.xpose.msra.mxu0 %v6606
    %6621 = vmatpush.bf16.xpose.msra.mxu0 %v6604
    %6622 = vmatpush.bf16.xpose.msra.mxu0 %v6602
    %6623 = vmatpush.bf16.xpose.msra.mxu0 %v6600
    %6624 = vmatmul.bf16.gmra.mxu0 %v6572
    %v6625 = vpop.f32.mrf.mxu0
    %v6626 = vadd.f32 0.0, %v6625
    %v6627 = vpop.f32.mrf.mxu0
    %6628 = vdwg.mxu0
    %6629 = vmatpush.bf16.xpose.msra.mxu0 0
    %6630 = vmatpush.bf16.xpose.msra.mxu0 0
    %6631 = vmatpush.bf16.xpose.msra.mxu0 0
    %6632 = vmatpush.bf16.xpose.msra.mxu0 0
    %6633 = vmatpush.bf16.xpose.msra.mxu0 %v6607
    %6634 = vmatpush.bf16.xpose.msra.mxu0 %v6605
    %6635 = vmatpush.bf16.xpose.msra.mxu0 %v6603
    %6636 = vmatpush.bf16.xpose.msra.mxu0 %v6601
    %6637 = vmatmul.bf16.gmra.mxu0 %v6573
    %v6638 = vpop.f32.mrf.mxu0
    %v6639 = vadd.f32 %v6626, %v6638
    %v6640 = vpop.f32.mrf.mxu0
    %6641 = vdwg.mxu0
    %v6642 = vadd.f32 %v6478, %v6639
    %v6643 = vld [vmem:[%s4] sm:$0x1]
    %v6645 = vperm.slane %v6643, 0
    %v6647 = vadd.f32 %v6642, %v6645
    %v6648 = vmax.f32 %v6647, 0.0
    %v6649 = vpack.c.bf16 %v6648, %v6648
    %v6650 = vld [vmem:[%s5] sm:$0xf]
    %v6651 = vld [vmem:[%s5 + $0x4] sm:$0xf]
    %v6652 = vld [vmem:[%s5 + $0x8] sm:$0xf]
    %v6653 = vld [vmem:[%s5 + $0xc] sm:$0xf]
    %v6654 = vld [vmem:[%s5 + $0x10] sm:$0xf]
    %v6655 = vld [vmem:[%s5 + $0x14] sm:$0xf]
    %v6656 = vld [vmem:[%s5 + $0x18] sm:$0xf]
    %v6657 = vld [vmem:[%s5 + $0x1c] sm:$0xf]
    %v6658 = vld [vmem:[%s5 + $0x20] sm:$0xf]
    %v6659 = vld [vmem:[%s5 + $0x24] sm:$0xf]
    %v6660 = vld [vmem:[%s5 + $0x28] sm:$0xf]
    %v6661 = vld [vmem:[%s5 + $0x2c] sm:$0xf]
    %v6662 = vld [vmem:[%s5 + $0x30] sm:$0xf]
    %v6663 = vld [vmem:[%s5 + $0x34] sm:$0xf]
    %v6664 = vld [vmem:[%s5 + $0x38] sm:$0xf]
    %v6665 = vld [vmem:[%s5 + $0x3c] sm:$0xf]
    %v6666 = vld [vmem:[%s6] sm:$0x1]
    %v6668 = vperm.slane %v6666, 0
    %v6686 = vunpack.c.l.b16 %v6650
    %v6687 = vunpack.c.l.b16 %v6651
    %v6688 = vunpack.c.l.b16 %v6652
    %v6689 = vunpack.c.l.b16 %v6653
    %v6690 = vunpack.c.l.b16 %v6654
    %v6691 = vunpack.c.l.b16 %v6655
    %v6692 = vunpack.c.l.b16 %v6656
    %v6693 = vunpack.c.l.b16 %v6657
    %v6694 = vunpack.c.l.b16 %v6658
    %v6695 = vunpack.c.l.b16 %v6659
    %v6696 = vunpack.c.l.b16 %v6660
    %v6697 = vunpack.c.l.b16 %v6661
    %v6698 = vunpack.c.l.b16 %v6662
    %v6699 = vunpack.c.l.b16 %v6663
    %v6700 = vunpack.c.l.b16 %v6664
    %v6701 = vunpack.c.l.b16 %v6665
    %v6702 = vpack.c.b16 %v6687, %v6686
    %v6703 = vpack.c.b16 %v6689, %v6688
    %v6704 = vpack.c.b16 %v6691, %v6690
    %v6705 = vpack.c.b16 %v6693, %v6692
    %v6706 = vpack.c.b16 %v6695, %v6694
    %v6707 = vpack.c.b16 %v6697, %v6696
    %v6708 = vpack.c.b16 %v6699, %v6698
    %v6709 = vpack.c.b16 %v6701, %v6700
    %vm6710 = vcmask 523264
    %v6712 = vsel %vm6710, %v6649, 0
    %v6715 = vsel %vm6710, %v6702, 0
    %v6718 = vsel %vm6710, %v6703, 0
    %v6721 = vsel %vm6710, %v6704, 0
    %v6724 = vsel %vm6710, %v6705, 0
    %v6727 = vsel %vm6710, %v6706, 0
    %v6730 = vsel %vm6710, %v6707, 0
    %v6733 = vsel %vm6710, %v6708, 0
    %v6736 = vsel %vm6710, %v6709, 0
    %6738 = vmatpush.bf16.xpose.msra.mxu0 %v6736
    %6739 = vmatpush.bf16.xpose.msra.mxu0 %v6733
    %6740 = vmatpush.bf16.xpose.msra.mxu0 %v6730
    %6741 = vmatpush.bf16.xpose.msra.mxu0 %v6727
    %6742 = vmatpush.bf16.xpose.msra.mxu0 %v6724
    %6743 = vmatpush.bf16.xpose.msra.mxu0 %v6721
    %6744 = vmatpush.bf16.xpose.msra.mxu0 %v6718
    %6745 = vmatpush.bf16.xpose.msra.mxu0 %v6715
    %6746 = vmatmul.bf16.gmra.mxu0 %v6712
    %v6747 = vpop.f32.mrf.mxu0
    %v6748 = vadd.f32 %v6668, %v6747
    %v6749 = vpop.f32.mrf.mxu0
    %6750 = vdwg.mxu0
    %6751 = vst [vmem:[%s7] sm:$0xff] %v6748
    // Predicated region
    $region34: #{net4_forward.1} parent=1 // pred_check
      _
    $region35: #{net4_forward.1} parent=1 // pred_check_branch
      %6753 = sbr.rel (0) target = $region37
    $region36: #{net4_forward.1} parent=1 // pred_region
      _
    $region37: #{net4_forward.1} parent=1 // pred_fallthru
      _
    // Predicated region
    $region38: #{net4_forward.1} parent=1 // pred_check
      _
    $region39: #{net4_forward.1} parent=1 // pred_check_branch
      %6755 = sbr.rel (0) target = $region41
    $region40: #{net4_forward.1} parent=1 // pred_region
      _
    $region41: #{net4_forward.1} parent=1 // pred_fallthru
      _
    %6756 = vsyncpa [#allocation3], 1

</llo_original>
